<compile_context>
chip_gen: v5e
topology: v5e:2x2
jax: 0.10.0
libtpu: 0.0.40
codegen_flags: <defaults>
</compile_context>

<pallas_src>
import functools

import jax
import jax.numpy as jnp
from jax.experimental import pallas as pl
from jax.experimental.pallas import tpu as pltpu


def _softmax(z):
    """Numerically-stable softmax over the last axis (matches torch.softmax)."""
    z = z.astype(jnp.float32)
    m = jnp.max(z, axis=-1, keepdims=True)
    e = jnp.exp(z - m)
    # Exact reciprocal keeps the 1e-4 comparison against the reference tight;
    # approx=True (EUP vrcp) is ~1e-3 relative error.
    return e * pl.reciprocal(jnp.sum(e, axis=-1, keepdims=True), approx=False)


def _attention_layer_kernel(
    x_ref,        # (Bb, L, D)   input block
    wt_ref,       # (T, D)       tokenizer.token_weight, PyTorch (out, in) layout
    wq_in_ref,    # (D, D)       in_Q   (in, out) layout
    wk_in_ref,    # (D, D)       in_K
    w_fc_ref,     # (D, D)       mlp.c_fc weight
    b_fc_ref,     # (1, D)       mlp.c_fc bias
    w_proj_ref,   # (D, D)       mlp.c_proj weight
    b_proj_ref,   # (1, D)       mlp.c_proj bias
    wq_out_ref,   # (D, D)       out_Q
    wk_out_ref,   # (D, D)       out_K
    x_out_ref,    # (Bb, L, D)
    t_out_ref,    # (Bb, T, D)
):
    f32 = jnp.float32
    Bb, L, D = x_ref.shape
    T = wt_ref.shape[0]

    x = x_ref[...]                      # keep MXU operands in the input dtype
    x2d = x.reshape(Bb * L, D)

    # ---------------- Visual_Tokenizer (static) ----------------
    # scores[b, t, l] = <wt[t, :], x[b, l, :]>  (NT form, no transpose needed)
    wt_b = jnp.broadcast_to(wt_ref[...], (Bb, T, D))
    scores = jnp.einsum("btd,bld->btl", wt_b, x, preferred_element_type=f32)
    aw = _softmax(scores)                                            # softmax over L
    t_in = jnp.einsum("btl,bld->btd", aw.astype(x.dtype), x,
                      preferred_element_type=f32)                    # (Bb, T, D) f32

    # ---------------- token self-attention ----------------
    t2d = t_in.reshape(Bb * T, D)
    q = jnp.dot(t2d, wq_in_ref[...], preferred_element_type=f32).reshape(Bb, T, D)
    k = jnp.dot(t2d, wk_in_ref[...], preferred_element_type=f32).reshape(Bb, T, D)
    a1 = _softmax(jnp.einsum("btd,bsd->bts", q, k, preferred_element_type=f32))
    t_out_p = t_in + jnp.einsum("bts,bsd->btd", a1, t_in,
                                preferred_element_type=f32)          # (Bb, T, D)

    # ---------------- MLP (dropout is identity for p=0 / eval) ----------------
    tp2d = t_out_p.reshape(Bb * T, D)
    h = jnp.dot(tp2d, w_fc_ref[...], preferred_element_type=f32) + b_fc_ref[...].astype(f32)
    h = jnp.maximum(h, 0.0)                                          # ReLU
    mlp = jnp.dot(h, w_proj_ref[...], preferred_element_type=f32) + b_proj_ref[...].astype(f32)
    t_out = t_out_p + mlp.reshape(Bb, T, D)                          # (Bb, T, D) f32

    # ---------------- x <-> token cross attention ----------------
    oq = jnp.dot(x2d, wq_out_ref[...], preferred_element_type=f32).reshape(Bb, L, D)
    ok = jnp.dot(t_out.reshape(Bb * T, D), wk_out_ref[...],
                 preferred_element_type=f32).reshape(Bb, T, D)
    a2 = _softmax(jnp.einsum("bld,btd->blt", oq, ok, preferred_element_type=f32))
    x_out = x.astype(f32) + jnp.einsum("blt,btd->bld", a2, t_out,
                                       preferred_element_type=f32)   # (Bb, L, D)

    x_out_ref[...] = x_out.astype(x_out_ref.dtype)
    t_out_ref[...] = t_out.astype(t_out_ref.dtype)


# ---------------------------------------------------------------------------
# VMEM budgeting / batch-block selection
# ---------------------------------------------------------------------------
def _vmem_estimate_bytes(bb, L, D, T, itemsize):
    # double-buffered I/O tiles (x, x_out, t_out)
    io = 2 * (2 * bb * L * D + bb * T * D) * itemsize
    # weights (worst case: double-buffered, f32)
    wts = 2 * (T * D + 6 * D * D + 2 * D) * 4
    # rough f32 working set of the kernel body
    work = 4 * bb * (4 * L * D + 3 * L * T + 9 * T * D + T * T)
    return io + wts + work


def _pick_block_b(B, L, D, T, itemsize, budget=48 * 1024 * 1024):
    best = 1
    for bb in range(1, B + 1):
        if B % bb != 0:
            continue
        if B >= 2 and (B // bb) < 2:
            continue  # keep >= 2 grid steps so both v7x TensorCores get work
        if _vmem_estimate_bytes(bb, L, D, T, itemsize) <= budget:
            best = max(best, bb)
    return best


def _vmem_limit_bytes(bb, L, D, T, itemsize):
    est = _vmem_estimate_bytes(bb, L, D, T, itemsize)
    return int(min(max(2 * est, 32 * 1024 * 1024), 64 * 1024 * 1024))


# ---------------------------------------------------------------------------
# pallas_call builder (cached per static configuration)
# ---------------------------------------------------------------------------
@functools.lru_cache(maxsize=None)
def _build_attention_layer(B, L, D, T, block_b, dtype_name, single_buffer_weights):
    dtype = jnp.dtype(dtype_name)
    grid = (B // block_b,)

    def wspec(shape):
        index_map = lambda b, shape=shape: (0,) * len(shape)
        if single_buffer_weights:
            # Invariant across the batch grid -> no second pipeline buffer needed.
            return pl.BlockSpec(shape, index_map, pipeline_mode=pl.Buffered(1))
        return pl.BlockSpec(shape, index_map)

    grid_spec = pltpu.PrefetchScalarGridSpec(
        num_scalar_prefetch=0,
        grid=grid,
        in_specs=[
            pl.BlockSpec((block_b, L, D), lambda b: (b, 0, 0)),   # x
            wspec((T, D)),                                        # wt (torch layout)
            wspec((D, D)),                                        # wq_in
            wspec((D, D)),                                        # wk_in
            wspec((D, D)),                                        # w_fc
            wspec((1, D)),                                        # b_fc
            wspec((D, D)),                                        # w_proj
            wspec((1, D)),                                        # b_proj
            wspec((D, D)),                                        # wq_out
            wspec((D, D)),                                        # wk_out
        ],
        out_specs=[
            pl.BlockSpec((block_b, L, D), lambda b: (b, 0, 0)),   # x_out
            pl.BlockSpec((block_b, T, D), lambda b: (b, 0, 0)),   # t_out
        ],
    )

    call = pl.pallas_call(
        _attention_layer_kernel,
        out_shape=(
            jax.ShapeDtypeStruct((B, L, D), dtype),
            jax.ShapeDtypeStruct((B, T, D), dtype),
        ),
        grid_spec=grid_spec,
        compiler_params=pltpu.CompilerParams(
            dimension_semantics=("parallel",),
            vmem_limit_bytes=_vmem_limit_bytes(block_b, L, D, T, dtype.itemsize),
        ),
    )
    return jax.jit(call)


def attention_layer(x, params, block_b=None):
    """x: (B, L, D).  params: dict of weights (JAX (in, out) layout, wt as (D, T))."""
    B, L, D = x.shape
    T = params["wt"].shape[1]
    itemsize = jnp.dtype(x.dtype).itemsize
    if block_b is None:
        block_b = _pick_block_b(B, L, D, T, itemsize)
    assert B % block_b == 0

    # Pass the tokenizer weight in its native PyTorch (T, D) layout so the kernel
    # never has to transpose the (L, T) logits.
    wt_t = jnp.transpose(params["wt"])
    args = (
        x, wt_t,
        params["wq_in"], params["wk_in"],
        params["w_fc"], params["b_fc"],
        params["w_proj"], params["b_proj"],
        params["wq_out"], params["wk_out"],
    )
    dtype_name = jnp.dtype(x.dtype).name
    try:
        fn = _build_attention_layer(B, L, D, T, block_b, dtype_name, True)
        return fn(*args)
    except Exception:
        # pl.Buffered(1) unsupported on this jax version -> default double buffering.
        fn = _build_attention_layer(B, L, D, T, block_b, dtype_name, False)
        return fn(*args)


# ---------------------------------------------------------------------------
# Pure-JAX reference of the PyTorch forward (static tokenizer, dropout=identity)
# ---------------------------------------------------------------------------
def reference_attention_layer(x, params):
    aw = jax.nn.softmax(jnp.einsum("bld,dt->btl", x, params["wt"]), axis=-1)
    t_in = jnp.einsum("btl,bld->btd", aw, x)
    q = t_in @ params["wq_in"]
    k = t_in @ params["wk_in"]
    a1 = jax.nn.softmax(jnp.einsum("btd,bsd->bts", q, k), axis=-1)
    t_out_p = t_in + jnp.einsum("bts,bsd->btd", a1, t_in)
    h = jnp.maximum(t_out_p @ params["w_fc"] + params["b_fc"], 0.0)
    t_out = t_out_p + (h @ params["w_proj"] + params["b_proj"])
    oq = x @ params["wq_out"]
    ok = t_out @ params["wk_out"]
    a2 = jax.nn.softmax(jnp.einsum("bld,btd->blt", oq, ok), axis=-1)
    x_out = x + jnp.einsum("blt,btd->bld", a2, t_out)
    return x_out, t_out


def init_params(key, in_dim, hidden_dim, num_tokens):
    assert in_dim == hidden_dim, "forward requires in_dim == hidden_dim"
    ks = jax.random.split(key, 9)
    s = 0.1
    D, T = hidden_dim, num_tokens
    return {
        "wt":     s * jax.random.normal(ks[0], (D, T), jnp.float32),
        "wq_in":  s * jax.random.normal(ks[1], (D, D), jnp.float32),
        "wk_in":  s * jax.random.normal(ks[2], (D, D), jnp.float32),
        "w_fc":   s * jax.random.normal(ks[3], (D, D), jnp.float32),
        "b_fc":   s * jax.random.normal(ks[4], (1, D), jnp.float32),
        "w_proj": s * jax.random.normal(ks[5], (D, D), jnp.float32),
        "b_proj": s * jax.random.normal(ks[6], (1, D), jnp.float32),
        "wq_out": s * jax.random.normal(ks[7], (D, D), jnp.float32),
        "wk_out": s * jax.random.normal(ks[8], (D, D), jnp.float32),
    }


if __name__ == "__main__":
    # Small shapes consistent with the module: B=4, seq L=16, in_dim=hidden_dim=32,
    # num_tokens=8, dropout=0 (identity), static=True.  block_b=2 -> grid=(2,),
    # exercising the multi-batch-per-step path on an even grid.
    B, L, D, T = 4, 16, 32, 8
    key = jax.random.PRNGKey(0)
    kx, kp = jax.random.split(key)
    x = jax.random.normal(kx, (B, L, D), jnp.float32)
    params = init_params(kp, in_dim=D, hidden_dim=D, num_tokens=T)

    x_out, t_out = attention_layer(x, params)
    jax.block_until_ready((x_out, t_out))

    # Verify against a pure-JAX reference of the PyTorch forward.
    x_ref, t_ref = reference_attention_layer(x, params)
    assert x_out.shape == (B, L, D) and t_out.shape == (B, T, D)
    assert jnp.allclose(x_out, x_ref, atol=1e-4, rtol=1e-4)
    assert jnp.allclose(t_out, t_ref, atol=1e-4, rtol=1e-4)

    print("KERNEL_OK")
</pallas_src>

<mosaic_0001>
module attributes {stable_mosaic.version = 11 : i64} {
  func.func @_attention_layer_kernel(%arg0: i32, %arg1: memref<2x16x32xf32, #tpu.memory_space<vmem>>, %arg2: memref<8x32xf32, #tpu.memory_space<vmem>>, %arg3: memref<32x32xf32, #tpu.memory_space<vmem>>, %arg4: memref<32x32xf32, #tpu.memory_space<vmem>>, %arg5: memref<32x32xf32, #tpu.memory_space<vmem>>, %arg6: memref<1x32xf32, #tpu.memory_space<vmem>>, %arg7: memref<32x32xf32, #tpu.memory_space<vmem>>, %arg8: memref<1x32xf32, #tpu.memory_space<vmem>>, %arg9: memref<32x32xf32, #tpu.memory_space<vmem>>, %arg10: memref<32x32xf32, #tpu.memory_space<vmem>>, %arg11: memref<2x16x32xf32, #tpu.memory_space<vmem>>, %arg12: memref<2x8x32xf32, #tpu.memory_space<vmem>>) attributes {dimension_semantics = [#tpu.dimension_semantics<parallel>], iteration_bounds = array<i64: 2>, scalar_prefetch = 0 : i64, scratch_operands = 0 : i64, tpu.core_type = #tpu.core_type<tc>, window_params = [{transform_indices = @transform_0, window_bounds = array<i64: 2, 16, 32>}, {pipeline_mode = #tpu.pipeline_mode<synchronous>, transform_indices = @transform_1, window_bounds = array<i64: 8, 32>}, {pipeline_mode = #tpu.pipeline_mode<synchronous>, transform_indices = @transform_2, window_bounds = array<i64: 32, 32>}, {pipeline_mode = #tpu.pipeline_mode<synchronous>, transform_indices = @transform_3, window_bounds = array<i64: 32, 32>}, {pipeline_mode = #tpu.pipeline_mode<synchronous>, transform_indices = @transform_4, window_bounds = array<i64: 32, 32>}, {pipeline_mode = #tpu.pipeline_mode<synchronous>, transform_indices = @transform_5, window_bounds = array<i64: 1, 32>}, {pipeline_mode = #tpu.pipeline_mode<synchronous>, transform_indices = @transform_6, window_bounds = array<i64: 32, 32>}, {pipeline_mode = #tpu.pipeline_mode<synchronous>, transform_indices = @transform_7, window_bounds = array<i64: 1, 32>}, {pipeline_mode = #tpu.pipeline_mode<synchronous>, transform_indices = @transform_8, window_bounds = array<i64: 32, 32>}, {pipeline_mode = #tpu.pipeline_mode<synchronous>, transform_indices = @transform_9, window_bounds = array<i64: 32, 32>}, {transform_indices = @transform_10, window_bounds = array<i64: 2, 16, 32>}, {transform_indices = @transform_11, window_bounds = array<i64: 2, 8, 32>}]} {
    %c0 = arith.constant 0 : index
    %c0_0 = arith.constant 0 : index
    %c0_1 = arith.constant 0 : index
    %0 = vector.load %arg1[%c0, %c0_0, %c0_1] : memref<2x16x32xf32, #tpu.memory_space<vmem>>, vector<2x16x32xf32>
    %1 = vector.shape_cast %0 : vector<2x16x32xf32> to vector<32x32xf32>
    %c0_2 = arith.constant 0 : index
    %c0_3 = arith.constant 0 : index
    %2 = vector.load %arg2[%c0_2, %c0_3] : memref<8x32xf32, #tpu.memory_space<vmem>>, vector<8x32xf32>
    %3 = vector.shape_cast %2 : vector<8x32xf32> to vector<1x8x32xf32>
    %4 = vector.broadcast %3 : vector<1x8x32xf32> to vector<2x8x32xf32>
    "tpu.trace_start"() <{level = 10 : i32, message = "btd,bld->btl"}> : () -> ()
    %cst = arith.constant dense<0.000000e+00> : vector<2x8x16xf32>
    %5 = tpu.matmul %4, %0, %cst {dimension_numbers = #tpu.dot_dimension_numbers<[2], [2], [1], [1], [0, 0, 0, 1, 1, 1], [0], [0]>} : vector<2x8x32xf32>, vector<2x16x32xf32>, vector<2x8x16xf32> -> vector<2x8x16xf32>
    "tpu.trace_stop"() : () -> ()
    %cst_4 = arith.constant dense<0xFF800000> : vector<2x8xf32>
    %6 = vector.multi_reduction <maximumf>, %5, %cst_4 [2] : vector<2x8x16xf32> to vector<2x8xf32>
    %7 = vector.shape_cast %6 : vector<2x8xf32> to vector<2x8x1xf32>
    %8 = vector.broadcast %7 : vector<2x8x1xf32> to vector<2x8x16xf32>
    %9 = arith.subf %5, %8 : vector<2x8x16xf32>
    %10 = math.exp %9 : vector<2x8x16xf32>
    %cst_5 = arith.constant dense<0.000000e+00> : vector<2x8xf32>
    %11 = vector.multi_reduction <add>, %10, %cst_5 [2] : vector<2x8x16xf32> to vector<2x8xf32>
    %12 = vector.shape_cast %11 : vector<2x8xf32> to vector<2x8x1xf32>
    %13 = tpu.reciprocal %12 : vector<2x8x1xf32> -> vector<2x8x1xf32>
    %14 = vector.broadcast %13 : vector<2x8x1xf32> to vector<2x8x16xf32>
    %15 = arith.mulf %10, %14 : vector<2x8x16xf32>
    "tpu.trace_start"() <{level = 10 : i32, message = "btl,bld->btd"}> : () -> ()
    %cst_6 = arith.constant dense<0.000000e+00> : vector<2x8x32xf32>
    %16 = tpu.matmul %15, %0, %cst_6 {dimension_numbers = #tpu.dot_dimension_numbers<[2], [1], [1], [2], [0, 0, 0, 1, 1, 2], [0], [0]>} : vector<2x8x16xf32>, vector<2x16x32xf32>, vector<2x8x32xf32> -> vector<2x8x32xf32>
    "tpu.trace_stop"() : () -> ()
    %17 = vector.shape_cast %16 : vector<2x8x32xf32> to vector<16x32xf32>
    %c0_7 = arith.constant 0 : index
    %c0_8 = arith.constant 0 : index
    %18 = vector.load %arg3[%c0_7, %c0_8] : memref<32x32xf32, #tpu.memory_space<vmem>>, vector<32x32xf32>
    %cst_9 = arith.constant dense<0.000000e+00> : vector<16x32xf32>
    %19 = tpu.matmul %17, %18, %cst_9 {dimension_numbers = #tpu.dot_dimension_numbers<[1], [0], [0], [1], [0, 0, 1, 1], [], []>} : vector<16x32xf32>, vector<32x32xf32>, vector<16x32xf32> -> vector<16x32xf32>
    %20 = vector.shape_cast %19 : vector<16x32xf32> to vector<2x8x32xf32>
    %c0_10 = arith.constant 0 : index
    %c0_11 = arith.constant 0 : index
    %21 = vector.load %arg4[%c0_10, %c0_11] : memref<32x32xf32, #tpu.memory_space<vmem>>, vector<32x32xf32>
    %cst_12 = arith.constant dense<0.000000e+00> : vector<16x32xf32>
    %22 = tpu.matmul %17, %21, %cst_12 {dimension_numbers = #tpu.dot_dimension_numbers<[1], [0], [0], [1], [0, 0, 1, 1], [], []>} : vector<16x32xf32>, vector<32x32xf32>, vector<16x32xf32> -> vector<16x32xf32>
    %23 = vector.shape_cast %22 : vector<16x32xf32> to vector<2x8x32xf32>
    "tpu.trace_start"() <{level = 10 : i32, message = "btd,bsd->bts"}> : () -> ()
    %cst_13 = arith.constant dense<0.000000e+00> : vector<2x8x8xf32>
    %24 = tpu.matmul %20, %23, %cst_13 {dimension_numbers = #tpu.dot_dimension_numbers<[2], [2], [1], [1], [0, 0, 0, 1, 1, 1], [0], [0]>} : vector<2x8x32xf32>, vector<2x8x32xf32>, vector<2x8x8xf32> -> vector<2x8x8xf32>
    "tpu.trace_stop"() : () -> ()
    %cst_14 = arith.constant dense<0xFF800000> : vector<2x8xf32>
    %25 = vector.multi_reduction <maximumf>, %24, %cst_14 [2] : vector<2x8x8xf32> to vector<2x8xf32>
    %26 = vector.shape_cast %25 : vector<2x8xf32> to vector<2x8x1xf32>
    %27 = vector.broadcast %26 : vector<2x8x1xf32> to vector<2x8x8xf32>
    %28 = arith.subf %24, %27 : vector<2x8x8xf32>
    %29 = math.exp %28 : vector<2x8x8xf32>
    %cst_15 = arith.constant dense<0.000000e+00> : vector<2x8xf32>
    %30 = vector.multi_reduction <add>, %29, %cst_15 [2] : vector<2x8x8xf32> to vector<2x8xf32>
    %31 = vector.shape_cast %30 : vector<2x8xf32> to vector<2x8x1xf32>
    %32 = tpu.reciprocal %31 : vector<2x8x1xf32> -> vector<2x8x1xf32>
    %33 = vector.broadcast %32 : vector<2x8x1xf32> to vector<2x8x8xf32>
    %34 = arith.mulf %29, %33 : vector<2x8x8xf32>
    "tpu.trace_start"() <{level = 10 : i32, message = "bts,bsd->btd"}> : () -> ()
    %cst_16 = arith.constant dense<0.000000e+00> : vector<2x8x32xf32>
    %35 = tpu.matmul %34, %16, %cst_16 {dimension_numbers = #tpu.dot_dimension_numbers<[2], [1], [1], [2], [0, 0, 0, 1, 1, 2], [0], [0]>} : vector<2x8x8xf32>, vector<2x8x32xf32>, vector<2x8x32xf32> -> vector<2x8x32xf32>
    "tpu.trace_stop"() : () -> ()
    %36 = arith.addf %16, %35 : vector<2x8x32xf32>
    %37 = vector.shape_cast %36 : vector<2x8x32xf32> to vector<16x32xf32>
    %c0_17 = arith.constant 0 : index
    %c0_18 = arith.constant 0 : index
    %38 = vector.load %arg5[%c0_17, %c0_18] : memref<32x32xf32, #tpu.memory_space<vmem>>, vector<32x32xf32>
    %cst_19 = arith.constant dense<0.000000e+00> : vector<16x32xf32>
    %39 = tpu.matmul %37, %38, %cst_19 {dimension_numbers = #tpu.dot_dimension_numbers<[1], [0], [0], [1], [0, 0, 1, 1], [], []>} : vector<16x32xf32>, vector<32x32xf32>, vector<16x32xf32> -> vector<16x32xf32>
    %c0_20 = arith.constant 0 : index
    %c0_21 = arith.constant 0 : index
    %40 = vector.load %arg6[%c0_20, %c0_21] : memref<1x32xf32, #tpu.memory_space<vmem>>, vector<1x32xf32>
    %41 = vector.broadcast %40 : vector<1x32xf32> to vector<16x32xf32>
    %42 = arith.addf %39, %41 : vector<16x32xf32>
    %cst_22 = arith.constant 0.000000e+00 : f32
    %43 = vector.broadcast %cst_22 : f32 to vector<16x32xf32>
    %44 = arith.maximumf %42, %43 : vector<16x32xf32>
    %c0_23 = arith.constant 0 : index
    %c0_24 = arith.constant 0 : index
    %45 = vector.load %arg7[%c0_23, %c0_24] : memref<32x32xf32, #tpu.memory_space<vmem>>, vector<32x32xf32>
    %cst_25 = arith.constant dense<0.000000e+00> : vector<16x32xf32>
    %46 = tpu.matmul %44, %45, %cst_25 {dimension_numbers = #tpu.dot_dimension_numbers<[1], [0], [0], [1], [0, 0, 1, 1], [], []>} : vector<16x32xf32>, vector<32x32xf32>, vector<16x32xf32> -> vector<16x32xf32>
    %c0_26 = arith.constant 0 : index
    %c0_27 = arith.constant 0 : index
    %47 = vector.load %arg8[%c0_26, %c0_27] : memref<1x32xf32, #tpu.memory_space<vmem>>, vector<1x32xf32>
    %48 = vector.broadcast %47 : vector<1x32xf32> to vector<16x32xf32>
    %49 = arith.addf %46, %48 : vector<16x32xf32>
    %50 = vector.shape_cast %49 : vector<16x32xf32> to vector<2x8x32xf32>
    %51 = arith.addf %36, %50 : vector<2x8x32xf32>
    %c0_28 = arith.constant 0 : index
    %c0_29 = arith.constant 0 : index
    %52 = vector.load %arg9[%c0_28, %c0_29] : memref<32x32xf32, #tpu.memory_space<vmem>>, vector<32x32xf32>
    %cst_30 = arith.constant dense<0.000000e+00> : vector<32x32xf32>
    %53 = tpu.matmul %1, %52, %cst_30 {dimension_numbers = #tpu.dot_dimension_numbers<[1], [0], [0], [1], [0, 0, 1, 1], [], []>} : vector<32x32xf32>, vector<32x32xf32>, vector<32x32xf32> -> vector<32x32xf32>
    %54 = vector.shape_cast %53 : vector<32x32xf32> to vector<2x16x32xf32>
    %55 = vector.shape_cast %51 : vector<2x8x32xf32> to vector<16x32xf32>
    %c0_31 = arith.constant 0 : index
    %c0_32 = arith.constant 0 : index
    %56 = vector.load %arg10[%c0_31, %c0_32] : memref<32x32xf32, #tpu.memory_space<vmem>>, vector<32x32xf32>
    %cst_33 = arith.constant dense<0.000000e+00> : vector<16x32xf32>
    %57 = tpu.matmul %55, %56, %cst_33 {dimension_numbers = #tpu.dot_dimension_numbers<[1], [0], [0], [1], [0, 0, 1, 1], [], []>} : vector<16x32xf32>, vector<32x32xf32>, vector<16x32xf32> -> vector<16x32xf32>
    %58 = vector.shape_cast %57 : vector<16x32xf32> to vector<2x8x32xf32>
    "tpu.trace_start"() <{level = 10 : i32, message = "bld,btd->blt"}> : () -> ()
    %cst_34 = arith.constant dense<0.000000e+00> : vector<2x16x8xf32>
    %59 = tpu.matmul %54, %58, %cst_34 {dimension_numbers = #tpu.dot_dimension_numbers<[2], [2], [1], [1], [0, 0, 0, 1, 1, 1], [0], [0]>} : vector<2x16x32xf32>, vector<2x8x32xf32>, vector<2x16x8xf32> -> vector<2x16x8xf32>
    "tpu.trace_stop"() : () -> ()
    %cst_35 = arith.constant dense<0xFF800000> : vector<2x16xf32>
    %60 = vector.multi_reduction <maximumf>, %59, %cst_35 [2] : vector<2x16x8xf32> to vector<2x16xf32>
    %61 = vector.shape_cast %60 : vector<2x16xf32> to vector<2x16x1xf32>
    %62 = vector.broadcast %61 : vector<2x16x1xf32> to vector<2x16x8xf32>
    %63 = arith.subf %59, %62 : vector<2x16x8xf32>
    %64 = math.exp %63 : vector<2x16x8xf32>
    %cst_36 = arith.constant dense<0.000000e+00> : vector<2x16xf32>
    %65 = vector.multi_reduction <add>, %64, %cst_36 [2] : vector<2x16x8xf32> to vector<2x16xf32>
    %66 = vector.shape_cast %65 : vector<2x16xf32> to vector<2x16x1xf32>
    %67 = tpu.reciprocal %66 : vector<2x16x1xf32> -> vector<2x16x1xf32>
    %68 = vector.broadcast %67 : vector<2x16x1xf32> to vector<2x16x8xf32>
    %69 = arith.mulf %64, %68 : vector<2x16x8xf32>
    "tpu.trace_start"() <{level = 10 : i32, message = "blt,btd->bld"}> : () -> ()
    %cst_37 = arith.constant dense<0.000000e+00> : vector<2x16x32xf32>
    %70 = tpu.matmul %69, %51, %cst_37 {dimension_numbers = #tpu.dot_dimension_numbers<[2], [1], [1], [2], [0, 0, 0, 1, 1, 2], [0], [0]>} : vector<2x16x8xf32>, vector<2x8x32xf32>, vector<2x16x32xf32> -> vector<2x16x32xf32>
    "tpu.trace_stop"() : () -> ()
    %71 = arith.addf %0, %70 : vector<2x16x32xf32>
    %c0_38 = arith.constant 0 : index
    %c0_39 = arith.constant 0 : index
    %c0_40 = arith.constant 0 : index
    %72 = vector.load %arg11[%c0_38, %c0_39, %c0_40] : memref<2x16x32xf32, #tpu.memory_space<vmem>>, vector<2x16x32xf32>
    tpu.vector_store %arg11[%c0_38, %c0_39, %c0_40], %71 {strides = array<i32>} : memref<2x16x32xf32, #tpu.memory_space<vmem>>, vector<2x16x32xf32>,
    %c0_41 = arith.constant 0 : index
    %c0_42 = arith.constant 0 : index
    %c0_43 = arith.constant 0 : index
    %73 = vector.load %arg12[%c0_41, %c0_42, %c0_43] : memref<2x8x32xf32, #tpu.memory_space<vmem>>, vector<2x8x32xf32>
    tpu.vector_store %arg12[%c0_41, %c0_42, %c0_43], %51 {strides = array<i32>} : memref<2x8x32xf32, #tpu.memory_space<vmem>>, vector<2x8x32xf32>,
    return
  }
  func.func @transform_0(%arg0: i32) -> (i32, i32, i32) {
    %c0_i32 = arith.constant 0 : i32
    %c0_i32_0 = arith.constant 0 : i32
    %c0_i32_1 = arith.constant 0 : i32
    return %arg0, %c0_i32, %c0_i32_0 : i32, i32, i32
  }
  func.func @transform_1(%arg0: i32) -> (i32, i32) {
    %c0_i32 = arith.constant 0 : i32
    %c0_i32_0 = arith.constant 0 : i32
    %c0_i32_1 = arith.constant 0 : i32
    return %c0_i32, %c0_i32_0 : i32, i32
  }
  func.func @transform_2(%arg0: i32) -> (i32, i32) {
    %c0_i32 = arith.constant 0 : i32
    %c0_i32_0 = arith.constant 0 : i32
    %c0_i32_1 = arith.constant 0 : i32
    return %c0_i32, %c0_i32_0 : i32, i32
  }
  func.func @transform_3(%arg0: i32) -> (i32, i32) {
    %c0_i32 = arith.constant 0 : i32
    %c0_i32_0 = arith.constant 0 : i32
    %c0_i32_1 = arith.constant 0 : i32
    return %c0_i32, %c0_i32_0 : i32, i32
  }
  func.func @transform_4(%arg0: i32) -> (i32, i32) {
    %c0_i32 = arith.constant 0 : i32
    %c0_i32_0 = arith.constant 0 : i32
    %c0_i32_1 = arith.constant 0 : i32
    return %c0_i32, %c0_i32_0 : i32, i32
  }
  func.func @transform_5(%arg0: i32) -> (i32, i32) {
    %c0_i32 = arith.constant 0 : i32
    %c0_i32_0 = arith.constant 0 : i32
    %c0_i32_1 = arith.constant 0 : i32
    return %c0_i32, %c0_i32_0 : i32, i32
  }
  func.func @transform_6(%arg0: i32) -> (i32, i32) {
    %c0_i32 = arith.constant 0 : i32
    %c0_i32_0 = arith.constant 0 : i32
    %c0_i32_1 = arith.constant 0 : i32
    return %c0_i32, %c0_i32_0 : i32, i32
  }
  func.func @transform_7(%arg0: i32) -> (i32, i32) {
    %c0_i32 = arith.constant 0 : i32
    %c0_i32_0 = arith.constant 0 : i32
    %c0_i32_1 = arith.constant 0 : i32
    return %c0_i32, %c0_i32_0 : i32, i32
  }
  func.func @transform_8(%arg0: i32) -> (i32, i32) {
    %c0_i32 = arith.constant 0 : i32
    %c0_i32_0 = arith.constant 0 : i32
    %c0_i32_1 = arith.constant 0 : i32
    return %c0_i32, %c0_i32_0 : i32, i32
  }
  func.func @transform_9(%arg0: i32) -> (i32, i32) {
    %c0_i32 = arith.constant 0 : i32
    %c0_i32_0 = arith.constant 0 : i32
    %c0_i32_1 = arith.constant 0 : i32
    return %c0_i32, %c0_i32_0 : i32, i32
  }
  func.func @transform_10(%arg0: i32) -> (i32, i32, i32) {
    %c0_i32 = arith.constant 0 : i32
    %c0_i32_0 = arith.constant 0 : i32
    %c0_i32_1 = arith.constant 0 : i32
    return %arg0, %c0_i32, %c0_i32_0 : i32, i32, i32
  }
  func.func @transform_11(%arg0: i32) -> (i32, i32, i32) {
    %c0_i32 = arith.constant 0 : i32
    %c0_i32_0 = arith.constant 0 : i32
    %c0_i32_1 = arith.constant 0 : i32
    return %arg0, %c0_i32, %c0_i32_0 : i32, i32, i32
  }
}

module attributes {stable_mosaic.version = 11 : i64} {
  func.func @_attention_layer_kernel(%arg0: i32, %arg1: memref<2x16x32xf32, #tpu.memory_space<vmem>>, %arg2: memref<8x32xf32, #tpu.memory_space<vmem>>, %arg3: memref<32x32xf32, #tpu.memory_space<vmem>>, %arg4: memref<32x32xf32, #tpu.memory_space<vmem>>, %arg5: memref<32x32xf32, #tpu.memory_space<vmem>>, %arg6: memref<1x32xf32, #tpu.memory_space<vmem>>, %arg7: memref<32x32xf32, #tpu.memory_space<vmem>>, %arg8: memref<1x32xf32, #tpu.memory_space<vmem>>, %arg9: memref<32x32xf32, #tpu.memory_space<vmem>>, %arg10: memref<32x32xf32, #tpu.memory_space<vmem>>, %arg11: memref<2x16x32xf32, #tpu.memory_space<vmem>>, %arg12: memref<2x8x32xf32, #tpu.memory_space<vmem>>) attributes {dimension_semantics = [#tpu.dimension_semantics<parallel>], iteration_bounds = array<i64: 2>, scalar_prefetch = 0 : i64, scratch_operands = 0 : i64, tpu.core_type = #tpu.core_type<tc>, window_params = [{transform_indices = @transform_0, window_bounds = array<i64: 2, 16, 32>}, {pipeline_mode = #tpu.pipeline_mode<synchronous>, transform_indices = @transform_1, window_bounds = array<i64: 8, 32>}, {pipeline_mode = #tpu.pipeline_mode<synchronous>, transform_indices = @transform_2, window_bounds = array<i64: 32, 32>}, {pipeline_mode = #tpu.pipeline_mode<synchronous>, transform_indices = @transform_3, window_bounds = array<i64: 32, 32>}, {pipeline_mode = #tpu.pipeline_mode<synchronous>, transform_indices = @transform_4, window_bounds = array<i64: 32, 32>}, {pipeline_mode = #tpu.pipeline_mode<synchronous>, transform_indices = @transform_5, window_bounds = array<i64: 1, 32>}, {pipeline_mode = #tpu.pipeline_mode<synchronous>, transform_indices = @transform_6, window_bounds = array<i64: 32, 32>}, {pipeline_mode = #tpu.pipeline_mode<synchronous>, transform_indices = @transform_7, window_bounds = array<i64: 1, 32>}, {pipeline_mode = #tpu.pipeline_mode<synchronous>, transform_indices = @transform_8, window_bounds = array<i64: 32, 32>}, {pipeline_mode = #tpu.pipeline_mode<synchronous>, transform_indices = @transform_9, window_bounds = array<i64: 32, 32>}, {transform_indices = @transform_10, window_bounds = array<i64: 2, 16, 32>}, {transform_indices = @transform_11, window_bounds = array<i64: 2, 8, 32>}]} {
    %c0 = arith.constant 0 : index
    %c0_0 = arith.constant 0 : index
    %c0_1 = arith.constant 0 : index
    %0 = vector.load %arg1[%c0, %c0_0, %c0_1] : memref<2x16x32xf32, #tpu.memory_space<vmem>>, vector<2x16x32xf32>
    %1 = vector.shape_cast %0 : vector<2x16x32xf32> to vector<32x32xf32>
    %c0_2 = arith.constant 0 : index
    %c0_3 = arith.constant 0 : index
    %2 = vector.load %arg2[%c0_2, %c0_3] : memref<8x32xf32, #tpu.memory_space<vmem>>, vector<8x32xf32>
    %3 = vector.shape_cast %2 : vector<8x32xf32> to vector<1x8x32xf32>
    %4 = vector.broadcast %3 : vector<1x8x32xf32> to vector<2x8x32xf32>
    "tpu.trace_start"() <{level = 10 : i32, message = "btd,bld->btl"}> : () -> ()
    %cst = arith.constant dense<0.000000e+00> : vector<2x8x16xf32>
    %5 = tpu.matmul %4, %0, %cst {dimension_numbers = #tpu.dot_dimension_numbers<[2], [2], [1], [1], [0, 0, 0, 1, 1, 1], [0], [0]>} : vector<2x8x32xf32>, vector<2x16x32xf32>, vector<2x8x16xf32> -> vector<2x8x16xf32>
    "tpu.trace_stop"() : () -> ()
    %cst_4 = arith.constant dense<0xFF800000> : vector<2x8xf32>
    %6 = vector.multi_reduction <maximumf>, %5, %cst_4 [2] : vector<2x8x16xf32> to vector<2x8xf32>
    %7 = vector.shape_cast %6 : vector<2x8xf32> to vector<2x8x1xf32>
    %8 = vector.broadcast %7 : vector<2x8x1xf32> to vector<2x8x16xf32>
    %9 = arith.subf %5, %8 : vector<2x8x16xf32>
    %10 = math.exp %9 : vector<2x8x16xf32>
    %cst_5 = arith.constant dense<0.000000e+00> : vector<2x8xf32>
    %11 = vector.multi_reduction <add>, %10, %cst_5 [2] : vector<2x8x16xf32> to vector<2x8xf32>
    %12 = vector.shape_cast %11 : vector<2x8xf32> to vector<2x8x1xf32>
    %13 = tpu.reciprocal %12 : vector<2x8x1xf32> -> vector<2x8x1xf32>
    %14 = vector.broadcast %13 : vector<2x8x1xf32> to vector<2x8x16xf32>
    %15 = arith.mulf %10, %14 : vector<2x8x16xf32>
    "tpu.trace_start"() <{level = 10 : i32, message = "btl,bld->btd"}> : () -> ()
    %cst_6 = arith.constant dense<0.000000e+00> : vector<2x8x32xf32>
    %16 = tpu.matmul %15, %0, %cst_6 {dimension_numbers = #tpu.dot_dimension_numbers<[2], [1], [1], [2], [0, 0, 0, 1, 1, 2], [0], [0]>} : vector<2x8x16xf32>, vector<2x16x32xf32>, vector<2x8x32xf32> -> vector<2x8x32xf32>
    "tpu.trace_stop"() : () -> ()
    %17 = vector.shape_cast %16 : vector<2x8x32xf32> to vector<16x32xf32>
    %c0_7 = arith.constant 0 : index
    %c0_8 = arith.constant 0 : index
    %18 = vector.load %arg3[%c0_7, %c0_8] : memref<32x32xf32, #tpu.memory_space<vmem>>, vector<32x32xf32>
    %cst_9 = arith.constant dense<0.000000e+00> : vector<16x32xf32>
    %19 = tpu.matmul %17, %18, %cst_9 {dimension_numbers = #tpu.dot_dimension_numbers<[1], [0], [0], [1], [0, 0, 1, 1], [], []>} : vector<16x32xf32>, vector<32x32xf32>, vector<16x32xf32> -> vector<16x32xf32>
    %20 = vector.shape_cast %19 : vector<16x32xf32> to vector<2x8x32xf32>
    %c0_10 = arith.constant 0 : index
    %c0_11 = arith.constant 0 : index
    %21 = vector.load %arg4[%c0_10, %c0_11] : memref<32x32xf32, #tpu.memory_space<vmem>>, vector<32x32xf32>
    %cst_12 = arith.constant dense<0.000000e+00> : vector<16x32xf32>
    %22 = tpu.matmul %17, %21, %cst_12 {dimension_numbers = #tpu.dot_dimension_numbers<[1], [0], [0], [1], [0, 0, 1, 1], [], []>} : vector<16x32xf32>, vector<32x32xf32>, vector<16x32xf32> -> vector<16x32xf32>
    %23 = vector.shape_cast %22 : vector<16x32xf32> to vector<2x8x32xf32>
    "tpu.trace_start"() <{level = 10 : i32, message = "btd,bsd->bts"}> : () -> ()
    %cst_13 = arith.constant dense<0.000000e+00> : vector<2x8x8xf32>
    %24 = tpu.matmul %20, %23, %cst_13 {dimension_numbers = #tpu.dot_dimension_numbers<[2], [2], [1], [1], [0, 0, 0, 1, 1, 1], [0], [0]>} : vector<2x8x32xf32>, vector<2x8x32xf32>, vector<2x8x8xf32> -> vector<2x8x8xf32>
    "tpu.trace_stop"() : () -> ()
    %cst_14 = arith.constant dense<0xFF800000> : vector<2x8xf32>
    %25 = vector.multi_reduction <maximumf>, %24, %cst_14 [2] : vector<2x8x8xf32> to vector<2x8xf32>
    %26 = vector.shape_cast %25 : vector<2x8xf32> to vector<2x8x1xf32>
    %27 = vector.broadcast %26 : vector<2x8x1xf32> to vector<2x8x8xf32>
    %28 = arith.subf %24, %27 : vector<2x8x8xf32>
    %29 = math.exp %28 : vector<2x8x8xf32>
    %cst_15 = arith.constant dense<0.000000e+00> : vector<2x8xf32>
    %30 = vector.multi_reduction <add>, %29, %cst_15 [2] : vector<2x8x8xf32> to vector<2x8xf32>
    %31 = vector.shape_cast %30 : vector<2x8xf32> to vector<2x8x1xf32>
    %32 = tpu.reciprocal %31 : vector<2x8x1xf32> -> vector<2x8x1xf32>
    %33 = vector.broadcast %32 : vector<2x8x1xf32> to vector<2x8x8xf32>
    %34 = arith.mulf %29, %33 : vector<2x8x8xf32>
    "tpu.trace_start"() <{level = 10 : i32, message = "bts,bsd->btd"}> : () -> ()
    %cst_16 = arith.constant dense<0.000000e+00> : vector<2x8x32xf32>
    %35 = tpu.matmul %34, %16, %cst_16 {dimension_numbers = #tpu.dot_dimension_numbers<[2], [1], [1], [2], [0, 0, 0, 1, 1, 2], [0], [0]>} : vector<2x8x8xf32>, vector<2x8x32xf32>, vector<2x8x32xf32> -> vector<2x8x32xf32>
    "tpu.trace_stop"() : () -> ()
    %36 = arith.addf %16, %35 : vector<2x8x32xf32>
    %37 = vector.shape_cast %36 : vector<2x8x32xf32> to vector<16x32xf32>
    %c0_17 = arith.constant 0 : index
    %c0_18 = arith.constant 0 : index
    %38 = vector.load %arg5[%c0_17, %c0_18] : memref<32x32xf32, #tpu.memory_space<vmem>>, vector<32x32xf32>
    %cst_19 = arith.constant dense<0.000000e+00> : vector<16x32xf32>
    %39 = tpu.matmul %37, %38, %cst_19 {dimension_numbers = #tpu.dot_dimension_numbers<[1], [0], [0], [1], [0, 0, 1, 1], [], []>} : vector<16x32xf32>, vector<32x32xf32>, vector<16x32xf32> -> vector<16x32xf32>
    %c0_20 = arith.constant 0 : index
    %c0_21 = arith.constant 0 : index
    %40 = vector.load %arg6[%c0_20, %c0_21] : memref<1x32xf32, #tpu.memory_space<vmem>>, vector<1x32xf32>
    %41 = vector.broadcast %40 : vector<1x32xf32> to vector<16x32xf32>
    %42 = arith.addf %39, %41 : vector<16x32xf32>
    %cst_22 = arith.constant 0.000000e+00 : f32
    %43 = vector.broadcast %cst_22 : f32 to vector<16x32xf32>
    %44 = arith.maximumf %42, %43 : vector<16x32xf32>
    %c0_23 = arith.constant 0 : index
    %c0_24 = arith.constant 0 : index
    %45 = vector.load %arg7[%c0_23, %c0_24] : memref<32x32xf32, #tpu.memory_space<vmem>>, vector<32x32xf32>
    %cst_25 = arith.constant dense<0.000000e+00> : vector<16x32xf32>
    %46 = tpu.matmul %44, %45, %cst_25 {dimension_numbers = #tpu.dot_dimension_numbers<[1], [0], [0], [1], [0, 0, 1, 1], [], []>} : vector<16x32xf32>, vector<32x32xf32>, vector<16x32xf32> -> vector<16x32xf32>
    %c0_26 = arith.constant 0 : index
    %c0_27 = arith.constant 0 : index
    %47 = vector.load %arg8[%c0_26, %c0_27] : memref<1x32xf32, #tpu.memory_space<vmem>>, vector<1x32xf32>
    %48 = vector.broadcast %47 : vector<1x32xf32> to vector<16x32xf32>
    %49 = arith.addf %46, %48 : vector<16x32xf32>
    %50 = vector.shape_cast %49 : vector<16x32xf32> to vector<2x8x32xf32>
    %51 = arith.addf %36, %50 : vector<2x8x32xf32>
    %c0_28 = arith.constant 0 : index
    %c0_29 = arith.constant 0 : index
    %52 = vector.load %arg9[%c0_28, %c0_29] : memref<32x32xf32, #tpu.memory_space<vmem>>, vector<32x32xf32>
    %cst_30 = arith.constant dense<0.000000e+00> : vector<32x32xf32>
    %53 = tpu.matmul %1, %52, %cst_30 {dimension_numbers = #tpu.dot_dimension_numbers<[1], [0], [0], [1], [0, 0, 1, 1], [], []>} : vector<32x32xf32>, vector<32x32xf32>, vector<32x32xf32> -> vector<32x32xf32>
    %54 = vector.shape_cast %53 : vector<32x32xf32> to vector<2x16x32xf32>
    %55 = vector.shape_cast %51 : vector<2x8x32xf32> to vector<16x32xf32>
    %c0_31 = arith.constant 0 : index
    %c0_32 = arith.constant 0 : index
    %56 = vector.load %arg10[%c0_31, %c0_32] : memref<32x32xf32, #tpu.memory_space<vmem>>, vector<32x32xf32>
    %cst_33 = arith.constant dense<0.000000e+00> : vector<16x32xf32>
    %57 = tpu.matmul %55, %56, %cst_33 {dimension_numbers = #tpu.dot_dimension_numbers<[1], [0], [0], [1], [0, 0, 1, 1], [], []>} : vector<16x32xf32>, vector<32x32xf32>, vector<16x32xf32> -> vector<16x32xf32>
    %58 = vector.shape_cast %57 : vector<16x32xf32> to vector<2x8x32xf32>
    "tpu.trace_start"() <{level = 10 : i32, message = "bld,btd->blt"}> : () -> ()
    %cst_34 = arith.constant dense<0.000000e+00> : vector<2x16x8xf32>
    %59 = tpu.matmul %54, %58, %cst_34 {dimension_numbers = #tpu.dot_dimension_numbers<[2], [2], [1], [1], [0, 0, 0, 1, 1, 1], [0], [0]>} : vector<2x16x32xf32>, vector<2x8x32xf32>, vector<2x16x8xf32> -> vector<2x16x8xf32>
    "tpu.trace_stop"() : () -> ()
    %cst_35 = arith.constant dense<0xFF800000> : vector<2x16xf32>
    %60 = vector.multi_reduction <maximumf>, %59, %cst_35 [2] : vector<2x16x8xf32> to vector<2x16xf32>
    %61 = vector.shape_cast %60 : vector<2x16xf32> to vector<2x16x1xf32>
    %62 = vector.broadcast %61 : vector<2x16x1xf32> to vector<2x16x8xf32>
    %63 = arith.subf %59, %62 : vector<2x16x8xf32>
    %64 = math.exp %63 : vector<2x16x8xf32>
    %cst_36 = arith.constant dense<0.000000e+00> : vector<2x16xf32>
    %65 = vector.multi_reduction <add>, %64, %cst_36 [2] : vector<2x16x8xf32> to vector<2x16xf32>
    %66 = vector.shape_cast %65 : vector<2x16xf32> to vector<2x16x1xf32>
    %67 = tpu.reciprocal %66 : vector<2x16x1xf32> -> vector<2x16x1xf32>
    %68 = vector.broadcast %67 : vector<2x16x1xf32> to vector<2x16x8xf32>
    %69 = arith.mulf %64, %68 : vector<2x16x8xf32>
    "tpu.trace_start"() <{level = 10 : i32, message = "blt,btd->bld"}> : () -> ()
    %cst_37 = arith.constant dense<0.000000e+00> : vector<2x16x32xf32>
    %70 = tpu.matmul %69, %51, %cst_37 {dimension_numbers = #tpu.dot_dimension_numbers<[2], [1], [1], [2], [0, 0, 0, 1, 1, 2], [0], [0]>} : vector<2x16x8xf32>, vector<2x8x32xf32>, vector<2x16x32xf32> -> vector<2x16x32xf32>
    "tpu.trace_stop"() : () -> ()
    %71 = arith.addf %0, %70 : vector<2x16x32xf32>
    %c0_38 = arith.constant 0 : index
    %c0_39 = arith.constant 0 : index
    %c0_40 = arith.constant 0 : index
    %72 = vector.load %arg11[%c0_38, %c0_39, %c0_40] : memref<2x16x32xf32, #tpu.memory_space<vmem>>, vector<2x16x32xf32>
    tpu.vector_store %arg11[%c0_38, %c0_39, %c0_40], %71 {strides = array<i32>} : memref<2x16x32xf32, #tpu.memory_space<vmem>>, vector<2x16x32xf32>,
    %c0_41 = arith.constant 0 : index
    %c0_42 = arith.constant 0 : index
    %c0_43 = arith.constant 0 : index
    %73 = vector.load %arg12[%c0_41, %c0_42, %c0_43] : memref<2x8x32xf32, #tpu.memory_space<vmem>>, vector<2x8x32xf32>
    tpu.vector_store %arg12[%c0_41, %c0_42, %c0_43], %51 {strides = array<i32>} : memref<2x8x32xf32, #tpu.memory_space<vmem>>, vector<2x8x32xf32>,
    return
  }
  func.func @transform_0(%arg0: i32) -> (i32, i32, i32) {
    %c0_i32 = arith.constant 0 : i32
    %c0_i32_0 = arith.constant 0 : i32
    %c0_i32_1 = arith.constant 0 : i32
    return %arg0, %c0_i32, %c0_i32_0 : i32, i32, i32
  }
  func.func @transform_1(%arg0: i32) -> (i32, i32) {
    %c0_i32 = arith.constant 0 : i32
    %c0_i32_0 = arith.constant 0 : i32
    %c0_i32_1 = arith.constant 0 : i32
    return %c0_i32, %c0_i32_0 : i32, i32
  }
  func.func @transform_2(%arg0: i32) -> (i32, i32) {
    %c0_i32 = arith.constant 0 : i32
    %c0_i32_0 = arith.constant 0 : i32
    %c0_i32_1 = arith.constant 0 : i32
    return %c0_i32, %c0_i32_0 : i32, i32
  }
  func.func @transform_3(%arg0: i32) -> (i32, i32) {
    %c0_i32 = arith.constant 0 : i32
    %c0_i32_0 = arith.constant 0 : i32
    %c0_i32_1 = arith.constant 0 : i32
    return %c0_i32, %c0_i32_0 : i32, i32
  }
  func.func @transform_4(%arg0: i32) -> (i32, i32) {
    %c0_i32 = arith.constant 0 : i32
    %c0_i32_0 = arith.constant 0 : i32
    %c0_i32_1 = arith.constant 0 : i32
    return %c0_i32, %c0_i32_0 : i32, i32
  }
  func.func @transform_5(%arg0: i32) -> (i32, i32) {
    %c0_i32 = arith.constant 0 : i32
    %c0_i32_0 = arith.constant 0 : i32
    %c0_i32_1 = arith.constant 0 : i32
    return %c0_i32, %c0_i32_0 : i32, i32
  }
  func.func @transform_6(%arg0: i32) -> (i32, i32) {
    %c0_i32 = arith.constant 0 : i32
    %c0_i32_0 = arith.constant 0 : i32
    %c0_i32_1 = arith.constant 0 : i32
    return %c0_i32, %c0_i32_0 : i32, i32
  }
  func.func @transform_7(%arg0: i32) -> (i32, i32) {
    %c0_i32 = arith.constant 0 : i32
    %c0_i32_0 = arith.constant 0 : i32
    %c0_i32_1 = arith.constant 0 : i32
    return %c0_i32, %c0_i32_0 : i32, i32
  }
  func.func @transform_8(%arg0: i32) -> (i32, i32) {
    %c0_i32 = arith.constant 0 : i32
    %c0_i32_0 = arith.constant 0 : i32
    %c0_i32_1 = arith.constant 0 : i32
    return %c0_i32, %c0_i32_0 : i32, i32
  }
  func.func @transform_9(%arg0: i32) -> (i32, i32) {
    %c0_i32 = arith.constant 0 : i32
    %c0_i32_0 = arith.constant 0 : i32
    %c0_i32_1 = arith.constant 0 : i32
    return %c0_i32, %c0_i32_0 : i32, i32
  }
  func.func @transform_10(%arg0: i32) -> (i32, i32, i32) {
    %c0_i32 = arith.constant 0 : i32
    %c0_i32_0 = arith.constant 0 : i32
    %c0_i32_1 = arith.constant 0 : i32
    return %arg0, %c0_i32, %c0_i32_0 : i32, i32, i32
  }
  func.func @transform_11(%arg0: i32) -> (i32, i32, i32) {
    %c0_i32 = arith.constant 0 : i32
    %c0_i32_0 = arith.constant 0 : i32
    %c0_i32_1 = arith.constant 0 : i32
    return %arg0, %c0_i32, %c0_i32_0 : i32, i32, i32
  }
}

</mosaic_0001>

<llo_original>
// kernel: tpu_custom_call.1
$region0: #{tpu_custom_call.1}
  #allocation0 [shape = 'u32[]', space=smem, size = 0x4, offset = 0x4, fixed_abs, tag = 'smem constant byte address 0x4 - core index']
  #allocation1 [shape = 'u32[72,128]{1,0:T(1,128)}', space=vmem, size = 0x9000, scoped, tag = 'internal scratch']
  %s0 = inlined_call_operand.hbm [shape: f32[4,16,32], index: 0, kind: input, shape index: {}]
  %s1 = inlined_call_operand.hbm [shape: f32[8,32], index: 1, kind: input, shape index: {}]
  %s2 = inlined_call_operand.hbm [shape: f32[32,32], index: 2, kind: input, shape index: {}]
  %s3 = inlined_call_operand.hbm [shape: f32[32,32], index: 3, kind: input, shape index: {}]
  %s4 = inlined_call_operand.hbm [shape: f32[32,32], index: 4, kind: input, shape index: {}]
  %s5 = inlined_call_operand.vmem [shape: f32[1,32], index: 5, kind: input, shape index: {}]
  %s6 = inlined_call_operand.hbm [shape: f32[32,32], index: 6, kind: input, shape index: {}]
  %s7 = inlined_call_operand.vmem [shape: f32[1,32], index: 7, kind: input, shape index: {}]
  %s8 = inlined_call_operand.hbm [shape: f32[32,32], index: 8, kind: input, shape index: {}]
  %s9 = inlined_call_operand.hbm [shape: f32[32,32], index: 9, kind: input, shape index: {}]
  %s10 = inlined_call_operand.hbm [shape: f32[4,16,32], index: 10, kind: output, shape index: {0}]
  %s11 = inlined_call_operand.hbm [shape: f32[4,8,32], index: 11, kind: output, shape index: {1}]
  %12 = xla_tuple %s10, %s11
  %s13 = sld [smem:[#allocation0]]
  $region113: #{tpu_custom_call.1} parent=0
    _
  %s15 = ssub.s32 1, %s13
  %s16 = scalar_select 0, %s15, %s13
  $region1: #{tpu_custom_call.1} parent=0
    #allocation2 [shape = 'u8[32768]{0}', space=vmem, size = 0x8000, scoped, tag = 'input window, operand 0']
    #allocation3 [shape = 's32[2]{0}', space=sflag, size = 0x8, scoped, tag = 'scoped memory for tpu_custom_call.1']
    #allocation4 [shape = 's32[2]{0}', space=sflag, size = 0x8, scoped, tag = 'scoped memory for tpu_custom_call.1']
    #allocation5 [shape = 'u8[4096]{0}', space=vmem, size = 0x1000, scoped, tag = 'input window, operand 1, single buffered']
    #allocation6 [shape = 's32[1]{0}', space=sflag, size = 0x4, scoped, tag = 'scoped memory for tpu_custom_call.1']
    #allocation7 [shape = 'u8[16384]{0}', space=vmem, size = 0x4000, scoped, tag = 'input window, operand 2, single buffered']
    #allocation8 [shape = 'u8[16384]{0}', space=vmem, size = 0x4000, scoped, tag = 'input window, operand 3, single buffered']
    #allocation9 [shape = 's32[1]{0}', space=sflag, size = 0x4, scoped, tag = 'scoped memory for tpu_custom_call.1']
    #allocation10 [shape = 'u8[16384]{0}', space=vmem, size = 0x4000, scoped, tag = 'input window, operand 4, single buffered']
    #allocation11 [shape = 'u8[16384]{0}', space=vmem, size = 0x4000, scoped, tag = 'input window, operand 6, single buffered']
    #allocation12 [shape = 's32[1]{0}', space=sflag, size = 0x4, scoped, tag = 'scoped memory for tpu_custom_call.1']
    #allocation13 [shape = 'u8[16384]{0}', space=vmem, size = 0x4000, scoped, tag = 'input window, operand 8, single buffered']
    #allocation14 [shape = 'u8[16384]{0}', space=vmem, size = 0x4000, scoped, tag = 'input window, operand 9, single buffered']
    #allocation15 [shape = 's32[1]{0}', space=sflag, size = 0x4, scoped, tag = 'scoped memory for tpu_custom_call.1']
    #allocation16 [shape = 'u8[32768]{0}', space=vmem, size = 0x8000, scoped, tag = 'output window, operand 0']
    #allocation17 [shape = 'u8[16384]{0}', space=vmem, size = 0x4000, scoped, tag = 'output window, operand 1']
    #allocation18 [shape = 's32[2]{0}', space=sflag, size = 0x8, scoped, tag = 'scoped memory for tpu_custom_call.1']
    %17 = vsyncpa [#allocation3], 0
    %s18 = scalar_lea.sflag [#allocation3], 1
    %19 = vsyncpa %s18, 0
    %20 = vsyncpa [#allocation6], 0
    %21 = vsyncpa [#allocation9], 0
    %22 = vsyncpa [#allocation12], 0
    %23 = vsyncpa [#allocation15], 0
    %24 = vsyncpa [#allocation4], 0
    %s25 = scalar_lea.sflag [#allocation4], 1
    %26 = vsyncpa %s25, 0
    %27 = vsyncpa [#allocation18], 0
    %s28 = scalar_lea.sflag [#allocation18], 1
    %29 = vsyncpa %s28, 0
    loop: start=0, step=1, limit=4
    $region2: #{tpu_custom_call.1} parent=1 // loop_pre_header
      _
    $region3: #{tpu_custom_call.1} parent=1 // loop_header
      %s31 = sphi 0, %s35
      %p32 = scmp.ge.s32.totalorder %s31, 4
      %s41 = sphi 0, %s43
      %s44 = sphi 0, %s41
      %s45 = sphi 0, %s44
      %s61 = sphi 0, %s45
      %s65 = sphi 0, %s65
      %s67 = sphi 0, %s65
      %s68 = sphi 0, %s67
      %s82 = sphi 0, %s68
      %s86 = sphi 0, %s86
      %s88 = sphi 0, %s86
      %s89 = sphi 0, %s88
      %s103 = sphi 0, %s89
      %s107 = sphi 0, %s107
      %s109 = sphi 0, %s107
      %s110 = sphi 0, %s109
      %s124 = sphi 0, %s110
      %s128 = sphi 0, %s128
      %s130 = sphi 0, %s128
      %s131 = sphi 0, %s130
      %s145 = sphi 0, %s131
      %s149 = sphi 0, %s149
      %s151 = sphi 0, %s149
      %s152 = sphi 0, %s151
      %s166 = sphi 0, %s152
      %s170 = sphi 0, %s170
      %s172 = sphi 0, %s170
      %s173 = sphi 0, %s172
      %s187 = sphi 0, %s173
      %s191 = sphi 0, %s191
      %s193 = sphi 0, %s191
      %s194 = sphi 0, %s193
      %s208 = sphi 0, %s194
      %s212 = sphi 0, %s212
      %s214 = sphi 0, %s212
      %s215 = sphi 0, %s214
      %s229 = sphi 0, %s215
      %s233 = sphi 0, %s233
      %s235 = sphi 0, %s233
      %s236 = sphi 0, %s235
      %s250 = sphi 0, %s236
      %s256 = sphi 0, %s258
      %s259 = sphi 0, %s256
      %s260 = sphi 0, %s259
      %s276 = sphi 0, %s260
      %s282 = sphi 0, %s284
      %s285 = sphi 0, %s282
      %s286 = sphi 0, %s285
      %s302 = sphi 0, %s286
    $region4: #{tpu_custom_call.1} parent=1 // loop_header_branch
      %34 = sbr.rel (%p32) target = $region8
    $region5: #{tpu_custom_call.1} parent=1 // loop_body
      %s36 = ssub.s32 %s31, 1
      %s37 = ssub.s32 %s31, 2
      %s38 = sadd.s32 %s31, 1
      %s39 = ssub.s32 %s31, %s38
      %p40 = scmp.eq.s32.totalorder %s39, 0
      %s42 = sadd.s32 %s41, 1
      %s43 = scalar_select %p40, %s41, %s42
      %p46 = pneg %p40
      %p47 = scmp.eq.s32.totalorder %s31, 1
      %p48 = por %p46, %p47
      %p49 = scmp.ne.s32.totalorder %s41, %s44
      %p50 = scmp.eq.s32.totalorder %s31, 0
      %p51 = por %p49, %p50
      %p52 = scmp.ne.s32.totalorder %s41, %s44
      %p53 = scmp.eq.s32.totalorder %s36, 1
      %p54 = por %p52, %p53
      %p55 = scmp.ne.s32.totalorder %s44, %s45
      %p56 = scmp.eq.s32.totalorder %s36, 0
      %p57 = por %p55, %p56
      %p58 = scmp.ne.s32.totalorder %s44, %s45
      %p59 = scmp.eq.s32.totalorder %s37, 1
      %p60 = por %p58, %p59
      %p62 = scmp.ne.s32.totalorder %s45, %s61
      %p63 = scmp.eq.s32.totalorder %s37, 0
      %p64 = por %p62, %p63
      %s66 = sadd.s32 %s65, 1
      %p69 = scmp.eq.s32.totalorder %s31, 1
      %p70 = scmp.ne.s32.totalorder %s65, %s67
      %p71 = scmp.eq.s32.totalorder %s31, 0
      %p72 = por %p70, %p71
      %p73 = scmp.ne.s32.totalorder %s65, %s67
      %p74 = scmp.eq.s32.totalorder %s36, 1
      %p75 = por %p73, %p74
      %p76 = scmp.ne.s32.totalorder %s67, %s68
      %p77 = scmp.eq.s32.totalorder %s36, 0
      %p78 = por %p76, %p77
      %p79 = scmp.ne.s32.totalorder %s67, %s68
      %p80 = scmp.eq.s32.totalorder %s37, 1
      %p81 = por %p79, %p80
      %p83 = scmp.ne.s32.totalorder %s68, %s82
      %p84 = scmp.eq.s32.totalorder %s37, 0
      %p85 = por %p83, %p84
      %s87 = sadd.s32 %s86, 1
      %p90 = scmp.eq.s32.totalorder %s31, 1
      %p91 = scmp.ne.s32.totalorder %s86, %s88
      %p92 = scmp.eq.s32.totalorder %s31, 0
      %p93 = por %p91, %p92
      %p94 = scmp.ne.s32.totalorder %s86, %s88
      %p95 = scmp.eq.s32.totalorder %s36, 1
      %p96 = por %p94, %p95
      %p97 = scmp.ne.s32.totalorder %s88, %s89
      %p98 = scmp.eq.s32.totalorder %s36, 0
      %p99 = por %p97, %p98
      %p100 = scmp.ne.s32.totalorder %s88, %s89
      %p101 = scmp.eq.s32.totalorder %s37, 1
      %p102 = por %p100, %p101
      %p104 = scmp.ne.s32.totalorder %s89, %s103
      %p105 = scmp.eq.s32.totalorder %s37, 0
      %p106 = por %p104, %p105
      %s108 = sadd.s32 %s107, 1
      %p111 = scmp.eq.s32.totalorder %s31, 1
      %p112 = scmp.ne.s32.totalorder %s107, %s109
      %p113 = scmp.eq.s32.totalorder %s31, 0
      %p114 = por %p112, %p113
      %p115 = scmp.ne.s32.totalorder %s107, %s109
      %p116 = scmp.eq.s32.totalorder %s36, 1
      %p117 = por %p115, %p116
      %p118 = scmp.ne.s32.totalorder %s109, %s110
      %p119 = scmp.eq.s32.totalorder %s36, 0
      %p120 = por %p118, %p119
      %p121 = scmp.ne.s32.totalorder %s109, %s110
      %p122 = scmp.eq.s32.totalorder %s37, 1
      %p123 = por %p121, %p122
      %p125 = scmp.ne.s32.totalorder %s110, %s124
      %p126 = scmp.eq.s32.totalorder %s37, 0
      %p127 = por %p125, %p126
      %s129 = sadd.s32 %s128, 1
      %p132 = scmp.eq.s32.totalorder %s31, 1
      %p133 = scmp.ne.s32.totalorder %s128, %s130
      %p134 = scmp.eq.s32.totalorder %s31, 0
      %p135 = por %p133, %p134
      %p136 = scmp.ne.s32.totalorder %s128, %s130
      %p137 = scmp.eq.s32.totalorder %s36, 1
      %p138 = por %p136, %p137
      %p139 = scmp.ne.s32.totalorder %s130, %s131
      %p140 = scmp.eq.s32.totalorder %s36, 0
      %p141 = por %p139, %p140
      %p142 = scmp.ne.s32.totalorder %s130, %s131
      %p143 = scmp.eq.s32.totalorder %s37, 1
      %p144 = por %p142, %p143
      %p146 = scmp.ne.s32.totalorder %s131, %s145
      %p147 = scmp.eq.s32.totalorder %s37, 0
      %p148 = por %p146, %p147
      %s150 = sadd.s32 %s149, 1
      %p153 = scmp.eq.s32.totalorder %s31, 1
      %p154 = scmp.ne.s32.totalorder %s149, %s151
      %p155 = scmp.eq.s32.totalorder %s31, 0
      %p156 = por %p154, %p155
      %p157 = scmp.ne.s32.totalorder %s149, %s151
      %p158 = scmp.eq.s32.totalorder %s36, 1
      %p159 = por %p157, %p158
      %p160 = scmp.ne.s32.totalorder %s151, %s152
      %p161 = scmp.eq.s32.totalorder %s36, 0
      %p162 = por %p160, %p161
      %p163 = scmp.ne.s32.totalorder %s151, %s152
      %p164 = scmp.eq.s32.totalorder %s37, 1
      %p165 = por %p163, %p164
      %p167 = scmp.ne.s32.totalorder %s152, %s166
      %p168 = scmp.eq.s32.totalorder %s37, 0
      %p169 = por %p167, %p168
      %s171 = sadd.s32 %s170, 1
      %p174 = scmp.eq.s32.totalorder %s31, 1
      %p175 = scmp.ne.s32.totalorder %s170, %s172
      %p176 = scmp.eq.s32.totalorder %s31, 0
      %p177 = por %p175, %p176
      %p178 = scmp.ne.s32.totalorder %s170, %s172
      %p179 = scmp.eq.s32.totalorder %s36, 1
      %p180 = por %p178, %p179
      %p181 = scmp.ne.s32.totalorder %s172, %s173
      %p182 = scmp.eq.s32.totalorder %s36, 0
      %p183 = por %p181, %p182
      %p184 = scmp.ne.s32.totalorder %s172, %s173
      %p185 = scmp.eq.s32.totalorder %s37, 1
      %p186 = por %p184, %p185
      %p188 = scmp.ne.s32.totalorder %s173, %s187
      %p189 = scmp.eq.s32.totalorder %s37, 0
      %p190 = por %p188, %p189
      %s192 = sadd.s32 %s191, 1
      %p195 = scmp.eq.s32.totalorder %s31, 1
      %p196 = scmp.ne.s32.totalorder %s191, %s193
      %p197 = scmp.eq.s32.totalorder %s31, 0
      %p198 = por %p196, %p197
      %p199 = scmp.ne.s32.totalorder %s191, %s193
      %p200 = scmp.eq.s32.totalorder %s36, 1
      %p201 = por %p199, %p200
      %p202 = scmp.ne.s32.totalorder %s193, %s194
      %p203 = scmp.eq.s32.totalorder %s36, 0
      %p204 = por %p202, %p203
      %p205 = scmp.ne.s32.totalorder %s193, %s194
      %p206 = scmp.eq.s32.totalorder %s37, 1
      %p207 = por %p205, %p206
      %p209 = scmp.ne.s32.totalorder %s194, %s208
      %p210 = scmp.eq.s32.totalorder %s37, 0
      %p211 = por %p209, %p210
      %s213 = sadd.s32 %s212, 1
      %p216 = scmp.eq.s32.totalorder %s31, 1
      %p217 = scmp.ne.s32.totalorder %s212, %s214
      %p218 = scmp.eq.s32.totalorder %s31, 0
      %p219 = por %p217, %p218
      %p220 = scmp.ne.s32.totalorder %s212, %s214
      %p221 = scmp.eq.s32.totalorder %s36, 1
      %p222 = por %p220, %p221
      %p223 = scmp.ne.s32.totalorder %s214, %s215
      %p224 = scmp.eq.s32.totalorder %s36, 0
      %p225 = por %p223, %p224
      %p226 = scmp.ne.s32.totalorder %s214, %s215
      %p227 = scmp.eq.s32.totalorder %s37, 1
      %p228 = por %p226, %p227
      %p230 = scmp.ne.s32.totalorder %s215, %s229
      %p231 = scmp.eq.s32.totalorder %s37, 0
      %p232 = por %p230, %p231
      %s234 = sadd.s32 %s233, 1
      %p237 = scmp.eq.s32.totalorder %s31, 1
      %p238 = scmp.ne.s32.totalorder %s233, %s235
      %p239 = scmp.eq.s32.totalorder %s31, 0
      %p240 = por %p238, %p239
      %p241 = scmp.ne.s32.totalorder %s233, %s235
      %p242 = scmp.eq.s32.totalorder %s36, 1
      %p243 = por %p241, %p242
      %p244 = scmp.ne.s32.totalorder %s235, %s236
      %p245 = scmp.eq.s32.totalorder %s36, 0
      %p246 = por %p244, %p245
      %p247 = scmp.ne.s32.totalorder %s235, %s236
      %p248 = scmp.eq.s32.totalorder %s37, 1
      %p249 = por %p247, %p248
      %p251 = scmp.ne.s32.totalorder %s236, %s250
      %p252 = scmp.eq.s32.totalorder %s37, 0
      %p253 = por %p251, %p252
      %s254 = ssub.s32 %s31, %s38
      %p255 = scmp.eq.s32.totalorder %s254, 0
      %s257 = sadd.s32 %s256, 1
      %s258 = scalar_select %p255, %s256, %s257
      %p261 = pneg %p255
      %p262 = scmp.eq.s32.totalorder %s31, 1
      %p263 = por %p261, %p262
      %p264 = scmp.ne.s32.totalorder %s256, %s259
      %p265 = scmp.eq.s32.totalorder %s31, 0
      %p266 = por %p264, %p265
      %p267 = scmp.ne.s32.totalorder %s256, %s259
      %p268 = scmp.eq.s32.totalorder %s36, 1
      %p269 = por %p267, %p268
      %p270 = scmp.ne.s32.totalorder %s259, %s260
      %p271 = scmp.eq.s32.totalorder %s36, 0
      %p272 = por %p270, %p271
      %p273 = scmp.ne.s32.totalorder %s259, %s260
      %p274 = scmp.eq.s32.totalorder %s37, 1
      %p275 = por %p273, %p274
      %p277 = scmp.ne.s32.totalorder %s260, %s276
      %p278 = scmp.eq.s32.totalorder %s37, 0
      %p279 = por %p277, %p278
      %s280 = ssub.s32 %s31, %s38
      %p281 = scmp.eq.s32.totalorder %s280, 0
      %s283 = sadd.s32 %s282, 1
      %s284 = scalar_select %p281, %s282, %s283
      %p287 = pneg %p281
      %p288 = scmp.eq.s32.totalorder %s31, 1
      %p289 = por %p287, %p288
      %p290 = scmp.ne.s32.totalorder %s282, %s285
      %p291 = scmp.eq.s32.totalorder %s31, 0
      %p292 = por %p290, %p291
      %p293 = scmp.ne.s32.totalorder %s282, %s285
      %p294 = scmp.eq.s32.totalorder %s36, 1
      %p295 = por %p293, %p294
      %p296 = scmp.ne.s32.totalorder %s285, %s286
      %p297 = scmp.eq.s32.totalorder %s36, 0
      %p298 = por %p296, %p297
      %p299 = scmp.ne.s32.totalorder %s285, %s286
      %p300 = scmp.eq.s32.totalorder %s37, 1
      %p301 = por %p299, %p300
      %p303 = scmp.ne.s32.totalorder %s286, %s302
      %p304 = scmp.eq.s32.totalorder %s37, 0
      %p305 = por %p303, %p304
      %p306 = scmp.le.s32.totalorder 1, %s31
      %p307 = scmp.lt.s32.totalorder %s31, 3
      %p308 = pnand %p306, %p307
      %p309 = pneg %p308
      // Predicated region
      $region9: #{tpu_custom_call.1} parent=5 // pred_check
        _
      $region10: #{tpu_custom_call.1} parent=5 // pred_check_branch
        %311 = sbr.rel (%p308) target = $region12
      $region11: #{tpu_custom_call.1} parent=5 // pred_region
        %s312 = ssub.s32 %s31, 1
        // Predicated region
        $region13: #{tpu_custom_call.1} parent=11 // pred_check
          %p313 = pneg %p78
        $region14: #{tpu_custom_call.1} parent=11 // pred_check_branch
          %315 = sbr.rel (%p313) target = $region16
        $region15: #{tpu_custom_call.1} parent=11 // pred_region
          %317 = vsyncadd [#allocation6], 0
          %s319 = sshll.u32 %s1, 4
          %s320 = int_to_ptr.hbm [resolvable:$true] %s319
          %s321 = sshll.u32 [#allocation5], 4
          %s322 = int_to_ptr.vmem [resolvable:$true] %s321
          %324 = dma.hbm_to_vmem [thread:$0]  %s320, 128, %s322, [#allocation6]
        $region16: #{tpu_custom_call.1} parent=11 // pred_fallthru
          _
        // Predicated region
        $region17: #{tpu_custom_call.1} parent=11 // pred_check
          %p325 = pneg %p99
        $region18: #{tpu_custom_call.1} parent=11 // pred_check_branch
          %327 = sbr.rel (%p325) target = $region20
        $region19: #{tpu_custom_call.1} parent=11 // pred_region
          %329 = vsyncadd [#allocation6], 0
          %s330 = sshll.u32 %s2, 4
          %s331 = int_to_ptr.hbm [resolvable:$true] %s330
          %s332 = sshll.u32 [#allocation7], 4
          %s333 = int_to_ptr.vmem [resolvable:$true] %s332
          %338 = dma.hbm_to_vmem [thread:$0]  %s331, 512, %s333, [#allocation6], 128, 128, 8
        $region20: #{tpu_custom_call.1} parent=11 // pred_fallthru
          _
        // Predicated region
        $region21: #{tpu_custom_call.1} parent=11 // pred_check
          %p339 = pneg %p120
        $region22: #{tpu_custom_call.1} parent=11 // pred_check_branch
          %341 = sbr.rel (%p339) target = $region24
        $region23: #{tpu_custom_call.1} parent=11 // pred_region
          %343 = vsyncadd [#allocation9], 0
          %s344 = sshll.u32 %s3, 4
          %s345 = int_to_ptr.hbm [resolvable:$true] %s344
          %s346 = sshll.u32 [#allocation8], 4
          %s347 = int_to_ptr.vmem [resolvable:$true] %s346
          %352 = dma.hbm_to_vmem [thread:$0]  %s345, 512, %s347, [#allocation9], 128, 128, 8
        $region24: #{tpu_custom_call.1} parent=11 // pred_fallthru
          _
        // Predicated region
        $region25: #{tpu_custom_call.1} parent=11 // pred_check
          %p353 = pneg %p141
        $region26: #{tpu_custom_call.1} parent=11 // pred_check_branch
          %355 = sbr.rel (%p353) target = $region28
        $region27: #{tpu_custom_call.1} parent=11 // pred_region
          %357 = vsyncadd [#allocation9], 0
          %s358 = sshll.u32 %s4, 4
          %s359 = int_to_ptr.hbm [resolvable:$true] %s358
          %s360 = sshll.u32 [#allocation10], 4
          %s361 = int_to_ptr.vmem [resolvable:$true] %s360
          %366 = dma.hbm_to_vmem [thread:$0]  %s359, 512, %s361, [#allocation9], 128, 128, 8
        $region28: #{tpu_custom_call.1} parent=11 // pred_fallthru
          _
        // Predicated region
        $region29: #{tpu_custom_call.1} parent=11 // pred_check
          %p367 = pneg %p162
        $region30: #{tpu_custom_call.1} parent=11 // pred_check_branch
          %369 = sbr.rel (%p367) target = $region32
        $region31: #{tpu_custom_call.1} parent=11 // pred_region
          _
        $region32: #{tpu_custom_call.1} parent=11 // pred_fallthru
          _
        // Predicated region
        $region33: #{tpu_custom_call.1} parent=11 // pred_check
          %p370 = pneg %p183
        $region34: #{tpu_custom_call.1} parent=11 // pred_check_branch
          %372 = sbr.rel (%p370) target = $region36
        $region35: #{tpu_custom_call.1} parent=11 // pred_region
          %374 = vsyncadd [#allocation12], 0
          %s375 = sshll.u32 %s6, 4
          %s376 = int_to_ptr.hbm [resolvable:$true] %s375
          %s377 = sshll.u32 [#allocation11], 4
          %s378 = int_to_ptr.vmem [resolvable:$true] %s377
          %383 = dma.hbm_to_vmem [thread:$0]  %s376, 512, %s378, [#allocation12], 128, 128, 8
        $region36: #{tpu_custom_call.1} parent=11 // pred_fallthru
          _
        // Predicated region
        $region37: #{tpu_custom_call.1} parent=11 // pred_check
          %p384 = pneg %p204
        $region38: #{tpu_custom_call.1} parent=11 // pred_check_branch
          %386 = sbr.rel (%p384) target = $region40
        $region39: #{tpu_custom_call.1} parent=11 // pred_region
          _
        $region40: #{tpu_custom_call.1} parent=11 // pred_fallthru
          _
        // Predicated region
        $region41: #{tpu_custom_call.1} parent=11 // pred_check
          %p387 = pneg %p225
        $region42: #{tpu_custom_call.1} parent=11 // pred_check_branch
          %389 = sbr.rel (%p387) target = $region44
        $region43: #{tpu_custom_call.1} parent=11 // pred_region
          %391 = vsyncadd [#allocation12], 0
          %s392 = sshll.u32 %s8, 4
          %s393 = int_to_ptr.hbm [resolvable:$true] %s392
          %s394 = sshll.u32 [#allocation13], 4
          %s395 = int_to_ptr.vmem [resolvable:$true] %s394
          %400 = dma.hbm_to_vmem [thread:$0]  %s393, 512, %s395, [#allocation12], 128, 128, 8
        $region44: #{tpu_custom_call.1} parent=11 // pred_fallthru
          _
        // Predicated region
        $region45: #{tpu_custom_call.1} parent=11 // pred_check
          %p401 = pneg %p246
        $region46: #{tpu_custom_call.1} parent=11 // pred_check_branch
          %403 = sbr.rel (%p401) target = $region48
        $region47: #{tpu_custom_call.1} parent=11 // pred_region
          %405 = vsyncadd [#allocation15], 0
          %s406 = sshll.u32 %s9, 4
          %s407 = int_to_ptr.hbm [resolvable:$true] %s406
          %s408 = sshll.u32 [#allocation14], 4
          %s409 = int_to_ptr.vmem [resolvable:$true] %s408
          %414 = dma.hbm_to_vmem [thread:$0]  %s407, 512, %s409, [#allocation15], 128, 128, 8
        $region48: #{tpu_custom_call.1} parent=11 // pred_fallthru
          _
      $region12: #{tpu_custom_call.1} parent=5 // pred_fallthru
        _
      %p415 = scmp.lt.s32.totalorder %s31, 2
      // Predicated region
      $region49: #{tpu_custom_call.1} parent=5 // pred_check
        %p416 = pneg %p415
      $region50: #{tpu_custom_call.1} parent=5 // pred_check_branch
        %418 = sbr.rel (%p416) target = $region52
      $region51: #{tpu_custom_call.1} parent=5 // pred_region
        // Predicated region
        $region53: #{tpu_custom_call.1} parent=51 // pred_check
          %p419 = pneg %p51
        $region54: #{tpu_custom_call.1} parent=51 // pred_check_branch
          %421 = sbr.rel (%p419) target = $region56
        $region55: #{tpu_custom_call.1} parent=51 // pred_region
          %s422 = sand.u32 %s41, 1
          %s423 = scalar_lea.sflag [#allocation3], %s422
          %s424 = sand.u32 %s41, 1
          %s425 = smul.addr %s424, 32
          %s426 = scalar_lea.vmem [#allocation2], %s425
          %s427 = smul.u32 2, %s31
          %429 = vsyncadd %s423, 0
          %s430 = smul.addr %s427, 2
          %s431 = smul.addr %s430, 8
          %s432 = scalar_lea.hbm %s0, %s431
          %s433 = sshll.u32 %s432, 4
          %s434 = int_to_ptr.hbm [resolvable:$true] %s433
          %s435 = sshll.u32 %s426, 4
          %s436 = int_to_ptr.vmem [resolvable:$true] %s435
          %441 = dma.hbm_to_vmem [thread:$0]  %s434, 512, %s436, %s423, 128, 128, 8
        $region56: #{tpu_custom_call.1} parent=51 // pred_fallthru
          _
      $region52: #{tpu_custom_call.1} parent=5 // pred_fallthru
        _
      %p442 = scmp.le.s32.totalorder 1, %s31
      %p443 = scmp.lt.s32.totalorder %s31, 3
      %p444 = pnand %p442, %p443
      %p445 = pneg %p444
      // Predicated region
      $region57: #{tpu_custom_call.1} parent=5 // pred_check
        _
      $region58: #{tpu_custom_call.1} parent=5 // pred_check_branch
        %447 = sbr.rel (%p444) target = $region60
      $region59: #{tpu_custom_call.1} parent=5 // pred_region
        %s448 = ssub.s32 %s31, 1
        %s449 = sand.u32 %s44, 1
        %s450 = scalar_lea.sflag [#allocation3], %s449
        %s451 = sand.u32 %s44, 1
        %s452 = smul.addr %s451, 32
        %s453 = scalar_lea.vmem [#allocation2], %s452
        // Predicated region
        $region61: #{tpu_custom_call.1} parent=59 // pred_check
          %p454 = pneg %p57
        $region62: #{tpu_custom_call.1} parent=59 // pred_check_branch
          %456 = sbr.rel (%p454) target = $region64
        $region63: #{tpu_custom_call.1} parent=59 // pred_region
          %458 = dma.done %s450, 512
        $region64: #{tpu_custom_call.1} parent=59 // pred_fallthru
          _
        // Predicated region
        $region65: #{tpu_custom_call.1} parent=59 // pred_check
          %p459 = pneg %p78
        $region66: #{tpu_custom_call.1} parent=59 // pred_check_branch
          %461 = sbr.rel (%p459) target = $region68
        $region67: #{tpu_custom_call.1} parent=59 // pred_region
          %463 = dma.done [#allocation6], 128
        $region68: #{tpu_custom_call.1} parent=59 // pred_fallthru
          _
        // Predicated region
        $region69: #{tpu_custom_call.1} parent=59 // pred_check
          %p464 = pneg %p99
        $region70: #{tpu_custom_call.1} parent=59 // pred_check_branch
          %466 = sbr.rel (%p464) target = $region72
        $region71: #{tpu_custom_call.1} parent=59 // pred_region
          %468 = dma.done [#allocation6], 512
        $region72: #{tpu_custom_call.1} parent=59 // pred_fallthru
          _
        // Predicated region
        $region73: #{tpu_custom_call.1} parent=59 // pred_check
          %p469 = pneg %p120
        $region74: #{tpu_custom_call.1} parent=59 // pred_check_branch
          %471 = sbr.rel (%p469) target = $region76
        $region75: #{tpu_custom_call.1} parent=59 // pred_region
          %473 = dma.done [#allocation9], 512
        $region76: #{tpu_custom_call.1} parent=59 // pred_fallthru
          _
        // Predicated region
        $region77: #{tpu_custom_call.1} parent=59 // pred_check
          %p474 = pneg %p141
        $region78: #{tpu_custom_call.1} parent=59 // pred_check_branch
          %476 = sbr.rel (%p474) target = $region80
        $region79: #{tpu_custom_call.1} parent=59 // pred_region
          %478 = dma.done [#allocation9], 512
        $region80: #{tpu_custom_call.1} parent=59 // pred_fallthru
          _
        // Predicated region
        $region81: #{tpu_custom_call.1} parent=59 // pred_check
          %p479 = pneg %p183
        $region82: #{tpu_custom_call.1} parent=59 // pred_check_branch
          %481 = sbr.rel (%p479) target = $region84
        $region83: #{tpu_custom_call.1} parent=59 // pred_region
          %483 = dma.done [#allocation12], 512
        $region84: #{tpu_custom_call.1} parent=59 // pred_fallthru
          _
        // Predicated region
        $region85: #{tpu_custom_call.1} parent=59 // pred_check
          %p484 = pneg %p225
        $region86: #{tpu_custom_call.1} parent=59 // pred_check_branch
          %486 = sbr.rel (%p484) target = $region88
        $region87: #{tpu_custom_call.1} parent=59 // pred_region
          %488 = dma.done [#allocation12], 512
        $region88: #{tpu_custom_call.1} parent=59 // pred_fallthru
          _
        // Predicated region
        $region89: #{tpu_custom_call.1} parent=59 // pred_check
          %p489 = pneg %p246
        $region90: #{tpu_custom_call.1} parent=59 // pred_check_branch
          %491 = sbr.rel (%p489) target = $region92
        $region91: #{tpu_custom_call.1} parent=59 // pred_region
          %493 = dma.done [#allocation15], 512
        $region92: #{tpu_custom_call.1} parent=59 // pred_fallthru
          _
        %s494 = sand.u32 %s44, 1
        %s495 = scalar_lea.sflag [#allocation3], %s494
        %s496 = sand.u32 %s44, 1
        %s497 = smul.addr %s496, 32
        %s498 = scalar_lea.vmem [#allocation2], %s497
        %p499 = pneg %p57
        %p500 = pneg %p54
        %p501 = pneg %p78
        %p502 = pneg %p75
        %p503 = pneg %p99
        %p504 = pneg %p96
        %p505 = pneg %p120
        %p506 = pneg %p117
        %p507 = pneg %p141
        %p508 = pneg %p138
        %p509 = pneg %p162
        %p510 = pneg %p159
        %p511 = pneg %p183
        %p512 = pneg %p180
        %p513 = pneg %p204
        %p514 = pneg %p201
        %p515 = pneg %p225
        %p516 = pneg %p222
        %p517 = pneg %p246
        %p518 = pneg %p243
        %p519 = pneg %p272
        %p520 = pneg %p269
        %s521 = sand.u32 %s259, 1
        %s522 = scalar_lea.sflag [#allocation4], %s521
        %s523 = sand.u32 %s259, 1
        %s524 = smul.addr %s523, 32
        %s525 = scalar_lea.vmem [#allocation16], %s524
        %p526 = pneg %p298
        %p527 = pneg %p295
        %s528 = sand.u32 %s285, 1
        %s529 = scalar_lea.sflag [#allocation18], %s528
        %s530 = sand.u32 %s285, 1
        %s531 = smul.addr %s530, 16
        %s532 = scalar_lea.vmem [#allocation17], %s531
        %s533 = smul.u32 2, %s36
        %s534 = smul.u32 2, %s36
        %s535 = smul.u32 2, %s36
        %v536 = vld [vmem:[%s453] sm:$0xff]
        %v537 = vld [vmem:[%s453 + $0x8] sm:$0xff]
        %v538 = vld [vmem:[%s453 + $0x10] sm:$0xff]
        %v539 = vld [vmem:[%s453 + $0x18] sm:$0xff]
        %v540 = vld [vmem:[#allocation5] sm:$0xff]
        %vm541 = vcmask 261120
        %v543 = vsel %vm541, %v540, 0
        %v546 = vsel %vm541, %v536, 0
        %v549 = vsel %vm541, %v537, 0
        %551 = vmatpush.xpose.msra.mxu0 0.0
        %552 = vmatpush.xpose.msra.mxu0 0.0
        %553 = vmatpush.xpose.msra.mxu0 0.0
        %554 = vmatpush.xpose.msra.mxu0 0.0
        %555 = vmatpush.xpose.msra.mxu0 0.0
        %556 = vmatpush.xpose.msra.mxu0 0.0
        %557 = vmatpush.xpose.msra.mxu0 0.0
        %558 = vmatpush.xpose.msra.mxu0 0.0
        %559 = vmatpush.xpose.msra.mxu0 0.0
        %560 = vmatpush.xpose.msra.mxu0 0.0
        %561 = vmatpush.xpose.msra.mxu0 0.0
        %562 = vmatpush.xpose.msra.mxu0 0.0
        %563 = vmatpush.xpose.msra.mxu0 0.0
        %564 = vmatpush.xpose.msra.mxu0 0.0
        %565 = vmatpush.xpose.msra.mxu0 %v549
        %566 = vmatpush.xpose.msra.mxu0 %v546
        %567 = vmatmul.f32.gmra.mxu0 %v543
        %v568 = vpop.f32.mrf.mxu0
        %v569 = vadd.f32 0.0, %v568
        %570 = vdwg.mxu0
        %v572 = vsel %vm541, %v538, 0
        %v575 = vsel %vm541, %v539, 0
        %577 = vmatpush.xpose.msra.mxu0 0.0
        %578 = vmatpush.xpose.msra.mxu0 0.0
        %579 = vmatpush.xpose.msra.mxu0 0.0
        %580 = vmatpush.xpose.msra.mxu0 0.0
        %581 = vmatpush.xpose.msra.mxu0 0.0
        %582 = vmatpush.xpose.msra.mxu0 0.0
        %583 = vmatpush.xpose.msra.mxu0 0.0
        %584 = vmatpush.xpose.msra.mxu0 0.0
        %585 = vmatpush.xpose.msra.mxu0 0.0
        %586 = vmatpush.xpose.msra.mxu0 0.0
        %587 = vmatpush.xpose.msra.mxu0 0.0
        %588 = vmatpush.xpose.msra.mxu0 0.0
        %589 = vmatpush.xpose.msra.mxu0 0.0
        %590 = vmatpush.xpose.msra.mxu0 0.0
        %591 = vmatpush.xpose.msra.mxu0 %v575
        %592 = vmatpush.xpose.msra.mxu0 %v572
        %593 = vmatmul.f32.gmra.mxu0 %v543
        %v594 = vpop.f32.mrf.mxu0
        %v595 = vadd.f32 0.0, %v594
        %596 = vdwg.mxu0
        %vm597 = vcmask 130048
        %v598 = vsel %vm597, %v569, -inf
        %599 = vmax.xlane.f32.xlu0 %v598
        %v600 = vpop.xlane.xlu0 %599
        %v601 = vsel %vm597, %v595, -inf
        %602 = vmax.xlane.f32.xlu0 %v601
        %v603 = vpop.xlane.xlu0 %602
        %v604 = vsub.f32 %v569, %v600
        %v605 = vsub.f32 %v595, %v603
        %v606 = vmul.f32 %v604, 1.442695
        %v607 = vpow.pop %v606
        %v608 = vmul.f32 %v605, 1.442695
        %v609 = vpow.pop %v608
        %v610 = vsel %vm597, %v607, 0.0
        %611 = vadd.xlane.f32.xlu0 %v610
        %v612 = vpop.xlane.xlu0 %611
        %v613 = vsel %vm597, %v609, 0.0
        %614 = vadd.xlane.f32.xlu0 %v613
        %v615 = vpop.xlane.xlu0 %614
        %v616 = vrcp.pop %v612
        %v617 = vmul.f32 %v612, %v616
        %v618 = vsub.f32 1.0, %v617
        %v619 = vmul.f32 %v616, %v618
        %v620 = vadd.f32 %v616, %v619
        %vm621 = vweird.f32 %v612
        %vm622 = vweird.f32 %v616
        %vm623 = vmor %vm621, %vm622
        %v624 = vsel %vm623, %v616, %v620
        %v625 = vand.u32 2147483647, %v612
        %vm626 = vcmp.eq.f32.partialorder %v625, 8.507059e+37
        %v627 = vand.u32 %v612, 2147483648
        %v628 = vor.u32 1.1754944e-38, %v627
        %v629 = vsel %vm626, %v628, %v624
        %v630 = vrcp.pop %v615
        %v631 = vmul.f32 %v615, %v630
        %v632 = vsub.f32 1.0, %v631
        %v633 = vmul.f32 %v630, %v632
        %v634 = vadd.f32 %v630, %v633
        %vm635 = vweird.f32 %v615
        %vm636 = vweird.f32 %v630
        %vm637 = vmor %vm635, %vm636
        %v638 = vsel %vm637, %v630, %v634
        %v639 = vand.u32 2147483647, %v615
        %vm640 = vcmp.eq.f32.partialorder %v639, 8.507059e+37
        %v641 = vand.u32 %v615, 2147483648
        %v642 = vor.u32 1.1754944e-38, %v641
        %v643 = vsel %vm640, %v642, %v638
        %v644 = vmul.f32 %v607, %v629
        %v645 = vmul.f32 %v609, %v643
        %v647 = vsel %vm597, %v644, 0
        %649 = vmatpush.msra.mxu0 0.0
        %650 = vmatpush.msra.mxu0 0.0
        %651 = vmatpush.msra.mxu0 0.0
        %652 = vmatpush.msra.mxu0 0.0
        %653 = vmatpush.msra.mxu0 0.0
        %654 = vmatpush.msra.mxu0 0.0
        %655 = vmatpush.msra.mxu0 0.0
        %656 = vmatpush.msra.mxu0 0.0
        %657 = vmatpush.msra.mxu0 0.0
        %658 = vmatpush.msra.mxu0 0.0
        %659 = vmatpush.msra.mxu0 0.0
        %660 = vmatpush.msra.mxu0 0.0
        %661 = vmatpush.msra.mxu0 0.0
        %662 = vmatpush.msra.mxu0 0.0
        %663 = vmatpush.msra.mxu0 %v537
        %664 = vmatpush.msra.mxu0 %v536
        %665 = vmatmul.f32.gmra.mxu0 %v647
        %v666 = vpop.f32.mrf.mxu0
        %v667 = vadd.f32 0.0, %v666
        %668 = vdwg.mxu0
        %v670 = vsel %vm597, %v645, 0
        %672 = vmatpush.msra.mxu0 0.0
        %673 = vmatpush.msra.mxu0 0.0
        %674 = vmatpush.msra.mxu0 0.0
        %675 = vmatpush.msra.mxu0 0.0
        %676 = vmatpush.msra.mxu0 0.0
        %677 = vmatpush.msra.mxu0 0.0
        %678 = vmatpush.msra.mxu0 0.0
        %679 = vmatpush.msra.mxu0 0.0
        %680 = vmatpush.msra.mxu0 0.0
        %681 = vmatpush.msra.mxu0 0.0
        %682 = vmatpush.msra.mxu0 0.0
        %683 = vmatpush.msra.mxu0 0.0
        %684 = vmatpush.msra.mxu0 0.0
        %685 = vmatpush.msra.mxu0 0.0
        %686 = vmatpush.msra.mxu0 %v539
        %687 = vmatpush.msra.mxu0 %v538
        %688 = vmatmul.f32.gmra.mxu0 %v670
        %v689 = vpop.f32.mrf.mxu0
        %v690 = vadd.f32 0.0, %v689
        %691 = vdwg.mxu0
        %v692 = vld [vmem:[#allocation7] sm:$0xff]
        %v693 = vld [vmem:[#allocation7 + $0x8] sm:$0xff]
        %v694 = vld [vmem:[#allocation7 + $0x10] sm:$0xff]
        %v695 = vld [vmem:[#allocation7 + $0x18] sm:$0xff]
        %v697 = vsel %vm541, %v667, 0
        %v700 = vsel %vm541, %v690, 0
        %702 = vmatpush.msra.mxu0 0.0
        %703 = vmatpush.msra.mxu0 0.0
        %704 = vmatpush.msra.mxu0 0.0
        %705 = vmatpush.msra.mxu0 0.0
        %706 = vmatpush.msra.mxu0 0.0
        %707 = vmatpush.msra.mxu0 0.0
        %708 = vmatpush.msra.mxu0 0.0
        %709 = vmatpush.msra.mxu0 0.0
        %710 = vmatpush.msra.mxu0 0.0
        %711 = vmatpush.msra.mxu0 0.0
        %712 = vmatpush.msra.mxu0 0.0
        %713 = vmatpush.msra.mxu0 0.0
        %714 = vmatpush.msra.mxu0 %v695
        %715 = vmatpush.msra.mxu0 %v694
        %716 = vmatpush.msra.mxu0 %v693
        %717 = vmatpush.msra.mxu0 %v692
        %718 = vmatmul.f32.gmra.mxu0 %v697
        %v719 = vpop.f32.mrf.mxu0
        %v720 = vadd.f32 0.0, %v719
        %721 = vmatmul.f32.gmra.mxu0 %v700
        %v722 = vpop.f32.mrf.mxu0
        %v723 = vadd.f32 0.0, %v722
        %724 = vdwg.mxu0
        %v725 = vld [vmem:[#allocation8] sm:$0xff]
        %v726 = vld [vmem:[#allocation8 + $0x8] sm:$0xff]
        %v727 = vld [vmem:[#allocation8 + $0x10] sm:$0xff]
        %v728 = vld [vmem:[#allocation8 + $0x18] sm:$0xff]
        %729 = vmatpush.msra.mxu0 0.0
        %730 = vmatpush.msra.mxu0 0.0
        %731 = vmatpush.msra.mxu0 0.0
        %732 = vmatpush.msra.mxu0 0.0
        %733 = vmatpush.msra.mxu0 0.0
        %734 = vmatpush.msra.mxu0 0.0
        %735 = vmatpush.msra.mxu0 0.0
        %736 = vmatpush.msra.mxu0 0.0
        %737 = vmatpush.msra.mxu0 0.0
        %738 = vmatpush.msra.mxu0 0.0
        %739 = vmatpush.msra.mxu0 0.0
        %740 = vmatpush.msra.mxu0 0.0
        %741 = vmatpush.msra.mxu0 %v728
        %742 = vmatpush.msra.mxu0 %v727
        %743 = vmatpush.msra.mxu0 %v726
        %744 = vmatpush.msra.mxu0 %v725
        %745 = vmatmul.f32.gmra.mxu0 %v697
        %v746 = vpop.f32.mrf.mxu0
        %v747 = vadd.f32 0.0, %v746
        %748 = vmatmul.f32.gmra.mxu0 %v700
        %v749 = vpop.f32.mrf.mxu0
        %v750 = vadd.f32 0.0, %v749
        %751 = vdwg.mxu0
        %v753 = vsel %vm541, %v720, 0
        %v756 = vsel %vm541, %v747, 0
        %758 = vmatpush.xpose.msra.mxu0 0.0
        %759 = vmatpush.xpose.msra.mxu0 0.0
        %760 = vmatpush.xpose.msra.mxu0 0.0
        %761 = vmatpush.xpose.msra.mxu0 0.0
        %762 = vmatpush.xpose.msra.mxu0 0.0
        %763 = vmatpush.xpose.msra.mxu0 0.0
        %764 = vmatpush.xpose.msra.mxu0 0.0
        %765 = vmatpush.xpose.msra.mxu0 0.0
        %766 = vmatpush.xpose.msra.mxu0 0.0
        %767 = vmatpush.xpose.msra.mxu0 0.0
        %768 = vmatpush.xpose.msra.mxu0 0.0
        %769 = vmatpush.xpose.msra.mxu0 0.0
        %770 = vmatpush.xpose.msra.mxu0 0.0
        %771 = vmatpush.xpose.msra.mxu0 0.0
        %772 = vmatpush.xpose.msra.mxu0 0.0
        %773 = vmatpush.xpose.msra.mxu0 %v756
        %774 = vmatmul.f32.gmra.mxu0 %v753
        %v775 = vpop.f32.mrf.mxu0
        %v776 = vadd.f32 0.0, %v775
        %777 = vdwg.mxu0
        %v779 = vsel %vm541, %v723, 0
        %v782 = vsel %vm541, %v750, 0
        %784 = vmatpush.xpose.msra.mxu0 0.0
        %785 = vmatpush.xpose.msra.mxu0 0.0
        %786 = vmatpush.xpose.msra.mxu0 0.0
        %787 = vmatpush.xpose.msra.mxu0 0.0
        %788 = vmatpush.xpose.msra.mxu0 0.0
        %789 = vmatpush.xpose.msra.mxu0 0.0
        %790 = vmatpush.xpose.msra.mxu0 0.0
        %791 = vmatpush.xpose.msra.mxu0 0.0
        %792 = vmatpush.xpose.msra.mxu0 0.0
        %793 = vmatpush.xpose.msra.mxu0 0.0
        %794 = vmatpush.xpose.msra.mxu0 0.0
        %795 = vmatpush.xpose.msra.mxu0 0.0
        %796 = vmatpush.xpose.msra.mxu0 0.0
        %797 = vmatpush.xpose.msra.mxu0 0.0
        %798 = vmatpush.xpose.msra.mxu0 0.0
        %799 = vmatpush.xpose.msra.mxu0 %v782
        %800 = vmatmul.f32.gmra.mxu0 %v779
        %v801 = vpop.f32.mrf.mxu0
        %v802 = vadd.f32 0.0, %v801
        %803 = vdwg.mxu0
        %vm804 = vcmask 64512
        %v805 = vsel %vm804, %v776, -inf
        %806 = vmax.xlane.f32.xlu0 %v805
        %v807 = vpop.xlane.xlu0 %806
        %v808 = vsel %vm804, %v802, -inf
        %809 = vmax.xlane.f32.xlu0 %v808
        %v810 = vpop.xlane.xlu0 %809
        %v811 = vsub.f32 %v776, %v807
        %v812 = vsub.f32 %v802, %v810
        %v813 = vmul.f32 %v811, 1.442695
        %v814 = vpow.pop %v813
        %v815 = vmul.f32 %v812, 1.442695
        %v816 = vpow.pop %v815
        %v817 = vsel %vm804, %v814, 0.0
        %818 = vadd.xlane.f32.xlu0 %v817
        %v819 = vpop.xlane.xlu0 %818
        %v820 = vsel %vm804, %v816, 0.0
        %821 = vadd.xlane.f32.xlu0 %v820
        %v822 = vpop.xlane.xlu0 %821
        %v823 = vrcp.pop %v819
        %v824 = vmul.f32 %v819, %v823
        %v825 = vsub.f32 1.0, %v824
        %v826 = vmul.f32 %v823, %v825
        %v827 = vadd.f32 %v823, %v826
        %vm828 = vweird.f32 %v819
        %vm829 = vweird.f32 %v823
        %vm830 = vmor %vm828, %vm829
        %v831 = vsel %vm830, %v823, %v827
        %v832 = vand.u32 2147483647, %v819
        %vm833 = vcmp.eq.f32.partialorder %v832, 8.507059e+37
        %v834 = vand.u32 %v819, 2147483648
        %v835 = vor.u32 1.1754944e-38, %v834
        %v836 = vsel %vm833, %v835, %v831
        %v837 = vrcp.pop %v822
        %v838 = vmul.f32 %v822, %v837
        %v839 = vsub.f32 1.0, %v838
        %v840 = vmul.f32 %v837, %v839
        %v841 = vadd.f32 %v837, %v840
        %vm842 = vweird.f32 %v822
        %vm843 = vweird.f32 %v837
        %vm844 = vmor %vm842, %vm843
        %v845 = vsel %vm844, %v837, %v841
        %v846 = vand.u32 2147483647, %v822
        %vm847 = vcmp.eq.f32.partialorder %v846, 8.507059e+37
        %v848 = vand.u32 %v822, 2147483648
        %v849 = vor.u32 1.1754944e-38, %v848
        %v850 = vsel %vm847, %v849, %v845
        %v851 = vmul.f32 %v814, %v836
        %v852 = vmul.f32 %v816, %v850
        %v854 = vsel %vm804, %v851, 0
        %856 = vmatpush.msra.mxu0 0.0
        %857 = vmatpush.msra.mxu0 0.0
        %858 = vmatpush.msra.mxu0 0.0
        %859 = vmatpush.msra.mxu0 0.0
        %860 = vmatpush.msra.mxu0 0.0
        %861 = vmatpush.msra.mxu0 0.0
        %862 = vmatpush.msra.mxu0 0.0
        %863 = vmatpush.msra.mxu0 0.0
        %864 = vmatpush.msra.mxu0 0.0
        %865 = vmatpush.msra.mxu0 0.0
        %866 = vmatpush.msra.mxu0 0.0
        %867 = vmatpush.msra.mxu0 0.0
        %868 = vmatpush.msra.mxu0 0.0
        %869 = vmatpush.msra.mxu0 0.0
        %870 = vmatpush.msra.mxu0 0.0
        %871 = vmatpush.msra.mxu0 %v667
        %872 = vmatmul.f32.gmra.mxu0 %v854
        %v873 = vpop.f32.mrf.mxu0
        %v874 = vadd.f32 0.0, %v873
        %875 = vdwg.mxu0
        %v877 = vsel %vm804, %v852, 0
        %879 = vmatpush.msra.mxu0 0.0
        %880 = vmatpush.msra.mxu0 0.0
        %881 = vmatpush.msra.mxu0 0.0
        %882 = vmatpush.msra.mxu0 0.0
        %883 = vmatpush.msra.mxu0 0.0
        %884 = vmatpush.msra.mxu0 0.0
        %885 = vmatpush.msra.mxu0 0.0
        %886 = vmatpush.msra.mxu0 0.0
        %887 = vmatpush.msra.mxu0 0.0
        %888 = vmatpush.msra.mxu0 0.0
        %889 = vmatpush.msra.mxu0 0.0
        %890 = vmatpush.msra.mxu0 0.0
        %891 = vmatpush.msra.mxu0 0.0
        %892 = vmatpush.msra.mxu0 0.0
        %893 = vmatpush.msra.mxu0 0.0
        %894 = vmatpush.msra.mxu0 %v690
        %895 = vmatmul.f32.gmra.mxu0 %v877
        %v896 = vpop.f32.mrf.mxu0
        %v897 = vadd.f32 0.0, %v896
        %898 = vdwg.mxu0
        %v899 = vadd.f32 %v667, %v874
        %v900 = vadd.f32 %v690, %v897
        %v901 = vld [vmem:[#allocation10] sm:$0xff]
        %v902 = vld [vmem:[#allocation10 + $0x8] sm:$0xff]
        %v903 = vld [vmem:[#allocation10 + $0x10] sm:$0xff]
        %v904 = vld [vmem:[#allocation10 + $0x18] sm:$0xff]
        %v905 = vld [vmem:[%s5] sm:$0x1]
        %v907 = vperm.slane %v905, 0
        %v910 = vsel %vm541, %v899, 0
        %v913 = vsel %vm541, %v900, 0
        %915 = vmatpush.msra.mxu0 0.0
        %916 = vmatpush.msra.mxu0 0.0
        %917 = vmatpush.msra.mxu0 0.0
        %918 = vmatpush.msra.mxu0 0.0
        %919 = vmatpush.msra.mxu0 0.0
        %920 = vmatpush.msra.mxu0 0.0
        %921 = vmatpush.msra.mxu0 0.0
        %922 = vmatpush.msra.mxu0 0.0
        %923 = vmatpush.msra.mxu0 0.0
        %924 = vmatpush.msra.mxu0 0.0
        %925 = vmatpush.msra.mxu0 0.0
        %926 = vmatpush.msra.mxu0 0.0
        %927 = vmatpush.msra.mxu0 %v904
        %928 = vmatpush.msra.mxu0 %v903
        %929 = vmatpush.msra.mxu0 %v902
        %930 = vmatpush.msra.mxu0 %v901
        %931 = vmatmul.f32.gmra.mxu0 %v910
        %v932 = vpop.f32.mrf.mxu0
        %v933 = vadd.f32 %v907, %v932
        %934 = vmatmul.f32.gmra.mxu0 %v913
        %v935 = vpop.f32.mrf.mxu0
        %v936 = vadd.f32 %v907, %v935
        %937 = vdwg.mxu0
        %v938 = vmax.f32 %v933, 0.0
        %v939 = vmax.f32 %v936, 0.0
        %v940 = vld [vmem:[#allocation11] sm:$0xff]
        %v941 = vld [vmem:[#allocation11 + $0x8] sm:$0xff]
        %v942 = vld [vmem:[#allocation11 + $0x10] sm:$0xff]
        %v943 = vld [vmem:[#allocation11 + $0x18] sm:$0xff]
        %v944 = vld [vmem:[%s7] sm:$0x1]
        %v946 = vperm.slane %v944, 0
        %v949 = vsel %vm541, %v938, 0
        %v952 = vsel %vm541, %v939, 0
        %954 = vmatpush.msra.mxu0 0.0
        %955 = vmatpush.msra.mxu0 0.0
        %956 = vmatpush.msra.mxu0 0.0
        %957 = vmatpush.msra.mxu0 0.0
        %958 = vmatpush.msra.mxu0 0.0
        %959 = vmatpush.msra.mxu0 0.0
        %960 = vmatpush.msra.mxu0 0.0
        %961 = vmatpush.msra.mxu0 0.0
        %962 = vmatpush.msra.mxu0 0.0
        %963 = vmatpush.msra.mxu0 0.0
        %964 = vmatpush.msra.mxu0 0.0
        %965 = vmatpush.msra.mxu0 0.0
        %966 = vmatpush.msra.mxu0 %v943
        %967 = vmatpush.msra.mxu0 %v942
        %968 = vmatpush.msra.mxu0 %v941
        %969 = vmatpush.msra.mxu0 %v940
        %970 = vmatmul.f32.gmra.mxu0 %v949
        %v971 = vpop.f32.mrf.mxu0
        %v972 = vadd.f32 %v946, %v971
        %973 = vmatmul.f32.gmra.mxu0 %v952
        %v974 = vpop.f32.mrf.mxu0
        %v975 = vadd.f32 %v946, %v974
        %976 = vdwg.mxu0
        %v977 = vadd.f32 %v899, %v972
        %v978 = vadd.f32 %v900, %v975
        %v979 = vld [vmem:[#allocation13] sm:$0xff]
        %v980 = vld [vmem:[#allocation13 + $0x8] sm:$0xff]
        %v981 = vld [vmem:[#allocation13 + $0x10] sm:$0xff]
        %v982 = vld [vmem:[#allocation13 + $0x18] sm:$0xff]
        %983 = vmatpush.msra.mxu0 0.0
        %984 = vmatpush.msra.mxu0 0.0
        %985 = vmatpush.msra.mxu0 0.0
        %986 = vmatpush.msra.mxu0 0.0
        %987 = vmatpush.msra.mxu0 0.0
        %988 = vmatpush.msra.mxu0 0.0
        %989 = vmatpush.msra.mxu0 0.0
        %990 = vmatpush.msra.mxu0 0.0
        %991 = vmatpush.msra.mxu0 0.0
        %992 = vmatpush.msra.mxu0 0.0
        %993 = vmatpush.msra.mxu0 0.0
        %994 = vmatpush.msra.mxu0 0.0
        %995 = vmatpush.msra.mxu0 %v982
        %996 = vmatpush.msra.mxu0 %v981
        %997 = vmatpush.msra.mxu0 %v980
        %998 = vmatpush.msra.mxu0 %v979
        %999 = vmatmul.f32.gmra.mxu0 %v546
        %v1000 = vpop.f32.mrf.mxu0
        %v1001 = vadd.f32 0.0, %v1000
        %1002 = vmatmul.f32.gmra.mxu0 %v549
        %v1003 = vpop.f32.mrf.mxu0
        %v1004 = vadd.f32 0.0, %v1003
        %1005 = vmatmul.f32.gmra.mxu0 %v572
        %v1006 = vpop.f32.mrf.mxu0
        %v1007 = vadd.f32 0.0, %v1006
        %1008 = vmatmul.f32.gmra.mxu0 %v575
        %v1009 = vpop.f32.mrf.mxu0
        %v1010 = vadd.f32 0.0, %v1009
        %1011 = vdwg.mxu0
        %v1012 = vld [vmem:[#allocation14] sm:$0xff]
        %v1013 = vld [vmem:[#allocation14 + $0x8] sm:$0xff]
        %v1014 = vld [vmem:[#allocation14 + $0x10] sm:$0xff]
        %v1015 = vld [vmem:[#allocation14 + $0x18] sm:$0xff]
        %v1017 = vsel %vm541, %v977, 0
        %v1020 = vsel %vm541, %v978, 0
        %1022 = vmatpush.msra.mxu0 0.0
        %1023 = vmatpush.msra.mxu0 0.0
        %1024 = vmatpush.msra.mxu0 0.0
        %1025 = vmatpush.msra.mxu0 0.0
        %1026 = vmatpush.msra.mxu0 0.0
        %1027 = vmatpush.msra.mxu0 0.0
        %1028 = vmatpush.msra.mxu0 0.0
        %1029 = vmatpush.msra.mxu0 0.0
        %1030 = vmatpush.msra.mxu0 0.0
        %1031 = vmatpush.msra.mxu0 0.0
        %1032 = vmatpush.msra.mxu0 0.0
        %1033 = vmatpush.msra.mxu0 0.0
        %1034 = vmatpush.msra.mxu0 %v1015
        %1035 = vmatpush.msra.mxu0 %v1014
        %1036 = vmatpush.msra.mxu0 %v1013
        %1037 = vmatpush.msra.mxu0 %v1012
        %1038 = vmatmul.f32.gmra.mxu0 %v1017
        %v1039 = vpop.f32.mrf.mxu0
        %v1040 = vadd.f32 0.0, %v1039
        %1041 = vmatmul.f32.gmra.mxu0 %v1020
        %v1042 = vpop.f32.mrf.mxu0
        %v1043 = vadd.f32 0.0, %v1042
        %1044 = vdwg.mxu0
        %v1046 = vsel %vm541, %v1001, 0
        %v1049 = vsel %vm541, %v1004, 0
        %v1052 = vsel %vm541, %v1040, 0
        %1054 = vmatpush.xpose.msra.mxu0 0.0
        %1055 = vmatpush.xpose.msra.mxu0 0.0
        %1056 = vmatpush.xpose.msra.mxu0 0.0
        %1057 = vmatpush.xpose.msra.mxu0 0.0
        %1058 = vmatpush.xpose.msra.mxu0 0.0
        %1059 = vmatpush.xpose.msra.mxu0 0.0
        %1060 = vmatpush.xpose.msra.mxu0 0.0
        %1061 = vmatpush.xpose.msra.mxu0 0.0
        %1062 = vmatpush.xpose.msra.mxu0 0.0
        %1063 = vmatpush.xpose.msra.mxu0 0.0
        %1064 = vmatpush.xpose.msra.mxu0 0.0
        %1065 = vmatpush.xpose.msra.mxu0 0.0
        %1066 = vmatpush.xpose.msra.mxu0 0.0
        %1067 = vmatpush.xpose.msra.mxu0 0.0
        %1068 = vmatpush.xpose.msra.mxu0 0.0
        %1069 = vmatpush.xpose.msra.mxu0 %v1052
        %1070 = vmatmul.f32.gmra.mxu0 %v1046
        %v1071 = vpop.f32.mrf.mxu0
        %v1072 = vadd.f32 0.0, %v1071
        %1073 = vmatmul.f32.gmra.mxu0 %v1049
        %v1074 = vpop.f32.mrf.mxu0
        %v1075 = vadd.f32 0.0, %v1074
        %1076 = vdwg.mxu0
        %v1078 = vsel %vm541, %v1007, 0
        %v1081 = vsel %vm541, %v1010, 0
        %v1084 = vsel %vm541, %v1043, 0
        %1086 = vmatpush.xpose.msra.mxu0 0.0
        %1087 = vmatpush.xpose.msra.mxu0 0.0
        %1088 = vmatpush.xpose.msra.mxu0 0.0
        %1089 = vmatpush.xpose.msra.mxu0 0.0
        %1090 = vmatpush.xpose.msra.mxu0 0.0
        %1091 = vmatpush.xpose.msra.mxu0 0.0
        %1092 = vmatpush.xpose.msra.mxu0 0.0
        %1093 = vmatpush.xpose.msra.mxu0 0.0
        %1094 = vmatpush.xpose.msra.mxu0 0.0
        %1095 = vmatpush.xpose.msra.mxu0 0.0
        %1096 = vmatpush.xpose.msra.mxu0 0.0
        %1097 = vmatpush.xpose.msra.mxu0 0.0
        %1098 = vmatpush.xpose.msra.mxu0 0.0
        %1099 = vmatpush.xpose.msra.mxu0 0.0
        %1100 = vmatpush.xpose.msra.mxu0 0.0
        %1101 = vmatpush.xpose.msra.mxu0 %v1084
        %1102 = vmatmul.f32.gmra.mxu0 %v1078
        %v1103 = vpop.f32.mrf.mxu0
        %v1104 = vadd.f32 0.0, %v1103
        %1105 = vmatmul.f32.gmra.mxu0 %v1081
        %v1106 = vpop.f32.mrf.mxu0
        %v1107 = vadd.f32 0.0, %v1106
        %1108 = vdwg.mxu0
        %v1109 = vsel %vm804, %v1072, -inf
        %1110 = vmax.xlane.f32.xlu0 %v1109
        %v1111 = vpop.xlane.xlu0 %1110
        %v1112 = vsel %vm804, %v1075, -inf
        %1113 = vmax.xlane.f32.xlu0 %v1112
        %v1114 = vpop.xlane.xlu0 %1113
        %v1115 = vsel %vm804, %v1104, -inf
        %1116 = vmax.xlane.f32.xlu0 %v1115
        %v1117 = vpop.xlane.xlu0 %1116
        %v1118 = vsel %vm804, %v1107, -inf
        %1119 = vmax.xlane.f32.xlu0 %v1118
        %v1120 = vpop.xlane.xlu0 %1119
        %v1121 = vsub.f32 %v1072, %v1111
        %v1122 = vsub.f32 %v1075, %v1114
        %v1123 = vsub.f32 %v1104, %v1117
        %v1124 = vsub.f32 %v1107, %v1120
        %v1125 = vmul.f32 %v1121, 1.442695
        %v1126 = vpow.pop %v1125
        %v1127 = vmul.f32 %v1122, 1.442695
        %v1128 = vpow.pop %v1127
        %v1129 = vmul.f32 %v1123, 1.442695
        %v1130 = vpow.pop %v1129
        %v1131 = vmul.f32 %v1124, 1.442695
        %v1132 = vpow.pop %v1131
        %v1133 = vsel %vm804, %v1126, 0.0
        %1134 = vadd.xlane.f32.xlu0 %v1133
        %v1135 = vpop.xlane.xlu0 %1134
        %v1136 = vsel %vm804, %v1128, 0.0
        %1137 = vadd.xlane.f32.xlu0 %v1136
        %v1138 = vpop.xlane.xlu0 %1137
        %v1139 = vsel %vm804, %v1130, 0.0
        %1140 = vadd.xlane.f32.xlu0 %v1139
        %v1141 = vpop.xlane.xlu0 %1140
        %v1142 = vsel %vm804, %v1132, 0.0
        %1143 = vadd.xlane.f32.xlu0 %v1142
        %v1144 = vpop.xlane.xlu0 %1143
        %v1145 = vrcp.pop %v1135
        %v1146 = vmul.f32 %v1135, %v1145
        %v1147 = vsub.f32 1.0, %v1146
        %v1148 = vmul.f32 %v1145, %v1147
        %v1149 = vadd.f32 %v1145, %v1148
        %vm1150 = vweird.f32 %v1135
        %vm1151 = vweird.f32 %v1145
        %vm1152 = vmor %vm1150, %vm1151
        %v1153 = vsel %vm1152, %v1145, %v1149
        %v1154 = vand.u32 2147483647, %v1135
        %vm1155 = vcmp.eq.f32.partialorder %v1154, 8.507059e+37
        %v1156 = vand.u32 %v1135, 2147483648
        %v1157 = vor.u32 1.1754944e-38, %v1156
        %v1158 = vsel %vm1155, %v1157, %v1153
        %v1159 = vrcp.pop %v1138
        %v1160 = vmul.f32 %v1138, %v1159
        %v1161 = vsub.f32 1.0, %v1160
        %v1162 = vmul.f32 %v1159, %v1161
        %v1163 = vadd.f32 %v1159, %v1162
        %vm1164 = vweird.f32 %v1138
        %vm1165 = vweird.f32 %v1159
        %vm1166 = vmor %vm1164, %vm1165
        %v1167 = vsel %vm1166, %v1159, %v1163
        %v1168 = vand.u32 2147483647, %v1138
        %vm1169 = vcmp.eq.f32.partialorder %v1168, 8.507059e+37
        %v1170 = vand.u32 %v1138, 2147483648
        %v1171 = vor.u32 1.1754944e-38, %v1170
        %v1172 = vsel %vm1169, %v1171, %v1167
        %v1173 = vrcp.pop %v1141
        %v1174 = vmul.f32 %v1141, %v1173
        %v1175 = vsub.f32 1.0, %v1174
        %v1176 = vmul.f32 %v1173, %v1175
        %v1177 = vadd.f32 %v1173, %v1176
        %vm1178 = vweird.f32 %v1141
        %vm1179 = vweird.f32 %v1173
        %vm1180 = vmor %vm1178, %vm1179
        %v1181 = vsel %vm1180, %v1173, %v1177
        %v1182 = vand.u32 2147483647, %v1141
        %vm1183 = vcmp.eq.f32.partialorder %v1182, 8.507059e+37
        %v1184 = vand.u32 %v1141, 2147483648
        %v1185 = vor.u32 1.1754944e-38, %v1184
        %v1186 = vsel %vm1183, %v1185, %v1181
        %v1187 = vrcp.pop %v1144
        %v1188 = vmul.f32 %v1144, %v1187
        %v1189 = vsub.f32 1.0, %v1188
        %v1190 = vmul.f32 %v1187, %v1189
        %v1191 = vadd.f32 %v1187, %v1190
        %vm1192 = vweird.f32 %v1144
        %vm1193 = vweird.f32 %v1187
        %vm1194 = vmor %vm1192, %vm1193
        %v1195 = vsel %vm1194, %v1187, %v1191
        %v1196 = vand.u32 2147483647, %v1144
        %vm1197 = vcmp.eq.f32.partialorder %v1196, 8.507059e+37
        %v1198 = vand.u32 %v1144, 2147483648
        %v1199 = vor.u32 1.1754944e-38, %v1198
        %v1200 = vsel %vm1197, %v1199, %v1195
        %v1201 = vmul.f32 %v1126, %v1158
        %v1202 = vmul.f32 %v1128, %v1172
        %v1203 = vmul.f32 %v1130, %v1186
        %v1204 = vmul.f32 %v1132, %v1200
        %v1206 = vsel %vm804, %v1201, 0
        %v1209 = vsel %vm804, %v1202, 0
        %1211 = vmatpush.msra.mxu0 0.0
        %1212 = vmatpush.msra.mxu0 0.0
        %1213 = vmatpush.msra.mxu0 0.0
        %1214 = vmatpush.msra.mxu0 0.0
        %1215 = vmatpush.msra.mxu0 0.0
        %1216 = vmatpush.msra.mxu0 0.0
        %1217 = vmatpush.msra.mxu0 0.0
        %1218 = vmatpush.msra.mxu0 0.0
        %1219 = vmatpush.msra.mxu0 0.0
        %1220 = vmatpush.msra.mxu0 0.0
        %1221 = vmatpush.msra.mxu0 0.0
        %1222 = vmatpush.msra.mxu0 0.0
        %1223 = vmatpush.msra.mxu0 0.0
        %1224 = vmatpush.msra.mxu0 0.0
        %1225 = vmatpush.msra.mxu0 0.0
        %1226 = vmatpush.msra.mxu0 %v977
        %1227 = vmatmul.f32.gmra.mxu0 %v1206
        %v1228 = vpop.f32.mrf.mxu0
        %v1229 = vadd.f32 0.0, %v1228
        %1230 = vmatmul.f32.gmra.mxu0 %v1209
        %v1231 = vpop.f32.mrf.mxu0
        %v1232 = vadd.f32 0.0, %v1231
        %1233 = vdwg.mxu0
        %v1235 = vsel %vm804, %v1203, 0
        %v1238 = vsel %vm804, %v1204, 0
        %1240 = vmatpush.msra.mxu0 0.0
        %1241 = vmatpush.msra.mxu0 0.0
        %1242 = vmatpush.msra.mxu0 0.0
        %1243 = vmatpush.msra.mxu0 0.0
        %1244 = vmatpush.msra.mxu0 0.0
        %1245 = vmatpush.msra.mxu0 0.0
        %1246 = vmatpush.msra.mxu0 0.0
        %1247 = vmatpush.msra.mxu0 0.0
        %1248 = vmatpush.msra.mxu0 0.0
        %1249 = vmatpush.msra.mxu0 0.0
        %1250 = vmatpush.msra.mxu0 0.0
        %1251 = vmatpush.msra.mxu0 0.0
        %1252 = vmatpush.msra.mxu0 0.0
        %1253 = vmatpush.msra.mxu0 0.0
        %1254 = vmatpush.msra.mxu0 0.0
        %1255 = vmatpush.msra.mxu0 %v978
        %1256 = vmatmul.f32.gmra.mxu0 %v1235
        %v1257 = vpop.f32.mrf.mxu0
        %v1258 = vadd.f32 0.0, %v1257
        %1259 = vmatmul.f32.gmra.mxu0 %v1238
        %v1260 = vpop.f32.mrf.mxu0
        %v1261 = vadd.f32 0.0, %v1260
        %1262 = vdwg.mxu0
        %v1263 = vadd.f32 %v536, %v1229
        %v1264 = vadd.f32 %v537, %v1232
        %v1265 = vadd.f32 %v538, %v1258
        %v1266 = vadd.f32 %v539, %v1261
        %1267 = vst.msk [vmem:[%s525] sm:$0xff] %vm541, %v1263
        %1268 = vst.msk [vmem:[%s525 + $0x8] sm:$0xff] %vm541, %v1264
        %1269 = vst.msk [vmem:[%s525 + $0x10] sm:$0xff] %vm541, %v1265
        %1270 = vst.msk [vmem:[%s525 + $0x18] sm:$0xff] %vm541, %v1266
        %1271 = vst.msk [vmem:[%s532] sm:$0xff] %vm541, %v977
        %1272 = vst.msk [vmem:[%s532 + $0x8] sm:$0xff] %vm541, %v978
        %s1273 = sand.u32 %s259, 1
        %s1274 = scalar_lea.sflag [#allocation4], %s1273
        %s1275 = sand.u32 %s259, 1
        %s1276 = smul.addr %s1275, 32
        %s1277 = scalar_lea.vmem [#allocation16], %s1276
        %s1278 = sand.u32 %s285, 1
        %s1279 = scalar_lea.sflag [#allocation18], %s1278
        %s1280 = sand.u32 %s285, 1
        %s1281 = smul.addr %s1280, 16
        %s1282 = scalar_lea.vmem [#allocation17], %s1281
        // Predicated region
        $region93: #{tpu_custom_call.1} parent=59 // pred_check
          %p1283 = pneg %p269
        $region94: #{tpu_custom_call.1} parent=59 // pred_check_branch
          %1285 = sbr.rel (%p1283) target = $region96
        $region95: #{tpu_custom_call.1} parent=59 // pred_region
          %s1286 = smul.u32 2, %s36
          %1288 = vsyncadd %s1274, 0
          %s1289 = smul.addr %s1286, 2
          %s1290 = smul.addr %s1289, 8
          %s1291 = scalar_lea.hbm %s10, %s1290
          %s1292 = sshll.u32 %s1277, 4
          %s1293 = int_to_ptr.vmem [resolvable:$true] %s1292
          %s1294 = sshll.u32 %s1291, 4
          %s1295 = int_to_ptr.hbm [resolvable:$true] %s1294
          %1300 = dma.vmem_to_hbm [thread:$0]  %s1293, 512, %s1295, %s1274, 128, 128, 8
        $region96: #{tpu_custom_call.1} parent=59 // pred_fallthru
          _
        // Predicated region
        $region97: #{tpu_custom_call.1} parent=59 // pred_check
          %p1301 = pneg %p295
        $region98: #{tpu_custom_call.1} parent=59 // pred_check_branch
          %1303 = sbr.rel (%p1301) target = $region100
        $region99: #{tpu_custom_call.1} parent=59 // pred_region
          %s1304 = smul.u32 2, %s36
          %1306 = vsyncadd %s1279, 0
          %s1307 = smul.addr %s1304, 8
          %s1308 = scalar_lea.hbm %s11, %s1307
          %s1309 = sshll.u32 %s1282, 4
          %s1310 = int_to_ptr.vmem [resolvable:$true] %s1309
          %s1311 = sshll.u32 %s1308, 4
          %s1312 = int_to_ptr.hbm [resolvable:$true] %s1311
          %1317 = dma.vmem_to_hbm [thread:$0]  %s1310, 256, %s1312, %s1279, 128, 128, 8
        $region100: #{tpu_custom_call.1} parent=59 // pred_fallthru
          _
      $region60: #{tpu_custom_call.1} parent=5 // pred_fallthru
        _
      %p1318 = scmp.le.s32.totalorder 2, %s31
      // Predicated region
      $region101: #{tpu_custom_call.1} parent=5 // pred_check
        %p1319 = pneg %p1318
      $region102: #{tpu_custom_call.1} parent=5 // pred_check_branch
        %1321 = sbr.rel (%p1319) target = $region104
      $region103: #{tpu_custom_call.1} parent=5 // pred_region
        %s1322 = ssub.s32 %s31, 2
        // Predicated region
        $region105: #{tpu_custom_call.1} parent=103 // pred_check
          %p1323 = pneg %p275
        $region106: #{tpu_custom_call.1} parent=103 // pred_check_branch
          %1325 = sbr.rel (%p1323) target = $region108
        $region107: #{tpu_custom_call.1} parent=103 // pred_region
          %s1326 = sand.u32 %s260, 1
          %s1327 = scalar_lea.sflag [#allocation4], %s1326
          %s1328 = sand.u32 %s260, 1
          %s1329 = smul.addr %s1328, 32
          %s1330 = scalar_lea.vmem [#allocation16], %s1329
          %1332 = dma.done %s1327, 512
        $region108: #{tpu_custom_call.1} parent=103 // pred_fallthru
          _
        // Predicated region
        $region109: #{tpu_custom_call.1} parent=103 // pred_check
          %p1333 = pneg %p301
        $region110: #{tpu_custom_call.1} parent=103 // pred_check_branch
          %1335 = sbr.rel (%p1333) target = $region112
        $region111: #{tpu_custom_call.1} parent=103 // pred_region
          %s1336 = sand.u32 %s286, 1
          %s1337 = scalar_lea.sflag [#allocation18], %s1336
          %s1338 = sand.u32 %s286, 1
          %s1339 = smul.addr %s1338, 16
          %s1340 = scalar_lea.vmem [#allocation17], %s1339
          %1342 = dma.done %s1337, 256
        $region112: #{tpu_custom_call.1} parent=103 // pred_fallthru
          _
      $region104: #{tpu_custom_call.1} parent=5 // pred_fallthru
        _
    $region6: #{tpu_custom_call.1} parent=1 // loop_footer
      %s35 = sadd.s32 1, %s31
    $region7: #{tpu_custom_call.1} parent=1 // loop_footer_branch
      %30 = sbr.rel target = $region3
    $region8: #{tpu_custom_call.1} parent=1 // loop_exit
      _
    %1343 = vsyncpa [#allocation3], 1
    %s1344 = scalar_lea.sflag [#allocation3], 1
    %1345 = vsyncpa %s1344, 1
    %1346 = vsyncpa [#allocation6], 1
    %1347 = vsyncpa [#allocation9], 1
    %1348 = vsyncpa [#allocation12], 1
    %1349 = vsyncpa [#allocation15], 1
    %1350 = vsyncpa [#allocation4], 1
    %s1351 = scalar_lea.sflag [#allocation4], 1
    %1352 = vsyncpa %s1351, 1
    %1353 = vsyncpa [#allocation18], 1
    %s1354 = scalar_lea.sflag [#allocation18], 1
    %1355 = vsyncpa %s1354, 1

// kernel: tpu_custom_call.1
$region0: #{tpu_custom_call.1}
  #allocation0 [shape = 'u32[]', space=smem, size = 0x4, offset = 0x4, fixed_abs, tag = 'smem constant byte address 0x4 - core index']
  #allocation1 [shape = 'u32[72,128]{1,0:T(1,128)}', space=vmem, size = 0x9000, scoped, tag = 'internal scratch']
  %s0 = inlined_call_operand.hbm [shape: f32[4,16,32], index: 0, kind: input, shape index: {}]
  %s1 = inlined_call_operand.hbm [shape: f32[8,32], index: 1, kind: input, shape index: {}]
  %s2 = inlined_call_operand.hbm [shape: f32[32,32], index: 2, kind: input, shape index: {}]
  %s3 = inlined_call_operand.hbm [shape: f32[32,32], index: 3, kind: input, shape index: {}]
  %s4 = inlined_call_operand.hbm [shape: f32[32,32], index: 4, kind: input, shape index: {}]
  %s5 = inlined_call_operand.vmem [shape: f32[1,32], index: 5, kind: input, shape index: {}]
  %s6 = inlined_call_operand.hbm [shape: f32[32,32], index: 6, kind: input, shape index: {}]
  %s7 = inlined_call_operand.vmem [shape: f32[1,32], index: 7, kind: input, shape index: {}]
  %s8 = inlined_call_operand.hbm [shape: f32[32,32], index: 8, kind: input, shape index: {}]
  %s9 = inlined_call_operand.hbm [shape: f32[32,32], index: 9, kind: input, shape index: {}]
  %s10 = inlined_call_operand.hbm [shape: f32[4,16,32], index: 10, kind: output, shape index: {0}]
  %s11 = inlined_call_operand.hbm [shape: f32[4,8,32], index: 11, kind: output, shape index: {1}]
  %12 = xla_tuple %s10, %s11
  %s13 = sld [smem:[#allocation0]]
  $region113: #{tpu_custom_call.1} parent=0
    _
  %s15 = ssub.s32 1, %s13
  %s16 = scalar_select 0, %s15, %s13
  $region1: #{tpu_custom_call.1} parent=0
    #allocation2 [shape = 'u8[32768]{0}', space=vmem, size = 0x8000, scoped, tag = 'input window, operand 0']
    #allocation3 [shape = 's32[2]{0}', space=sflag, size = 0x8, scoped, tag = 'scoped memory for tpu_custom_call.1']
    #allocation4 [shape = 's32[2]{0}', space=sflag, size = 0x8, scoped, tag = 'scoped memory for tpu_custom_call.1']
    #allocation5 [shape = 'u8[4096]{0}', space=vmem, size = 0x1000, scoped, tag = 'input window, operand 1, single buffered']
    #allocation6 [shape = 's32[1]{0}', space=sflag, size = 0x4, scoped, tag = 'scoped memory for tpu_custom_call.1']
    #allocation7 [shape = 'u8[16384]{0}', space=vmem, size = 0x4000, scoped, tag = 'input window, operand 2, single buffered']
    #allocation8 [shape = 'u8[16384]{0}', space=vmem, size = 0x4000, scoped, tag = 'input window, operand 3, single buffered']
    #allocation9 [shape = 's32[1]{0}', space=sflag, size = 0x4, scoped, tag = 'scoped memory for tpu_custom_call.1']
    #allocation10 [shape = 'u8[16384]{0}', space=vmem, size = 0x4000, scoped, tag = 'input window, operand 4, single buffered']
    #allocation11 [shape = 'u8[16384]{0}', space=vmem, size = 0x4000, scoped, tag = 'input window, operand 6, single buffered']
    #allocation12 [shape = 's32[1]{0}', space=sflag, size = 0x4, scoped, tag = 'scoped memory for tpu_custom_call.1']
    #allocation13 [shape = 'u8[16384]{0}', space=vmem, size = 0x4000, scoped, tag = 'input window, operand 8, single buffered']
    #allocation14 [shape = 'u8[16384]{0}', space=vmem, size = 0x4000, scoped, tag = 'input window, operand 9, single buffered']
    #allocation15 [shape = 's32[1]{0}', space=sflag, size = 0x4, scoped, tag = 'scoped memory for tpu_custom_call.1']
    #allocation16 [shape = 'u8[32768]{0}', space=vmem, size = 0x8000, scoped, tag = 'output window, operand 0']
    #allocation17 [shape = 'u8[16384]{0}', space=vmem, size = 0x4000, scoped, tag = 'output window, operand 1']
    #allocation18 [shape = 's32[2]{0}', space=sflag, size = 0x8, scoped, tag = 'scoped memory for tpu_custom_call.1']
    %17 = vsyncpa [#allocation3], 0
    %s18 = scalar_lea.sflag [#allocation3], 1
    %19 = vsyncpa %s18, 0
    %20 = vsyncpa [#allocation6], 0
    %21 = vsyncpa [#allocation9], 0
    %22 = vsyncpa [#allocation12], 0
    %23 = vsyncpa [#allocation15], 0
    %24 = vsyncpa [#allocation4], 0
    %s25 = scalar_lea.sflag [#allocation4], 1
    %26 = vsyncpa %s25, 0
    %27 = vsyncpa [#allocation18], 0
    %s28 = scalar_lea.sflag [#allocation18], 1
    %29 = vsyncpa %s28, 0
    loop: start=0, step=1, limit=4
    $region2: #{tpu_custom_call.1} parent=1 // loop_pre_header
      _
    $region3: #{tpu_custom_call.1} parent=1 // loop_header
      %s31 = sphi 0, %s35
      %p32 = scmp.ge.s32.totalorder %s31, 4
      %s41 = sphi 0, %s43
      %s44 = sphi 0, %s41
      %s45 = sphi 0, %s44
      %s61 = sphi 0, %s45
      %s65 = sphi 0, %s65
      %s67 = sphi 0, %s65
      %s68 = sphi 0, %s67
      %s82 = sphi 0, %s68
      %s86 = sphi 0, %s86
      %s88 = sphi 0, %s86
      %s89 = sphi 0, %s88
      %s103 = sphi 0, %s89
      %s107 = sphi 0, %s107
      %s109 = sphi 0, %s107
      %s110 = sphi 0, %s109
      %s124 = sphi 0, %s110
      %s128 = sphi 0, %s128
      %s130 = sphi 0, %s128
      %s131 = sphi 0, %s130
      %s145 = sphi 0, %s131
      %s149 = sphi 0, %s149
      %s151 = sphi 0, %s149
      %s152 = sphi 0, %s151
      %s166 = sphi 0, %s152
      %s170 = sphi 0, %s170
      %s172 = sphi 0, %s170
      %s173 = sphi 0, %s172
      %s187 = sphi 0, %s173
      %s191 = sphi 0, %s191
      %s193 = sphi 0, %s191
      %s194 = sphi 0, %s193
      %s208 = sphi 0, %s194
      %s212 = sphi 0, %s212
      %s214 = sphi 0, %s212
      %s215 = sphi 0, %s214
      %s229 = sphi 0, %s215
      %s233 = sphi 0, %s233
      %s235 = sphi 0, %s233
      %s236 = sphi 0, %s235
      %s250 = sphi 0, %s236
      %s256 = sphi 0, %s258
      %s259 = sphi 0, %s256
      %s260 = sphi 0, %s259
      %s276 = sphi 0, %s260
      %s282 = sphi 0, %s284
      %s285 = sphi 0, %s282
      %s286 = sphi 0, %s285
      %s302 = sphi 0, %s286
    $region4: #{tpu_custom_call.1} parent=1 // loop_header_branch
      %34 = sbr.rel (%p32) target = $region8
    $region5: #{tpu_custom_call.1} parent=1 // loop_body
      %s36 = ssub.s32 %s31, 1
      %s37 = ssub.s32 %s31, 2
      %s38 = sadd.s32 %s31, 1
      %s39 = ssub.s32 %s31, %s38
      %p40 = scmp.eq.s32.totalorder %s39, 0
      %s42 = sadd.s32 %s41, 1
      %s43 = scalar_select %p40, %s41, %s42
      %p46 = pneg %p40
      %p47 = scmp.eq.s32.totalorder %s31, 1
      %p48 = por %p46, %p47
      %p49 = scmp.ne.s32.totalorder %s41, %s44
      %p50 = scmp.eq.s32.totalorder %s31, 0
      %p51 = por %p49, %p50
      %p52 = scmp.ne.s32.totalorder %s41, %s44
      %p53 = scmp.eq.s32.totalorder %s36, 1
      %p54 = por %p52, %p53
      %p55 = scmp.ne.s32.totalorder %s44, %s45
      %p56 = scmp.eq.s32.totalorder %s36, 0
      %p57 = por %p55, %p56
      %p58 = scmp.ne.s32.totalorder %s44, %s45
      %p59 = scmp.eq.s32.totalorder %s37, 1
      %p60 = por %p58, %p59
      %p62 = scmp.ne.s32.totalorder %s45, %s61
      %p63 = scmp.eq.s32.totalorder %s37, 0
      %p64 = por %p62, %p63
      %s66 = sadd.s32 %s65, 1
      %p69 = scmp.eq.s32.totalorder %s31, 1
      %p70 = scmp.ne.s32.totalorder %s65, %s67
      %p71 = scmp.eq.s32.totalorder %s31, 0
      %p72 = por %p70, %p71
      %p73 = scmp.ne.s32.totalorder %s65, %s67
      %p74 = scmp.eq.s32.totalorder %s36, 1
      %p75 = por %p73, %p74
      %p76 = scmp.ne.s32.totalorder %s67, %s68
      %p77 = scmp.eq.s32.totalorder %s36, 0
      %p78 = por %p76, %p77
      %p79 = scmp.ne.s32.totalorder %s67, %s68
      %p80 = scmp.eq.s32.totalorder %s37, 1
      %p81 = por %p79, %p80
      %p83 = scmp.ne.s32.totalorder %s68, %s82
      %p84 = scmp.eq.s32.totalorder %s37, 0
      %p85 = por %p83, %p84
      %s87 = sadd.s32 %s86, 1
      %p90 = scmp.eq.s32.totalorder %s31, 1
      %p91 = scmp.ne.s32.totalorder %s86, %s88
      %p92 = scmp.eq.s32.totalorder %s31, 0
      %p93 = por %p91, %p92
      %p94 = scmp.ne.s32.totalorder %s86, %s88
      %p95 = scmp.eq.s32.totalorder %s36, 1
      %p96 = por %p94, %p95
      %p97 = scmp.ne.s32.totalorder %s88, %s89
      %p98 = scmp.eq.s32.totalorder %s36, 0
      %p99 = por %p97, %p98
      %p100 = scmp.ne.s32.totalorder %s88, %s89
      %p101 = scmp.eq.s32.totalorder %s37, 1
      %p102 = por %p100, %p101
      %p104 = scmp.ne.s32.totalorder %s89, %s103
      %p105 = scmp.eq.s32.totalorder %s37, 0
      %p106 = por %p104, %p105
      %s108 = sadd.s32 %s107, 1
      %p111 = scmp.eq.s32.totalorder %s31, 1
      %p112 = scmp.ne.s32.totalorder %s107, %s109
      %p113 = scmp.eq.s32.totalorder %s31, 0
      %p114 = por %p112, %p113
      %p115 = scmp.ne.s32.totalorder %s107, %s109
      %p116 = scmp.eq.s32.totalorder %s36, 1
      %p117 = por %p115, %p116
      %p118 = scmp.ne.s32.totalorder %s109, %s110
      %p119 = scmp.eq.s32.totalorder %s36, 0
      %p120 = por %p118, %p119
      %p121 = scmp.ne.s32.totalorder %s109, %s110
      %p122 = scmp.eq.s32.totalorder %s37, 1
      %p123 = por %p121, %p122
      %p125 = scmp.ne.s32.totalorder %s110, %s124
      %p126 = scmp.eq.s32.totalorder %s37, 0
      %p127 = por %p125, %p126
      %s129 = sadd.s32 %s128, 1
      %p132 = scmp.eq.s32.totalorder %s31, 1
      %p133 = scmp.ne.s32.totalorder %s128, %s130
      %p134 = scmp.eq.s32.totalorder %s31, 0
      %p135 = por %p133, %p134
      %p136 = scmp.ne.s32.totalorder %s128, %s130
      %p137 = scmp.eq.s32.totalorder %s36, 1
      %p138 = por %p136, %p137
      %p139 = scmp.ne.s32.totalorder %s130, %s131
      %p140 = scmp.eq.s32.totalorder %s36, 0
      %p141 = por %p139, %p140
      %p142 = scmp.ne.s32.totalorder %s130, %s131
      %p143 = scmp.eq.s32.totalorder %s37, 1
      %p144 = por %p142, %p143
      %p146 = scmp.ne.s32.totalorder %s131, %s145
      %p147 = scmp.eq.s32.totalorder %s37, 0
      %p148 = por %p146, %p147
      %s150 = sadd.s32 %s149, 1
      %p153 = scmp.eq.s32.totalorder %s31, 1
      %p154 = scmp.ne.s32.totalorder %s149, %s151
      %p155 = scmp.eq.s32.totalorder %s31, 0
      %p156 = por %p154, %p155
      %p157 = scmp.ne.s32.totalorder %s149, %s151
      %p158 = scmp.eq.s32.totalorder %s36, 1
      %p159 = por %p157, %p158
      %p160 = scmp.ne.s32.totalorder %s151, %s152
      %p161 = scmp.eq.s32.totalorder %s36, 0
      %p162 = por %p160, %p161
      %p163 = scmp.ne.s32.totalorder %s151, %s152
      %p164 = scmp.eq.s32.totalorder %s37, 1
      %p165 = por %p163, %p164
      %p167 = scmp.ne.s32.totalorder %s152, %s166
      %p168 = scmp.eq.s32.totalorder %s37, 0
      %p169 = por %p167, %p168
      %s171 = sadd.s32 %s170, 1
      %p174 = scmp.eq.s32.totalorder %s31, 1
      %p175 = scmp.ne.s32.totalorder %s170, %s172
      %p176 = scmp.eq.s32.totalorder %s31, 0
      %p177 = por %p175, %p176
      %p178 = scmp.ne.s32.totalorder %s170, %s172
      %p179 = scmp.eq.s32.totalorder %s36, 1
      %p180 = por %p178, %p179
      %p181 = scmp.ne.s32.totalorder %s172, %s173
      %p182 = scmp.eq.s32.totalorder %s36, 0
      %p183 = por %p181, %p182
      %p184 = scmp.ne.s32.totalorder %s172, %s173
      %p185 = scmp.eq.s32.totalorder %s37, 1
      %p186 = por %p184, %p185
      %p188 = scmp.ne.s32.totalorder %s173, %s187
      %p189 = scmp.eq.s32.totalorder %s37, 0
      %p190 = por %p188, %p189
      %s192 = sadd.s32 %s191, 1
      %p195 = scmp.eq.s32.totalorder %s31, 1
      %p196 = scmp.ne.s32.totalorder %s191, %s193
      %p197 = scmp.eq.s32.totalorder %s31, 0
      %p198 = por %p196, %p197
      %p199 = scmp.ne.s32.totalorder %s191, %s193
      %p200 = scmp.eq.s32.totalorder %s36, 1
      %p201 = por %p199, %p200
      %p202 = scmp.ne.s32.totalorder %s193, %s194
      %p203 = scmp.eq.s32.totalorder %s36, 0
      %p204 = por %p202, %p203
      %p205 = scmp.ne.s32.totalorder %s193, %s194
      %p206 = scmp.eq.s32.totalorder %s37, 1
      %p207 = por %p205, %p206
      %p209 = scmp.ne.s32.totalorder %s194, %s208
      %p210 = scmp.eq.s32.totalorder %s37, 0
      %p211 = por %p209, %p210
      %s213 = sadd.s32 %s212, 1
      %p216 = scmp.eq.s32.totalorder %s31, 1
      %p217 = scmp.ne.s32.totalorder %s212, %s214
      %p218 = scmp.eq.s32.totalorder %s31, 0
      %p219 = por %p217, %p218
      %p220 = scmp.ne.s32.totalorder %s212, %s214
      %p221 = scmp.eq.s32.totalorder %s36, 1
      %p222 = por %p220, %p221
      %p223 = scmp.ne.s32.totalorder %s214, %s215
      %p224 = scmp.eq.s32.totalorder %s36, 0
      %p225 = por %p223, %p224
      %p226 = scmp.ne.s32.totalorder %s214, %s215
      %p227 = scmp.eq.s32.totalorder %s37, 1
      %p228 = por %p226, %p227
      %p230 = scmp.ne.s32.totalorder %s215, %s229
      %p231 = scmp.eq.s32.totalorder %s37, 0
      %p232 = por %p230, %p231
      %s234 = sadd.s32 %s233, 1
      %p237 = scmp.eq.s32.totalorder %s31, 1
      %p238 = scmp.ne.s32.totalorder %s233, %s235
      %p239 = scmp.eq.s32.totalorder %s31, 0
      %p240 = por %p238, %p239
      %p241 = scmp.ne.s32.totalorder %s233, %s235
      %p242 = scmp.eq.s32.totalorder %s36, 1
      %p243 = por %p241, %p242
      %p244 = scmp.ne.s32.totalorder %s235, %s236
      %p245 = scmp.eq.s32.totalorder %s36, 0
      %p246 = por %p244, %p245
      %p247 = scmp.ne.s32.totalorder %s235, %s236
      %p248 = scmp.eq.s32.totalorder %s37, 1
      %p249 = por %p247, %p248
      %p251 = scmp.ne.s32.totalorder %s236, %s250
      %p252 = scmp.eq.s32.totalorder %s37, 0
      %p253 = por %p251, %p252
      %s254 = ssub.s32 %s31, %s38
      %p255 = scmp.eq.s32.totalorder %s254, 0
      %s257 = sadd.s32 %s256, 1
      %s258 = scalar_select %p255, %s256, %s257
      %p261 = pneg %p255
      %p262 = scmp.eq.s32.totalorder %s31, 1
      %p263 = por %p261, %p262
      %p264 = scmp.ne.s32.totalorder %s256, %s259
      %p265 = scmp.eq.s32.totalorder %s31, 0
      %p266 = por %p264, %p265
      %p267 = scmp.ne.s32.totalorder %s256, %s259
      %p268 = scmp.eq.s32.totalorder %s36, 1
      %p269 = por %p267, %p268
      %p270 = scmp.ne.s32.totalorder %s259, %s260
      %p271 = scmp.eq.s32.totalorder %s36, 0
      %p272 = por %p270, %p271
      %p273 = scmp.ne.s32.totalorder %s259, %s260
      %p274 = scmp.eq.s32.totalorder %s37, 1
      %p275 = por %p273, %p274
      %p277 = scmp.ne.s32.totalorder %s260, %s276
      %p278 = scmp.eq.s32.totalorder %s37, 0
      %p279 = por %p277, %p278
      %s280 = ssub.s32 %s31, %s38
      %p281 = scmp.eq.s32.totalorder %s280, 0
      %s283 = sadd.s32 %s282, 1
      %s284 = scalar_select %p281, %s282, %s283
      %p287 = pneg %p281
      %p288 = scmp.eq.s32.totalorder %s31, 1
      %p289 = por %p287, %p288
      %p290 = scmp.ne.s32.totalorder %s282, %s285
      %p291 = scmp.eq.s32.totalorder %s31, 0
      %p292 = por %p290, %p291
      %p293 = scmp.ne.s32.totalorder %s282, %s285
      %p294 = scmp.eq.s32.totalorder %s36, 1
      %p295 = por %p293, %p294
      %p296 = scmp.ne.s32.totalorder %s285, %s286
      %p297 = scmp.eq.s32.totalorder %s36, 0
      %p298 = por %p296, %p297
      %p299 = scmp.ne.s32.totalorder %s285, %s286
      %p300 = scmp.eq.s32.totalorder %s37, 1
      %p301 = por %p299, %p300
      %p303 = scmp.ne.s32.totalorder %s286, %s302
      %p304 = scmp.eq.s32.totalorder %s37, 0
      %p305 = por %p303, %p304
      %p306 = scmp.le.s32.totalorder 1, %s31
      %p307 = scmp.lt.s32.totalorder %s31, 3
      %p308 = pnand %p306, %p307
      %p309 = pneg %p308
      // Predicated region
      $region9: #{tpu_custom_call.1} parent=5 // pred_check
        _
      $region10: #{tpu_custom_call.1} parent=5 // pred_check_branch
        %311 = sbr.rel (%p308) target = $region12
      $region11: #{tpu_custom_call.1} parent=5 // pred_region
        %s312 = ssub.s32 %s31, 1
        // Predicated region
        $region13: #{tpu_custom_call.1} parent=11 // pred_check
          %p313 = pneg %p78
        $region14: #{tpu_custom_call.1} parent=11 // pred_check_branch
          %315 = sbr.rel (%p313) target = $region16
        $region15: #{tpu_custom_call.1} parent=11 // pred_region
          %317 = vsyncadd [#allocation6], 0
          %s319 = sshll.u32 %s1, 4
          %s320 = int_to_ptr.hbm [resolvable:$true] %s319
          %s321 = sshll.u32 [#allocation5], 4
          %s322 = int_to_ptr.vmem [resolvable:$true] %s321
          %324 = dma.hbm_to_vmem [thread:$0]  %s320, 128, %s322, [#allocation6]
        $region16: #{tpu_custom_call.1} parent=11 // pred_fallthru
          _
        // Predicated region
        $region17: #{tpu_custom_call.1} parent=11 // pred_check
          %p325 = pneg %p99
        $region18: #{tpu_custom_call.1} parent=11 // pred_check_branch
          %327 = sbr.rel (%p325) target = $region20
        $region19: #{tpu_custom_call.1} parent=11 // pred_region
          %329 = vsyncadd [#allocation6], 0
          %s330 = sshll.u32 %s2, 4
          %s331 = int_to_ptr.hbm [resolvable:$true] %s330
          %s332 = sshll.u32 [#allocation7], 4
          %s333 = int_to_ptr.vmem [resolvable:$true] %s332
          %338 = dma.hbm_to_vmem [thread:$0]  %s331, 512, %s333, [#allocation6], 128, 128, 8
        $region20: #{tpu_custom_call.1} parent=11 // pred_fallthru
          _
        // Predicated region
        $region21: #{tpu_custom_call.1} parent=11 // pred_check
          %p339 = pneg %p120
        $region22: #{tpu_custom_call.1} parent=11 // pred_check_branch
          %341 = sbr.rel (%p339) target = $region24
        $region23: #{tpu_custom_call.1} parent=11 // pred_region
          %343 = vsyncadd [#allocation9], 0
          %s344 = sshll.u32 %s3, 4
          %s345 = int_to_ptr.hbm [resolvable:$true] %s344
          %s346 = sshll.u32 [#allocation8], 4
          %s347 = int_to_ptr.vmem [resolvable:$true] %s346
          %352 = dma.hbm_to_vmem [thread:$0]  %s345, 512, %s347, [#allocation9], 128, 128, 8
        $region24: #{tpu_custom_call.1} parent=11 // pred_fallthru
          _
        // Predicated region
        $region25: #{tpu_custom_call.1} parent=11 // pred_check
          %p353 = pneg %p141
        $region26: #{tpu_custom_call.1} parent=11 // pred_check_branch
          %355 = sbr.rel (%p353) target = $region28
        $region27: #{tpu_custom_call.1} parent=11 // pred_region
          %357 = vsyncadd [#allocation9], 0
          %s358 = sshll.u32 %s4, 4
          %s359 = int_to_ptr.hbm [resolvable:$true] %s358
          %s360 = sshll.u32 [#allocation10], 4
          %s361 = int_to_ptr.vmem [resolvable:$true] %s360
          %366 = dma.hbm_to_vmem [thread:$0]  %s359, 512, %s361, [#allocation9], 128, 128, 8
        $region28: #{tpu_custom_call.1} parent=11 // pred_fallthru
          _
        // Predicated region
        $region29: #{tpu_custom_call.1} parent=11 // pred_check
          %p367 = pneg %p162
        $region30: #{tpu_custom_call.1} parent=11 // pred_check_branch
          %369 = sbr.rel (%p367) target = $region32
        $region31: #{tpu_custom_call.1} parent=11 // pred_region
          _
        $region32: #{tpu_custom_call.1} parent=11 // pred_fallthru
          _
        // Predicated region
        $region33: #{tpu_custom_call.1} parent=11 // pred_check
          %p370 = pneg %p183
        $region34: #{tpu_custom_call.1} parent=11 // pred_check_branch
          %372 = sbr.rel (%p370) target = $region36
        $region35: #{tpu_custom_call.1} parent=11 // pred_region
          %374 = vsyncadd [#allocation12], 0
          %s375 = sshll.u32 %s6, 4
          %s376 = int_to_ptr.hbm [resolvable:$true] %s375
          %s377 = sshll.u32 [#allocation11], 4
          %s378 = int_to_ptr.vmem [resolvable:$true] %s377
          %383 = dma.hbm_to_vmem [thread:$0]  %s376, 512, %s378, [#allocation12], 128, 128, 8
        $region36: #{tpu_custom_call.1} parent=11 // pred_fallthru
          _
        // Predicated region
        $region37: #{tpu_custom_call.1} parent=11 // pred_check
          %p384 = pneg %p204
        $region38: #{tpu_custom_call.1} parent=11 // pred_check_branch
          %386 = sbr.rel (%p384) target = $region40
        $region39: #{tpu_custom_call.1} parent=11 // pred_region
          _
        $region40: #{tpu_custom_call.1} parent=11 // pred_fallthru
          _
        // Predicated region
        $region41: #{tpu_custom_call.1} parent=11 // pred_check
          %p387 = pneg %p225
        $region42: #{tpu_custom_call.1} parent=11 // pred_check_branch
          %389 = sbr.rel (%p387) target = $region44
        $region43: #{tpu_custom_call.1} parent=11 // pred_region
          %391 = vsyncadd [#allocation12], 0
          %s392 = sshll.u32 %s8, 4
          %s393 = int_to_ptr.hbm [resolvable:$true] %s392
          %s394 = sshll.u32 [#allocation13], 4
          %s395 = int_to_ptr.vmem [resolvable:$true] %s394
          %400 = dma.hbm_to_vmem [thread:$0]  %s393, 512, %s395, [#allocation12], 128, 128, 8
        $region44: #{tpu_custom_call.1} parent=11 // pred_fallthru
          _
        // Predicated region
        $region45: #{tpu_custom_call.1} parent=11 // pred_check
          %p401 = pneg %p246
        $region46: #{tpu_custom_call.1} parent=11 // pred_check_branch
          %403 = sbr.rel (%p401) target = $region48
        $region47: #{tpu_custom_call.1} parent=11 // pred_region
          %405 = vsyncadd [#allocation15], 0
          %s406 = sshll.u32 %s9, 4
          %s407 = int_to_ptr.hbm [resolvable:$true] %s406
          %s408 = sshll.u32 [#allocation14], 4
          %s409 = int_to_ptr.vmem [resolvable:$true] %s408
          %414 = dma.hbm_to_vmem [thread:$0]  %s407, 512, %s409, [#allocation15], 128, 128, 8
        $region48: #{tpu_custom_call.1} parent=11 // pred_fallthru
          _
      $region12: #{tpu_custom_call.1} parent=5 // pred_fallthru
        _
      %p415 = scmp.lt.s32.totalorder %s31, 2
      // Predicated region
      $region49: #{tpu_custom_call.1} parent=5 // pred_check
        %p416 = pneg %p415
      $region50: #{tpu_custom_call.1} parent=5 // pred_check_branch
        %418 = sbr.rel (%p416) target = $region52
      $region51: #{tpu_custom_call.1} parent=5 // pred_region
        // Predicated region
        $region53: #{tpu_custom_call.1} parent=51 // pred_check
          %p419 = pneg %p51
        $region54: #{tpu_custom_call.1} parent=51 // pred_check_branch
          %421 = sbr.rel (%p419) target = $region56
        $region55: #{tpu_custom_call.1} parent=51 // pred_region
          %s422 = sand.u32 %s41, 1
          %s423 = scalar_lea.sflag [#allocation3], %s422
          %s424 = sand.u32 %s41, 1
          %s425 = smul.addr %s424, 32
          %s426 = scalar_lea.vmem [#allocation2], %s425
          %s427 = smul.u32 2, %s31
          %429 = vsyncadd %s423, 0
          %s430 = smul.addr %s427, 2
          %s431 = smul.addr %s430, 8
          %s432 = scalar_lea.hbm %s0, %s431
          %s433 = sshll.u32 %s432, 4
          %s434 = int_to_ptr.hbm [resolvable:$true] %s433
          %s435 = sshll.u32 %s426, 4
          %s436 = int_to_ptr.vmem [resolvable:$true] %s435
          %441 = dma.hbm_to_vmem [thread:$0]  %s434, 512, %s436, %s423, 128, 128, 8
        $region56: #{tpu_custom_call.1} parent=51 // pred_fallthru
          _
      $region52: #{tpu_custom_call.1} parent=5 // pred_fallthru
        _
      %p442 = scmp.le.s32.totalorder 1, %s31
      %p443 = scmp.lt.s32.totalorder %s31, 3
      %p444 = pnand %p442, %p443
      %p445 = pneg %p444
      // Predicated region
      $region57: #{tpu_custom_call.1} parent=5 // pred_check
        _
      $region58: #{tpu_custom_call.1} parent=5 // pred_check_branch
        %447 = sbr.rel (%p444) target = $region60
      $region59: #{tpu_custom_call.1} parent=5 // pred_region
        %s448 = ssub.s32 %s31, 1
        %s449 = sand.u32 %s44, 1
        %s450 = scalar_lea.sflag [#allocation3], %s449
        %s451 = sand.u32 %s44, 1
        %s452 = smul.addr %s451, 32
        %s453 = scalar_lea.vmem [#allocation2], %s452
        // Predicated region
        $region61: #{tpu_custom_call.1} parent=59 // pred_check
          %p454 = pneg %p57
        $region62: #{tpu_custom_call.1} parent=59 // pred_check_branch
          %456 = sbr.rel (%p454) target = $region64
        $region63: #{tpu_custom_call.1} parent=59 // pred_region
          %458 = dma.done %s450, 512
        $region64: #{tpu_custom_call.1} parent=59 // pred_fallthru
          _
        // Predicated region
        $region65: #{tpu_custom_call.1} parent=59 // pred_check
          %p459 = pneg %p78
        $region66: #{tpu_custom_call.1} parent=59 // pred_check_branch
          %461 = sbr.rel (%p459) target = $region68
        $region67: #{tpu_custom_call.1} parent=59 // pred_region
          %463 = dma.done [#allocation6], 128
        $region68: #{tpu_custom_call.1} parent=59 // pred_fallthru
          _
        // Predicated region
        $region69: #{tpu_custom_call.1} parent=59 // pred_check
          %p464 = pneg %p99
        $region70: #{tpu_custom_call.1} parent=59 // pred_check_branch
          %466 = sbr.rel (%p464) target = $region72
        $region71: #{tpu_custom_call.1} parent=59 // pred_region
          %468 = dma.done [#allocation6], 512
        $region72: #{tpu_custom_call.1} parent=59 // pred_fallthru
          _
        // Predicated region
        $region73: #{tpu_custom_call.1} parent=59 // pred_check
          %p469 = pneg %p120
        $region74: #{tpu_custom_call.1} parent=59 // pred_check_branch
          %471 = sbr.rel (%p469) target = $region76
        $region75: #{tpu_custom_call.1} parent=59 // pred_region
          %473 = dma.done [#allocation9], 512
        $region76: #{tpu_custom_call.1} parent=59 // pred_fallthru
          _
        // Predicated region
        $region77: #{tpu_custom_call.1} parent=59 // pred_check
          %p474 = pneg %p141
        $region78: #{tpu_custom_call.1} parent=59 // pred_check_branch
          %476 = sbr.rel (%p474) target = $region80
        $region79: #{tpu_custom_call.1} parent=59 // pred_region
          %478 = dma.done [#allocation9], 512
        $region80: #{tpu_custom_call.1} parent=59 // pred_fallthru
          _
        // Predicated region
        $region81: #{tpu_custom_call.1} parent=59 // pred_check
          %p479 = pneg %p183
        $region82: #{tpu_custom_call.1} parent=59 // pred_check_branch
          %481 = sbr.rel (%p479) target = $region84
        $region83: #{tpu_custom_call.1} parent=59 // pred_region
          %483 = dma.done [#allocation12], 512
        $region84: #{tpu_custom_call.1} parent=59 // pred_fallthru
          _
        // Predicated region
        $region85: #{tpu_custom_call.1} parent=59 // pred_check
          %p484 = pneg %p225
        $region86: #{tpu_custom_call.1} parent=59 // pred_check_branch
          %486 = sbr.rel (%p484) target = $region88
        $region87: #{tpu_custom_call.1} parent=59 // pred_region
          %488 = dma.done [#allocation12], 512
        $region88: #{tpu_custom_call.1} parent=59 // pred_fallthru
          _
        // Predicated region
        $region89: #{tpu_custom_call.1} parent=59 // pred_check
          %p489 = pneg %p246
        $region90: #{tpu_custom_call.1} parent=59 // pred_check_branch
          %491 = sbr.rel (%p489) target = $region92
        $region91: #{tpu_custom_call.1} parent=59 // pred_region
          %493 = dma.done [#allocation15], 512
        $region92: #{tpu_custom_call.1} parent=59 // pred_fallthru
          _
        %s494 = sand.u32 %s44, 1
        %s495 = scalar_lea.sflag [#allocation3], %s494
        %s496 = sand.u32 %s44, 1
        %s497 = smul.addr %s496, 32
        %s498 = scalar_lea.vmem [#allocation2], %s497
        %p499 = pneg %p57
        %p500 = pneg %p54
        %p501 = pneg %p78
        %p502 = pneg %p75
        %p503 = pneg %p99
        %p504 = pneg %p96
        %p505 = pneg %p120
        %p506 = pneg %p117
        %p507 = pneg %p141
        %p508 = pneg %p138
        %p509 = pneg %p162
        %p510 = pneg %p159
        %p511 = pneg %p183
        %p512 = pneg %p180
        %p513 = pneg %p204
        %p514 = pneg %p201
        %p515 = pneg %p225
        %p516 = pneg %p222
        %p517 = pneg %p246
        %p518 = pneg %p243
        %p519 = pneg %p272
        %p520 = pneg %p269
        %s521 = sand.u32 %s259, 1
        %s522 = scalar_lea.sflag [#allocation4], %s521
        %s523 = sand.u32 %s259, 1
        %s524 = smul.addr %s523, 32
        %s525 = scalar_lea.vmem [#allocation16], %s524
        %p526 = pneg %p298
        %p527 = pneg %p295
        %s528 = sand.u32 %s285, 1
        %s529 = scalar_lea.sflag [#allocation18], %s528
        %s530 = sand.u32 %s285, 1
        %s531 = smul.addr %s530, 16
        %s532 = scalar_lea.vmem [#allocation17], %s531
        %s533 = smul.u32 2, %s36
        %s534 = smul.u32 2, %s36
        %s535 = smul.u32 2, %s36
        %v536 = vld [vmem:[%s453] sm:$0xff]
        %v537 = vld [vmem:[%s453 + $0x8] sm:$0xff]
        %v538 = vld [vmem:[%s453 + $0x10] sm:$0xff]
        %v539 = vld [vmem:[%s453 + $0x18] sm:$0xff]
        %v540 = vld [vmem:[#allocation5] sm:$0xff]
        %vm541 = vcmask 261120
        %v543 = vsel %vm541, %v540, 0
        %v546 = vsel %vm541, %v536, 0
        %v549 = vsel %vm541, %v537, 0
        %551 = vmatpush.xpose.msra.mxu0 0.0
        %552 = vmatpush.xpose.msra.mxu0 0.0
        %553 = vmatpush.xpose.msra.mxu0 0.0
        %554 = vmatpush.xpose.msra.mxu0 0.0
        %555 = vmatpush.xpose.msra.mxu0 0.0
        %556 = vmatpush.xpose.msra.mxu0 0.0
        %557 = vmatpush.xpose.msra.mxu0 0.0
        %558 = vmatpush.xpose.msra.mxu0 0.0
        %559 = vmatpush.xpose.msra.mxu0 0.0
        %560 = vmatpush.xpose.msra.mxu0 0.0
        %561 = vmatpush.xpose.msra.mxu0 0.0
        %562 = vmatpush.xpose.msra.mxu0 0.0
        %563 = vmatpush.xpose.msra.mxu0 0.0
        %564 = vmatpush.xpose.msra.mxu0 0.0
        %565 = vmatpush.xpose.msra.mxu0 %v549
        %566 = vmatpush.xpose.msra.mxu0 %v546
        %567 = vmatmul.f32.gmra.mxu0 %v543
        %v568 = vpop.f32.mrf.mxu0
        %v569 = vadd.f32 0.0, %v568
        %570 = vdwg.mxu0
        %v572 = vsel %vm541, %v538, 0
        %v575 = vsel %vm541, %v539, 0
        %577 = vmatpush.xpose.msra.mxu0 0.0
        %578 = vmatpush.xpose.msra.mxu0 0.0
        %579 = vmatpush.xpose.msra.mxu0 0.0
        %580 = vmatpush.xpose.msra.mxu0 0.0
        %581 = vmatpush.xpose.msra.mxu0 0.0
        %582 = vmatpush.xpose.msra.mxu0 0.0
        %583 = vmatpush.xpose.msra.mxu0 0.0
        %584 = vmatpush.xpose.msra.mxu0 0.0
        %585 = vmatpush.xpose.msra.mxu0 0.0
        %586 = vmatpush.xpose.msra.mxu0 0.0
        %587 = vmatpush.xpose.msra.mxu0 0.0
        %588 = vmatpush.xpose.msra.mxu0 0.0
        %589 = vmatpush.xpose.msra.mxu0 0.0
        %590 = vmatpush.xpose.msra.mxu0 0.0
        %591 = vmatpush.xpose.msra.mxu0 %v575
        %592 = vmatpush.xpose.msra.mxu0 %v572
        %593 = vmatmul.f32.gmra.mxu0 %v543
        %v594 = vpop.f32.mrf.mxu0
        %v595 = vadd.f32 0.0, %v594
        %596 = vdwg.mxu0
        %vm597 = vcmask 130048
        %v598 = vsel %vm597, %v569, -inf
        %599 = vmax.xlane.f32.xlu0 %v598
        %v600 = vpop.xlane.xlu0 %599
        %v601 = vsel %vm597, %v595, -inf
        %602 = vmax.xlane.f32.xlu0 %v601
        %v603 = vpop.xlane.xlu0 %602
        %v604 = vsub.f32 %v569, %v600
        %v605 = vsub.f32 %v595, %v603
        %v606 = vmul.f32 %v604, 1.442695
        %v607 = vpow.pop %v606
        %v608 = vmul.f32 %v605, 1.442695
        %v609 = vpow.pop %v608
        %v610 = vsel %vm597, %v607, 0.0
        %611 = vadd.xlane.f32.xlu0 %v610
        %v612 = vpop.xlane.xlu0 %611
        %v613 = vsel %vm597, %v609, 0.0
        %614 = vadd.xlane.f32.xlu0 %v613
        %v615 = vpop.xlane.xlu0 %614
        %v616 = vrcp.pop %v612
        %v617 = vmul.f32 %v612, %v616
        %v618 = vsub.f32 1.0, %v617
        %v619 = vmul.f32 %v616, %v618
        %v620 = vadd.f32 %v616, %v619
        %vm621 = vweird.f32 %v612
        %vm622 = vweird.f32 %v616
        %vm623 = vmor %vm621, %vm622
        %v624 = vsel %vm623, %v616, %v620
        %v625 = vand.u32 2147483647, %v612
        %vm626 = vcmp.eq.f32.partialorder %v625, 8.507059e+37
        %v627 = vand.u32 %v612, 2147483648
        %v628 = vor.u32 1.1754944e-38, %v627
        %v629 = vsel %vm626, %v628, %v624
        %v630 = vrcp.pop %v615
        %v631 = vmul.f32 %v615, %v630
        %v632 = vsub.f32 1.0, %v631
        %v633 = vmul.f32 %v630, %v632
        %v634 = vadd.f32 %v630, %v633
        %vm635 = vweird.f32 %v615
        %vm636 = vweird.f32 %v630
        %vm637 = vmor %vm635, %vm636
        %v638 = vsel %vm637, %v630, %v634
        %v639 = vand.u32 2147483647, %v615
        %vm640 = vcmp.eq.f32.partialorder %v639, 8.507059e+37
        %v641 = vand.u32 %v615, 2147483648
        %v642 = vor.u32 1.1754944e-38, %v641
        %v643 = vsel %vm640, %v642, %v638
        %v644 = vmul.f32 %v607, %v629
        %v645 = vmul.f32 %v609, %v643
        %v647 = vsel %vm597, %v644, 0
        %649 = vmatpush.msra.mxu0 0.0
        %650 = vmatpush.msra.mxu0 0.0
        %651 = vmatpush.msra.mxu0 0.0
        %652 = vmatpush.msra.mxu0 0.0
        %653 = vmatpush.msra.mxu0 0.0
        %654 = vmatpush.msra.mxu0 0.0
        %655 = vmatpush.msra.mxu0 0.0
        %656 = vmatpush.msra.mxu0 0.0
        %657 = vmatpush.msra.mxu0 0.0
        %658 = vmatpush.msra.mxu0 0.0
        %659 = vmatpush.msra.mxu0 0.0
        %660 = vmatpush.msra.mxu0 0.0
        %661 = vmatpush.msra.mxu0 0.0
        %662 = vmatpush.msra.mxu0 0.0
        %663 = vmatpush.msra.mxu0 %v537
        %664 = vmatpush.msra.mxu0 %v536
        %665 = vmatmul.f32.gmra.mxu0 %v647
        %v666 = vpop.f32.mrf.mxu0
        %v667 = vadd.f32 0.0, %v666
        %668 = vdwg.mxu0
        %v670 = vsel %vm597, %v645, 0
        %672 = vmatpush.msra.mxu0 0.0
        %673 = vmatpush.msra.mxu0 0.0
        %674 = vmatpush.msra.mxu0 0.0
        %675 = vmatpush.msra.mxu0 0.0
        %676 = vmatpush.msra.mxu0 0.0
        %677 = vmatpush.msra.mxu0 0.0
        %678 = vmatpush.msra.mxu0 0.0
        %679 = vmatpush.msra.mxu0 0.0
        %680 = vmatpush.msra.mxu0 0.0
        %681 = vmatpush.msra.mxu0 0.0
        %682 = vmatpush.msra.mxu0 0.0
        %683 = vmatpush.msra.mxu0 0.0
        %684 = vmatpush.msra.mxu0 0.0
        %685 = vmatpush.msra.mxu0 0.0
        %686 = vmatpush.msra.mxu0 %v539
        %687 = vmatpush.msra.mxu0 %v538
        %688 = vmatmul.f32.gmra.mxu0 %v670
        %v689 = vpop.f32.mrf.mxu0
        %v690 = vadd.f32 0.0, %v689
        %691 = vdwg.mxu0
        %v692 = vld [vmem:[#allocation7] sm:$0xff]
        %v693 = vld [vmem:[#allocation7 + $0x8] sm:$0xff]
        %v694 = vld [vmem:[#allocation7 + $0x10] sm:$0xff]
        %v695 = vld [vmem:[#allocation7 + $0x18] sm:$0xff]
        %v697 = vsel %vm541, %v667, 0
        %v700 = vsel %vm541, %v690, 0
        %702 = vmatpush.msra.mxu0 0.0
        %703 = vmatpush.msra.mxu0 0.0
        %704 = vmatpush.msra.mxu0 0.0
        %705 = vmatpush.msra.mxu0 0.0
        %706 = vmatpush.msra.mxu0 0.0
        %707 = vmatpush.msra.mxu0 0.0
        %708 = vmatpush.msra.mxu0 0.0
        %709 = vmatpush.msra.mxu0 0.0
        %710 = vmatpush.msra.mxu0 0.0
        %711 = vmatpush.msra.mxu0 0.0
        %712 = vmatpush.msra.mxu0 0.0
        %713 = vmatpush.msra.mxu0 0.0
        %714 = vmatpush.msra.mxu0 %v695
        %715 = vmatpush.msra.mxu0 %v694
        %716 = vmatpush.msra.mxu0 %v693
        %717 = vmatpush.msra.mxu0 %v692
        %718 = vmatmul.f32.gmra.mxu0 %v697
        %v719 = vpop.f32.mrf.mxu0
        %v720 = vadd.f32 0.0, %v719
        %721 = vmatmul.f32.gmra.mxu0 %v700
        %v722 = vpop.f32.mrf.mxu0
        %v723 = vadd.f32 0.0, %v722
        %724 = vdwg.mxu0
        %v725 = vld [vmem:[#allocation8] sm:$0xff]
        %v726 = vld [vmem:[#allocation8 + $0x8] sm:$0xff]
        %v727 = vld [vmem:[#allocation8 + $0x10] sm:$0xff]
        %v728 = vld [vmem:[#allocation8 + $0x18] sm:$0xff]
        %729 = vmatpush.msra.mxu0 0.0
        %730 = vmatpush.msra.mxu0 0.0
        %731 = vmatpush.msra.mxu0 0.0
        %732 = vmatpush.msra.mxu0 0.0
        %733 = vmatpush.msra.mxu0 0.0
        %734 = vmatpush.msra.mxu0 0.0
        %735 = vmatpush.msra.mxu0 0.0
        %736 = vmatpush.msra.mxu0 0.0
        %737 = vmatpush.msra.mxu0 0.0
        %738 = vmatpush.msra.mxu0 0.0
        %739 = vmatpush.msra.mxu0 0.0
        %740 = vmatpush.msra.mxu0 0.0
        %741 = vmatpush.msra.mxu0 %v728
        %742 = vmatpush.msra.mxu0 %v727
        %743 = vmatpush.msra.mxu0 %v726
        %744 = vmatpush.msra.mxu0 %v725
        %745 = vmatmul.f32.gmra.mxu0 %v697
        %v746 = vpop.f32.mrf.mxu0
        %v747 = vadd.f32 0.0, %v746
        %748 = vmatmul.f32.gmra.mxu0 %v700
        %v749 = vpop.f32.mrf.mxu0
        %v750 = vadd.f32 0.0, %v749
        %751 = vdwg.mxu0
        %v753 = vsel %vm541, %v720, 0
        %v756 = vsel %vm541, %v747, 0
        %758 = vmatpush.xpose.msra.mxu0 0.0
        %759 = vmatpush.xpose.msra.mxu0 0.0
        %760 = vmatpush.xpose.msra.mxu0 0.0
        %761 = vmatpush.xpose.msra.mxu0 0.0
        %762 = vmatpush.xpose.msra.mxu0 0.0
        %763 = vmatpush.xpose.msra.mxu0 0.0
        %764 = vmatpush.xpose.msra.mxu0 0.0
        %765 = vmatpush.xpose.msra.mxu0 0.0
        %766 = vmatpush.xpose.msra.mxu0 0.0
        %767 = vmatpush.xpose.msra.mxu0 0.0
        %768 = vmatpush.xpose.msra.mxu0 0.0
        %769 = vmatpush.xpose.msra.mxu0 0.0
        %770 = vmatpush.xpose.msra.mxu0 0.0
        %771 = vmatpush.xpose.msra.mxu0 0.0
        %772 = vmatpush.xpose.msra.mxu0 0.0
        %773 = vmatpush.xpose.msra.mxu0 %v756
        %774 = vmatmul.f32.gmra.mxu0 %v753
        %v775 = vpop.f32.mrf.mxu0
        %v776 = vadd.f32 0.0, %v775
        %777 = vdwg.mxu0
        %v779 = vsel %vm541, %v723, 0
        %v782 = vsel %vm541, %v750, 0
        %784 = vmatpush.xpose.msra.mxu0 0.0
        %785 = vmatpush.xpose.msra.mxu0 0.0
        %786 = vmatpush.xpose.msra.mxu0 0.0
        %787 = vmatpush.xpose.msra.mxu0 0.0
        %788 = vmatpush.xpose.msra.mxu0 0.0
        %789 = vmatpush.xpose.msra.mxu0 0.0
        %790 = vmatpush.xpose.msra.mxu0 0.0
        %791 = vmatpush.xpose.msra.mxu0 0.0
        %792 = vmatpush.xpose.msra.mxu0 0.0
        %793 = vmatpush.xpose.msra.mxu0 0.0
        %794 = vmatpush.xpose.msra.mxu0 0.0
        %795 = vmatpush.xpose.msra.mxu0 0.0
        %796 = vmatpush.xpose.msra.mxu0 0.0
        %797 = vmatpush.xpose.msra.mxu0 0.0
        %798 = vmatpush.xpose.msra.mxu0 0.0
        %799 = vmatpush.xpose.msra.mxu0 %v782
        %800 = vmatmul.f32.gmra.mxu0 %v779
        %v801 = vpop.f32.mrf.mxu0
        %v802 = vadd.f32 0.0, %v801
        %803 = vdwg.mxu0
        %vm804 = vcmask 64512
        %v805 = vsel %vm804, %v776, -inf
        %806 = vmax.xlane.f32.xlu0 %v805
        %v807 = vpop.xlane.xlu0 %806
        %v808 = vsel %vm804, %v802, -inf
        %809 = vmax.xlane.f32.xlu0 %v808
        %v810 = vpop.xlane.xlu0 %809
        %v811 = vsub.f32 %v776, %v807
        %v812 = vsub.f32 %v802, %v810
        %v813 = vmul.f32 %v811, 1.442695
        %v814 = vpow.pop %v813
        %v815 = vmul.f32 %v812, 1.442695
        %v816 = vpow.pop %v815
        %v817 = vsel %vm804, %v814, 0.0
        %818 = vadd.xlane.f32.xlu0 %v817
        %v819 = vpop.xlane.xlu0 %818
        %v820 = vsel %vm804, %v816, 0.0
        %821 = vadd.xlane.f32.xlu0 %v820
        %v822 = vpop.xlane.xlu0 %821
        %v823 = vrcp.pop %v819
        %v824 = vmul.f32 %v819, %v823
        %v825 = vsub.f32 1.0, %v824
        %v826 = vmul.f32 %v823, %v825
        %v827 = vadd.f32 %v823, %v826
        %vm828 = vweird.f32 %v819
        %vm829 = vweird.f32 %v823
        %vm830 = vmor %vm828, %vm829
        %v831 = vsel %vm830, %v823, %v827
        %v832 = vand.u32 2147483647, %v819
        %vm833 = vcmp.eq.f32.partialorder %v832, 8.507059e+37
        %v834 = vand.u32 %v819, 2147483648
        %v835 = vor.u32 1.1754944e-38, %v834
        %v836 = vsel %vm833, %v835, %v831
        %v837 = vrcp.pop %v822
        %v838 = vmul.f32 %v822, %v837
        %v839 = vsub.f32 1.0, %v838
        %v840 = vmul.f32 %v837, %v839
        %v841 = vadd.f32 %v837, %v840
        %vm842 = vweird.f32 %v822
        %vm843 = vweird.f32 %v837
        %vm844 = vmor %vm842, %vm843
        %v845 = vsel %vm844, %v837, %v841
        %v846 = vand.u32 2147483647, %v822
        %vm847 = vcmp.eq.f32.partialorder %v846, 8.507059e+37
        %v848 = vand.u32 %v822, 2147483648
        %v849 = vor.u32 1.1754944e-38, %v848
        %v850 = vsel %vm847, %v849, %v845
        %v851 = vmul.f32 %v814, %v836
        %v852 = vmul.f32 %v816, %v850
        %v854 = vsel %vm804, %v851, 0
        %856 = vmatpush.msra.mxu0 0.0
        %857 = vmatpush.msra.mxu0 0.0
        %858 = vmatpush.msra.mxu0 0.0
        %859 = vmatpush.msra.mxu0 0.0
        %860 = vmatpush.msra.mxu0 0.0
        %861 = vmatpush.msra.mxu0 0.0
        %862 = vmatpush.msra.mxu0 0.0
        %863 = vmatpush.msra.mxu0 0.0
        %864 = vmatpush.msra.mxu0 0.0
        %865 = vmatpush.msra.mxu0 0.0
        %866 = vmatpush.msra.mxu0 0.0
        %867 = vmatpush.msra.mxu0 0.0
        %868 = vmatpush.msra.mxu0 0.0
        %869 = vmatpush.msra.mxu0 0.0
        %870 = vmatpush.msra.mxu0 0.0
        %871 = vmatpush.msra.mxu0 %v667
        %872 = vmatmul.f32.gmra.mxu0 %v854
        %v873 = vpop.f32.mrf.mxu0
        %v874 = vadd.f32 0.0, %v873
        %875 = vdwg.mxu0
        %v877 = vsel %vm804, %v852, 0
        %879 = vmatpush.msra.mxu0 0.0
        %880 = vmatpush.msra.mxu0 0.0
        %881 = vmatpush.msra.mxu0 0.0
        %882 = vmatpush.msra.mxu0 0.0
        %883 = vmatpush.msra.mxu0 0.0
        %884 = vmatpush.msra.mxu0 0.0
        %885 = vmatpush.msra.mxu0 0.0
        %886 = vmatpush.msra.mxu0 0.0
        %887 = vmatpush.msra.mxu0 0.0
        %888 = vmatpush.msra.mxu0 0.0
        %889 = vmatpush.msra.mxu0 0.0
        %890 = vmatpush.msra.mxu0 0.0
        %891 = vmatpush.msra.mxu0 0.0
        %892 = vmatpush.msra.mxu0 0.0
        %893 = vmatpush.msra.mxu0 0.0
        %894 = vmatpush.msra.mxu0 %v690
        %895 = vmatmul.f32.gmra.mxu0 %v877
        %v896 = vpop.f32.mrf.mxu0
        %v897 = vadd.f32 0.0, %v896
        %898 = vdwg.mxu0
        %v899 = vadd.f32 %v667, %v874
        %v900 = vadd.f32 %v690, %v897
        %v901 = vld [vmem:[#allocation10] sm:$0xff]
        %v902 = vld [vmem:[#allocation10 + $0x8] sm:$0xff]
        %v903 = vld [vmem:[#allocation10 + $0x10] sm:$0xff]
        %v904 = vld [vmem:[#allocation10 + $0x18] sm:$0xff]
        %v905 = vld [vmem:[%s5] sm:$0x1]
        %v907 = vperm.slane %v905, 0
        %v910 = vsel %vm541, %v899, 0
        %v913 = vsel %vm541, %v900, 0
        %915 = vmatpush.msra.mxu0 0.0
        %916 = vmatpush.msra.mxu0 0.0
        %917 = vmatpush.msra.mxu0 0.0
        %918 = vmatpush.msra.mxu0 0.0
        %919 = vmatpush.msra.mxu0 0.0
        %920 = vmatpush.msra.mxu0 0.0
        %921 = vmatpush.msra.mxu0 0.0
        %922 = vmatpush.msra.mxu0 0.0
        %923 = vmatpush.msra.mxu0 0.0
        %924 = vmatpush.msra.mxu0 0.0
        %925 = vmatpush.msra.mxu0 0.0
        %926 = vmatpush.msra.mxu0 0.0
        %927 = vmatpush.msra.mxu0 %v904
        %928 = vmatpush.msra.mxu0 %v903
        %929 = vmatpush.msra.mxu0 %v902
        %930 = vmatpush.msra.mxu0 %v901
        %931 = vmatmul.f32.gmra.mxu0 %v910
        %v932 = vpop.f32.mrf.mxu0
        %v933 = vadd.f32 %v907, %v932
        %934 = vmatmul.f32.gmra.mxu0 %v913
        %v935 = vpop.f32.mrf.mxu0
        %v936 = vadd.f32 %v907, %v935
        %937 = vdwg.mxu0
        %v938 = vmax.f32 %v933, 0.0
        %v939 = vmax.f32 %v936, 0.0
        %v940 = vld [vmem:[#allocation11] sm:$0xff]
        %v941 = vld [vmem:[#allocation11 + $0x8] sm:$0xff]
        %v942 = vld [vmem:[#allocation11 + $0x10] sm:$0xff]
        %v943 = vld [vmem:[#allocation11 + $0x18] sm:$0xff]
        %v944 = vld [vmem:[%s7] sm:$0x1]
        %v946 = vperm.slane %v944, 0
        %v949 = vsel %vm541, %v938, 0
        %v952 = vsel %vm541, %v939, 0
        %954 = vmatpush.msra.mxu0 0.0
        %955 = vmatpush.msra.mxu0 0.0
        %956 = vmatpush.msra.mxu0 0.0
        %957 = vmatpush.msra.mxu0 0.0
        %958 = vmatpush.msra.mxu0 0.0
        %959 = vmatpush.msra.mxu0 0.0
        %960 = vmatpush.msra.mxu0 0.0
        %961 = vmatpush.msra.mxu0 0.0
        %962 = vmatpush.msra.mxu0 0.0
        %963 = vmatpush.msra.mxu0 0.0
        %964 = vmatpush.msra.mxu0 0.0
        %965 = vmatpush.msra.mxu0 0.0
        %966 = vmatpush.msra.mxu0 %v943
        %967 = vmatpush.msra.mxu0 %v942
        %968 = vmatpush.msra.mxu0 %v941
        %969 = vmatpush.msra.mxu0 %v940
        %970 = vmatmul.f32.gmra.mxu0 %v949
        %v971 = vpop.f32.mrf.mxu0
        %v972 = vadd.f32 %v946, %v971
        %973 = vmatmul.f32.gmra.mxu0 %v952
        %v974 = vpop.f32.mrf.mxu0
        %v975 = vadd.f32 %v946, %v974
        %976 = vdwg.mxu0
        %v977 = vadd.f32 %v899, %v972
        %v978 = vadd.f32 %v900, %v975
        %v979 = vld [vmem:[#allocation13] sm:$0xff]
        %v980 = vld [vmem:[#allocation13 + $0x8] sm:$0xff]
        %v981 = vld [vmem:[#allocation13 + $0x10] sm:$0xff]
        %v982 = vld [vmem:[#allocation13 + $0x18] sm:$0xff]
        %983 = vmatpush.msra.mxu0 0.0
        %984 = vmatpush.msra.mxu0 0.0
        %985 = vmatpush.msra.mxu0 0.0
        %986 = vmatpush.msra.mxu0 0.0
        %987 = vmatpush.msra.mxu0 0.0
        %988 = vmatpush.msra.mxu0 0.0
        %989 = vmatpush.msra.mxu0 0.0
        %990 = vmatpush.msra.mxu0 0.0
        %991 = vmatpush.msra.mxu0 0.0
        %992 = vmatpush.msra.mxu0 0.0
        %993 = vmatpush.msra.mxu0 0.0
        %994 = vmatpush.msra.mxu0 0.0
        %995 = vmatpush.msra.mxu0 %v982
        %996 = vmatpush.msra.mxu0 %v981
        %997 = vmatpush.msra.mxu0 %v980
        %998 = vmatpush.msra.mxu0 %v979
        %999 = vmatmul.f32.gmra.mxu0 %v546
        %v1000 = vpop.f32.mrf.mxu0
        %v1001 = vadd.f32 0.0, %v1000
        %1002 = vmatmul.f32.gmra.mxu0 %v549
        %v1003 = vpop.f32.mrf.mxu0
        %v1004 = vadd.f32 0.0, %v1003
        %1005 = vmatmul.f32.gmra.mxu0 %v572
        %v1006 = vpop.f32.mrf.mxu0
        %v1007 = vadd.f32 0.0, %v1006
        %1008 = vmatmul.f32.gmra.mxu0 %v575
        %v1009 = vpop.f32.mrf.mxu0
        %v1010 = vadd.f32 0.0, %v1009
        %1011 = vdwg.mxu0
        %v1012 = vld [vmem:[#allocation14] sm:$0xff]
        %v1013 = vld [vmem:[#allocation14 + $0x8] sm:$0xff]
        %v1014 = vld [vmem:[#allocation14 + $0x10] sm:$0xff]
        %v1015 = vld [vmem:[#allocation14 + $0x18] sm:$0xff]
        %v1017 = vsel %vm541, %v977, 0
        %v1020 = vsel %vm541, %v978, 0
        %1022 = vmatpush.msra.mxu0 0.0
        %1023 = vmatpush.msra.mxu0 0.0
        %1024 = vmatpush.msra.mxu0 0.0
        %1025 = vmatpush.msra.mxu0 0.0
        %1026 = vmatpush.msra.mxu0 0.0
        %1027 = vmatpush.msra.mxu0 0.0
        %1028 = vmatpush.msra.mxu0 0.0
        %1029 = vmatpush.msra.mxu0 0.0
        %1030 = vmatpush.msra.mxu0 0.0
        %1031 = vmatpush.msra.mxu0 0.0
        %1032 = vmatpush.msra.mxu0 0.0
        %1033 = vmatpush.msra.mxu0 0.0
        %1034 = vmatpush.msra.mxu0 %v1015
        %1035 = vmatpush.msra.mxu0 %v1014
        %1036 = vmatpush.msra.mxu0 %v1013
        %1037 = vmatpush.msra.mxu0 %v1012
        %1038 = vmatmul.f32.gmra.mxu0 %v1017
        %v1039 = vpop.f32.mrf.mxu0
        %v1040 = vadd.f32 0.0, %v1039
        %1041 = vmatmul.f32.gmra.mxu0 %v1020
        %v1042 = vpop.f32.mrf.mxu0
        %v1043 = vadd.f32 0.0, %v1042
        %1044 = vdwg.mxu0
        %v1046 = vsel %vm541, %v1001, 0
        %v1049 = vsel %vm541, %v1004, 0
        %v1052 = vsel %vm541, %v1040, 0
        %1054 = vmatpush.xpose.msra.mxu0 0.0
        %1055 = vmatpush.xpose.msra.mxu0 0.0
        %1056 = vmatpush.xpose.msra.mxu0 0.0
        %1057 = vmatpush.xpose.msra.mxu0 0.0
        %1058 = vmatpush.xpose.msra.mxu0 0.0
        %1059 = vmatpush.xpose.msra.mxu0 0.0
        %1060 = vmatpush.xpose.msra.mxu0 0.0
        %1061 = vmatpush.xpose.msra.mxu0 0.0
        %1062 = vmatpush.xpose.msra.mxu0 0.0
        %1063 = vmatpush.xpose.msra.mxu0 0.0
        %1064 = vmatpush.xpose.msra.mxu0 0.0
        %1065 = vmatpush.xpose.msra.mxu0 0.0
        %1066 = vmatpush.xpose.msra.mxu0 0.0
        %1067 = vmatpush.xpose.msra.mxu0 0.0
        %1068 = vmatpush.xpose.msra.mxu0 0.0
        %1069 = vmatpush.xpose.msra.mxu0 %v1052
        %1070 = vmatmul.f32.gmra.mxu0 %v1046
        %v1071 = vpop.f32.mrf.mxu0
        %v1072 = vadd.f32 0.0, %v1071
        %1073 = vmatmul.f32.gmra.mxu0 %v1049
        %v1074 = vpop.f32.mrf.mxu0
        %v1075 = vadd.f32 0.0, %v1074
        %1076 = vdwg.mxu0
        %v1078 = vsel %vm541, %v1007, 0
        %v1081 = vsel %vm541, %v1010, 0
        %v1084 = vsel %vm541, %v1043, 0
        %1086 = vmatpush.xpose.msra.mxu0 0.0
        %1087 = vmatpush.xpose.msra.mxu0 0.0
        %1088 = vmatpush.xpose.msra.mxu0 0.0
        %1089 = vmatpush.xpose.msra.mxu0 0.0
        %1090 = vmatpush.xpose.msra.mxu0 0.0
        %1091 = vmatpush.xpose.msra.mxu0 0.0
        %1092 = vmatpush.xpose.msra.mxu0 0.0
        %1093 = vmatpush.xpose.msra.mxu0 0.0
        %1094 = vmatpush.xpose.msra.mxu0 0.0
        %1095 = vmatpush.xpose.msra.mxu0 0.0
        %1096 = vmatpush.xpose.msra.mxu0 0.0
        %1097 = vmatpush.xpose.msra.mxu0 0.0
        %1098 = vmatpush.xpose.msra.mxu0 0.0
        %1099 = vmatpush.xpose.msra.mxu0 0.0
        %1100 = vmatpush.xpose.msra.mxu0 0.0
        %1101 = vmatpush.xpose.msra.mxu0 %v1084
        %1102 = vmatmul.f32.gmra.mxu0 %v1078
        %v1103 = vpop.f32.mrf.mxu0
        %v1104 = vadd.f32 0.0, %v1103
        %1105 = vmatmul.f32.gmra.mxu0 %v1081
        %v1106 = vpop.f32.mrf.mxu0
        %v1107 = vadd.f32 0.0, %v1106
        %1108 = vdwg.mxu0
        %v1109 = vsel %vm804, %v1072, -inf
        %1110 = vmax.xlane.f32.xlu0 %v1109
        %v1111 = vpop.xlane.xlu0 %1110
        %v1112 = vsel %vm804, %v1075, -inf
        %1113 = vmax.xlane.f32.xlu0 %v1112
        %v1114 = vpop.xlane.xlu0 %1113
        %v1115 = vsel %vm804, %v1104, -inf
        %1116 = vmax.xlane.f32.xlu0 %v1115
        %v1117 = vpop.xlane.xlu0 %1116
        %v1118 = vsel %vm804, %v1107, -inf
        %1119 = vmax.xlane.f32.xlu0 %v1118
        %v1120 = vpop.xlane.xlu0 %1119
        %v1121 = vsub.f32 %v1072, %v1111
        %v1122 = vsub.f32 %v1075, %v1114
        %v1123 = vsub.f32 %v1104, %v1117
        %v1124 = vsub.f32 %v1107, %v1120
        %v1125 = vmul.f32 %v1121, 1.442695
        %v1126 = vpow.pop %v1125
        %v1127 = vmul.f32 %v1122, 1.442695
        %v1128 = vpow.pop %v1127
        %v1129 = vmul.f32 %v1123, 1.442695
        %v1130 = vpow.pop %v1129
        %v1131 = vmul.f32 %v1124, 1.442695
        %v1132 = vpow.pop %v1131
        %v1133 = vsel %vm804, %v1126, 0.0
        %1134 = vadd.xlane.f32.xlu0 %v1133
        %v1135 = vpop.xlane.xlu0 %1134
        %v1136 = vsel %vm804, %v1128, 0.0
        %1137 = vadd.xlane.f32.xlu0 %v1136
        %v1138 = vpop.xlane.xlu0 %1137
        %v1139 = vsel %vm804, %v1130, 0.0
        %1140 = vadd.xlane.f32.xlu0 %v1139
        %v1141 = vpop.xlane.xlu0 %1140
        %v1142 = vsel %vm804, %v1132, 0.0
        %1143 = vadd.xlane.f32.xlu0 %v1142
        %v1144 = vpop.xlane.xlu0 %1143
        %v1145 = vrcp.pop %v1135
        %v1146 = vmul.f32 %v1135, %v1145
        %v1147 = vsub.f32 1.0, %v1146
        %v1148 = vmul.f32 %v1145, %v1147
        %v1149 = vadd.f32 %v1145, %v1148
        %vm1150 = vweird.f32 %v1135
        %vm1151 = vweird.f32 %v1145
        %vm1152 = vmor %vm1150, %vm1151
        %v1153 = vsel %vm1152, %v1145, %v1149
        %v1154 = vand.u32 2147483647, %v1135
        %vm1155 = vcmp.eq.f32.partialorder %v1154, 8.507059e+37
        %v1156 = vand.u32 %v1135, 2147483648
        %v1157 = vor.u32 1.1754944e-38, %v1156
        %v1158 = vsel %vm1155, %v1157, %v1153
        %v1159 = vrcp.pop %v1138
        %v1160 = vmul.f32 %v1138, %v1159
        %v1161 = vsub.f32 1.0, %v1160
        %v1162 = vmul.f32 %v1159, %v1161
        %v1163 = vadd.f32 %v1159, %v1162
        %vm1164 = vweird.f32 %v1138
        %vm1165 = vweird.f32 %v1159
        %vm1166 = vmor %vm1164, %vm1165
        %v1167 = vsel %vm1166, %v1159, %v1163
        %v1168 = vand.u32 2147483647, %v1138
        %vm1169 = vcmp.eq.f32.partialorder %v1168, 8.507059e+37
        %v1170 = vand.u32 %v1138, 2147483648
        %v1171 = vor.u32 1.1754944e-38, %v1170
        %v1172 = vsel %vm1169, %v1171, %v1167
        %v1173 = vrcp.pop %v1141
        %v1174 = vmul.f32 %v1141, %v1173
        %v1175 = vsub.f32 1.0, %v1174
        %v1176 = vmul.f32 %v1173, %v1175
        %v1177 = vadd.f32 %v1173, %v1176
        %vm1178 = vweird.f32 %v1141
        %vm1179 = vweird.f32 %v1173
        %vm1180 = vmor %vm1178, %vm1179
        %v1181 = vsel %vm1180, %v1173, %v1177
        %v1182 = vand.u32 2147483647, %v1141
        %vm1183 = vcmp.eq.f32.partialorder %v1182, 8.507059e+37
        %v1184 = vand.u32 %v1141, 2147483648
        %v1185 = vor.u32 1.1754944e-38, %v1184
        %v1186 = vsel %vm1183, %v1185, %v1181
        %v1187 = vrcp.pop %v1144
        %v1188 = vmul.f32 %v1144, %v1187
        %v1189 = vsub.f32 1.0, %v1188
        %v1190 = vmul.f32 %v1187, %v1189
        %v1191 = vadd.f32 %v1187, %v1190
        %vm1192 = vweird.f32 %v1144
        %vm1193 = vweird.f32 %v1187
        %vm1194 = vmor %vm1192, %vm1193
        %v1195 = vsel %vm1194, %v1187, %v1191
        %v1196 = vand.u32 2147483647, %v1144
        %vm1197 = vcmp.eq.f32.partialorder %v1196, 8.507059e+37
        %v1198 = vand.u32 %v1144, 2147483648
        %v1199 = vor.u32 1.1754944e-38, %v1198
        %v1200 = vsel %vm1197, %v1199, %v1195
        %v1201 = vmul.f32 %v1126, %v1158
        %v1202 = vmul.f32 %v1128, %v1172
        %v1203 = vmul.f32 %v1130, %v1186
        %v1204 = vmul.f32 %v1132, %v1200
        %v1206 = vsel %vm804, %v1201, 0
        %v1209 = vsel %vm804, %v1202, 0
        %1211 = vmatpush.msra.mxu0 0.0
        %1212 = vmatpush.msra.mxu0 0.0
        %1213 = vmatpush.msra.mxu0 0.0
        %1214 = vmatpush.msra.mxu0 0.0
        %1215 = vmatpush.msra.mxu0 0.0
        %1216 = vmatpush.msra.mxu0 0.0
        %1217 = vmatpush.msra.mxu0 0.0
        %1218 = vmatpush.msra.mxu0 0.0
        %1219 = vmatpush.msra.mxu0 0.0
        %1220 = vmatpush.msra.mxu0 0.0
        %1221 = vmatpush.msra.mxu0 0.0
        %1222 = vmatpush.msra.mxu0 0.0
        %1223 = vmatpush.msra.mxu0 0.0
        %1224 = vmatpush.msra.mxu0 0.0
        %1225 = vmatpush.msra.mxu0 0.0
        %1226 = vmatpush.msra.mxu0 %v977
        %1227 = vmatmul.f32.gmra.mxu0 %v1206
        %v1228 = vpop.f32.mrf.mxu0
        %v1229 = vadd.f32 0.0, %v1228
        %1230 = vmatmul.f32.gmra.mxu0 %v1209
        %v1231 = vpop.f32.mrf.mxu0
        %v1232 = vadd.f32 0.0, %v1231
        %1233 = vdwg.mxu0
        %v1235 = vsel %vm804, %v1203, 0
        %v1238 = vsel %vm804, %v1204, 0
        %1240 = vmatpush.msra.mxu0 0.0
        %1241 = vmatpush.msra.mxu0 0.0
        %1242 = vmatpush.msra.mxu0 0.0
        %1243 = vmatpush.msra.mxu0 0.0
        %1244 = vmatpush.msra.mxu0 0.0
        %1245 = vmatpush.msra.mxu0 0.0
        %1246 = vmatpush.msra.mxu0 0.0
        %1247 = vmatpush.msra.mxu0 0.0
        %1248 = vmatpush.msra.mxu0 0.0
        %1249 = vmatpush.msra.mxu0 0.0
        %1250 = vmatpush.msra.mxu0 0.0
        %1251 = vmatpush.msra.mxu0 0.0
        %1252 = vmatpush.msra.mxu0 0.0
        %1253 = vmatpush.msra.mxu0 0.0
        %1254 = vmatpush.msra.mxu0 0.0
        %1255 = vmatpush.msra.mxu0 %v978
        %1256 = vmatmul.f32.gmra.mxu0 %v1235
        %v1257 = vpop.f32.mrf.mxu0
        %v1258 = vadd.f32 0.0, %v1257
        %1259 = vmatmul.f32.gmra.mxu0 %v1238
        %v1260 = vpop.f32.mrf.mxu0
        %v1261 = vadd.f32 0.0, %v1260
        %1262 = vdwg.mxu0
        %v1263 = vadd.f32 %v536, %v1229
        %v1264 = vadd.f32 %v537, %v1232
        %v1265 = vadd.f32 %v538, %v1258
        %v1266 = vadd.f32 %v539, %v1261
        %1267 = vst.msk [vmem:[%s525] sm:$0xff] %vm541, %v1263
        %1268 = vst.msk [vmem:[%s525 + $0x8] sm:$0xff] %vm541, %v1264
        %1269 = vst.msk [vmem:[%s525 + $0x10] sm:$0xff] %vm541, %v1265
        %1270 = vst.msk [vmem:[%s525 + $0x18] sm:$0xff] %vm541, %v1266
        %1271 = vst.msk [vmem:[%s532] sm:$0xff] %vm541, %v977
        %1272 = vst.msk [vmem:[%s532 + $0x8] sm:$0xff] %vm541, %v978
        %s1273 = sand.u32 %s259, 1
        %s1274 = scalar_lea.sflag [#allocation4], %s1273
        %s1275 = sand.u32 %s259, 1
        %s1276 = smul.addr %s1275, 32
        %s1277 = scalar_lea.vmem [#allocation16], %s1276
        %s1278 = sand.u32 %s285, 1
        %s1279 = scalar_lea.sflag [#allocation18], %s1278
        %s1280 = sand.u32 %s285, 1
        %s1281 = smul.addr %s1280, 16
        %s1282 = scalar_lea.vmem [#allocation17], %s1281
        // Predicated region
        $region93: #{tpu_custom_call.1} parent=59 // pred_check
          %p1283 = pneg %p269
        $region94: #{tpu_custom_call.1} parent=59 // pred_check_branch
          %1285 = sbr.rel (%p1283) target = $region96
        $region95: #{tpu_custom_call.1} parent=59 // pred_region
          %s1286 = smul.u32 2, %s36
          %1288 = vsyncadd %s1274, 0
          %s1289 = smul.addr %s1286, 2
          %s1290 = smul.addr %s1289, 8
          %s1291 = scalar_lea.hbm %s10, %s1290
          %s1292 = sshll.u32 %s1277, 4
          %s1293 = int_to_ptr.vmem [resolvable:$true] %s1292
          %s1294 = sshll.u32 %s1291, 4
          %s1295 = int_to_ptr.hbm [resolvable:$true] %s1294
          %1300 = dma.vmem_to_hbm [thread:$0]  %s1293, 512, %s1295, %s1274, 128, 128, 8
        $region96: #{tpu_custom_call.1} parent=59 // pred_fallthru
          _
        // Predicated region
        $region97: #{tpu_custom_call.1} parent=59 // pred_check
          %p1301 = pneg %p295
        $region98: #{tpu_custom_call.1} parent=59 // pred_check_branch
          %1303 = sbr.rel (%p1301) target = $region100
        $region99: #{tpu_custom_call.1} parent=59 // pred_region
          %s1304 = smul.u32 2, %s36
          %1306 = vsyncadd %s1279, 0
          %s1307 = smul.addr %s1304, 8
          %s1308 = scalar_lea.hbm %s11, %s1307
          %s1309 = sshll.u32 %s1282, 4
          %s1310 = int_to_ptr.vmem [resolvable:$true] %s1309
          %s1311 = sshll.u32 %s1308, 4
          %s1312 = int_to_ptr.hbm [resolvable:$true] %s1311
          %1317 = dma.vmem_to_hbm [thread:$0]  %s1310, 256, %s1312, %s1279, 128, 128, 8
        $region100: #{tpu_custom_call.1} parent=59 // pred_fallthru
          _
      $region60: #{tpu_custom_call.1} parent=5 // pred_fallthru
        _
      %p1318 = scmp.le.s32.totalorder 2, %s31
      // Predicated region
      $region101: #{tpu_custom_call.1} parent=5 // pred_check
        %p1319 = pneg %p1318
      $region102: #{tpu_custom_call.1} parent=5 // pred_check_branch
        %1321 = sbr.rel (%p1319) target = $region104
      $region103: #{tpu_custom_call.1} parent=5 // pred_region
        %s1322 = ssub.s32 %s31, 2
        // Predicated region
        $region105: #{tpu_custom_call.1} parent=103 // pred_check
          %p1323 = pneg %p275
        $region106: #{tpu_custom_call.1} parent=103 // pred_check_branch
          %1325 = sbr.rel (%p1323) target = $region108
        $region107: #{tpu_custom_call.1} parent=103 // pred_region
          %s1326 = sand.u32 %s260, 1
          %s1327 = scalar_lea.sflag [#allocation4], %s1326
          %s1328 = sand.u32 %s260, 1
          %s1329 = smul.addr %s1328, 32
          %s1330 = scalar_lea.vmem [#allocation16], %s1329
          %1332 = dma.done %s1327, 512
        $region108: #{tpu_custom_call.1} parent=103 // pred_fallthru
          _
        // Predicated region
        $region109: #{tpu_custom_call.1} parent=103 // pred_check
          %p1333 = pneg %p301
        $region110: #{tpu_custom_call.1} parent=103 // pred_check_branch
          %1335 = sbr.rel (%p1333) target = $region112
        $region111: #{tpu_custom_call.1} parent=103 // pred_region
          %s1336 = sand.u32 %s286, 1
          %s1337 = scalar_lea.sflag [#allocation18], %s1336
          %s1338 = sand.u32 %s286, 1
          %s1339 = smul.addr %s1338, 16
          %s1340 = scalar_lea.vmem [#allocation17], %s1339
          %1342 = dma.done %s1337, 256
        $region112: #{tpu_custom_call.1} parent=103 // pred_fallthru
          _
      $region104: #{tpu_custom_call.1} parent=5 // pred_fallthru
        _
    $region6: #{tpu_custom_call.1} parent=1 // loop_footer
      %s35 = sadd.s32 1, %s31
    $region7: #{tpu_custom_call.1} parent=1 // loop_footer_branch
      %30 = sbr.rel target = $region3
    $region8: #{tpu_custom_call.1} parent=1 // loop_exit
      _
    %1343 = vsyncpa [#allocation3], 1
    %s1344 = scalar_lea.sflag [#allocation3], 1
    %1345 = vsyncpa %s1344, 1
    %1346 = vsyncpa [#allocation6], 1
    %1347 = vsyncpa [#allocation9], 1
    %1348 = vsyncpa [#allocation12], 1
    %1349 = vsyncpa [#allocation15], 1
    %1350 = vsyncpa [#allocation4], 1
    %s1351 = scalar_lea.sflag [#allocation4], 1
    %1352 = vsyncpa %s1351, 1
    %1353 = vsyncpa [#allocation18], 1
    %s1354 = scalar_lea.sflag [#allocation18], 1
    %1355 = vsyncpa %s1354, 1

</llo_original>
